<compile_context>
chip_gen: v7x
topology: tpu7x:2x2x1
jax: 0.10.0
libtpu: 0.0.40
codegen_flags: <defaults>
</compile_context>

<pallas_src>
import functools
import math

import jax
import jax.numpy as jnp
from jax.experimental import pallas as pl
from jax.experimental.pallas import tpu as pltpu

DROP_EDGE_P = 0.1
MASK_NODE_P = 0.1
LN_EPS = 1e-5
NEG_INF = -1e30

_VMEM_SPEC = pl.BlockSpec(memory_space=pltpu.MemorySpace.VMEM)
_ANY_SPEC = pl.BlockSpec(memory_space=pl.ANY)

# ----- rows of the packed small-parameter blob ([25, 1024] f32, one DMA) -----
R_B_XM = 0
R_BN0_G, R_BN0_B = 1, 2
R_RBN_G, R_RBN_B = 3, 4            # res_bn gamma/beta, res_weight folded in
R_GAT_B = 5
R_GN_G, R_GN_B = 6, 7              # graph_norm gamma/beta, graph_feat_weight folded in
R_BD1, R_LND_G, R_LND_B = 8, 9, 10
R_B_ATTN, R_DESC_W = 11, 12        # fused attention bias; desc_feat_weight (broadcast)
R_ATTN_G, R_ATTN_B = 13, 14
R_B_CP1 = 15
R_LNC_G, R_LNC_B, R_LNP1_G, R_LNP1_B = 16, 17, 18, 19
R_BP2, R_LNP2_G, R_LNP2_B = 20, 21, 22
R_BP3, R_BC2 = 23, 24
N_BLOB_ROWS = 25
BLOB_W = 1024


def _gelu(x):
    # exact (erf) GELU, matching torch.nn.GELU / F.gelu defaults
    return 0.5 * x * (1.0 + jax.lax.erf(x * 0.7071067811865475))


# ---------------------------------------------------------------------------
# ONE fused Pallas kernel: the whole forward pass, everything resident in VMEM
# ---------------------------------------------------------------------------
def fused_forward_kernel(
    x_ref, masks_ref, adjb_ref, desc_ref, pool_ref,
    blob_ref, wxm_ref, wgat_ref, wattn_ref, wd1_ref, wc2_ref,
    wcp1_hbm, wp2_hbm, wp3_hbm,
    out_ref,
    wcp1_v, wp2_v, wp3_v, dma_sem,
):
    f32, bf16 = jnp.float32, jnp.bfloat16
    H, HD = 2, 64
    D = H * HD                                                        # 128

    # ---- kick off classifier/projection weight DMAs; hidden behind graph compute ----
    cp_cp1 = pltpu.make_async_copy(wcp1_hbm, wcp1_v, dma_sem.at[0])
    cp_p2 = pltpu.make_async_copy(wp2_hbm, wp2_v, dma_sem.at[1])
    cp_p3 = pltpu.make_async_copy(wp3_hbm, wp3_v, dma_sem.at[2])
    cp_cp1.start()
    cp_p2.start()
    cp_p3.start()

    def vec(row, width):                                              # [1, width] blob row
        return blob_ref[row:row + 1, 0:width]

    def layernorm(v, g_row, b_row, width):
        mu = jnp.mean(v, axis=-1, keepdims=True)
        var = jnp.mean((v - mu) ** 2, axis=-1, keepdims=True)
        return (v - mu) * jax.lax.rsqrt(var + LN_EPS) * vec(g_row, width) + vec(b_row, width)

    def softmax_agg(scores, values):
        m = jnp.max(scores, axis=-1, keepdims=True)
        p = jnp.exp(scores - m)                                       # masked entries -> 0
        inv = pl.reciprocal(jnp.sum(p, axis=-1, keepdims=True), approx=True)
        return jnp.dot(p, values, preferred_element_type=f32) * inv

    dn = (((1,), (1,)), ((), ()))                                     # contract last dims (A @ B^T)

    # ---- mask_node #1 ----------------------------------------------------------
    x = x_ref[...]                                                    # [N, 15]
    masks = masks_ref[...]                                            # [N, 2]
    mean1 = jnp.mean(x, axis=0, keepdims=True)
    xm = jnp.where(masks[:, 0:1] > 0.0, mean1, x)

    adjb1 = adjb_ref[0]                                               # additive masks 0 / -1e30
    adjb2 = adjb_ref[1]
    row_ok = jnp.max(adjb1, axis=-1, keepdims=True) > 0.5 * NEG_INF   # targets with >=1 in-edge

    # ---- ONE [15, 640] matmul: q0|k0|v0|q1|k1|v1|skip|res -----------------------
    y = jnp.dot(xm, wxm_ref[...], preferred_element_type=f32) + vec(R_B_XM, 640)

    # ---- TransformerConv(15, 64, heads=2) as dense masked attention -------------
    scale = 1.0 / math.sqrt(HD)
    head_out = []
    for h in range(H):
        base = h * 3 * HD
        qh = y[:, base:base + HD]
        kh = y[:, base + HD:base + 2 * HD]
        vh = y[:, base + 2 * HD:base + 3 * HD]
        s = jax.lax.dot_general(qh, kh, dn, preferred_element_type=f32) * scale + adjb1
        head_out.append(jnp.where(row_ok, softmax_agg(s, vh), 0.0))   # isolated targets -> 0
    conv1 = jnp.concatenate(head_out, axis=-1)                        # [N, 128]

    skip = y[:, 3 * H * HD:3 * H * HD + D]
    res = y[:, 3 * H * HD + D:3 * H * HD + 2 * D]

    x1 = layernorm(_gelu(conv1 + skip), R_BN0_G, R_BN0_B, D)          # bn0(gelu(conv1))
    x2 = x1 + layernorm(_gelu(res), R_RBN_G, R_RBN_B, D)              # res_weight folded in

    # ---- mask_node #2 ------------------------------------------------------------
    mean2 = jnp.mean(x2, axis=0, keepdims=True)
    x2m = jnp.where(masks[:, 1:2] > 0.0, mean2, x2)

    # ---- GATConv(128, 64); att_dst/att_src folded into weight cols 64, 65 -------
    xwp = jnp.dot(x2m, wgat_ref[...], preferred_element_type=f32)     # [N, 66]
    xw = xwp[:, 0:64]
    a_dst = xwp[:, 64:65]
    a_src = xwp[:, 65:66]
    ones = jnp.ones_like(a_dst)
    # e[i, j] = a_dst[i] + a_src[j] via a rank-2 matmul (no transpose of [N,*] data)
    e = jax.lax.dot_general(jnp.concatenate([a_dst, ones], axis=-1),
                            jnp.concatenate([ones, a_src], axis=-1),
                            dn, preferred_element_type=f32)
    e = jnp.where(e >= 0.0, e, 0.2 * e) + adjb2                       # LeakyReLU(0.2) + adjacency
    x3 = softmax_agg(e, xw) + vec(R_GAT_B, 64)

    # ---- global_mean_pool + graph_norm (graph_feat_weight folded into gamma/beta) -
    pooled = jnp.dot(pool_ref[...], x3, preferred_element_type=f32)   # [B, 64]
    graph_feat = layernorm(pooled, R_GN_G, R_GN_B, 64)

    # ---- descriptor branch: Linear -> LayerNorm -> GELU --------------------------
    d = jnp.dot(desc_ref[...], wd1_ref[...], preferred_element_type=f32) + vec(R_BD1, 64)
    desc_feat = _gelu(layernorm(d, R_LND_G, R_LND_B, 64))

    # ---- MultiheadAttention(64, 4), K/V seq length 1 => softmax weight == 1:
    #      collapses to one linear (Wv@Wo fused at init, fused_feat_weight folded) --
    attn_out = jnp.dot(graph_feat, wattn_ref[...], preferred_element_type=f32) + vec(R_B_ATTN, 64)

    # ---- gated fusion -------------------------------------------------------------
    cat = jnp.concatenate([attn_out, desc_feat * vec(R_DESC_W, 64), graph_feat], axis=-1)
    fused = layernorm(_gelu(cat), R_ATTN_G, R_ATTN_B, 192)            # [B, 192]

    # ---- classifier + projection heads (Wc1|Wp1 batched; bf16 weights) -----------
    cp_cp1.wait()
    y2 = jnp.dot(fused.astype(bf16), wcp1_v[...], preferred_element_type=f32) + vec(R_B_CP1, 1024)
    h_cls = layernorm(_gelu(y2[:, 0:512]), R_LNC_G, R_LNC_B, 512)
    h_p1 = layernorm(_gelu(y2[:, 512:1024]), R_LNP1_G, R_LNP1_B, 512)

    cls = jax.nn.sigmoid(
        jnp.dot(h_cls, wc2_ref[...], preferred_element_type=f32) + vec(R_BC2, 1))

    cp_p2.wait()
    p2 = layernorm(
        _gelu(jnp.dot(h_p1.astype(bf16), wp2_v[...], preferred_element_type=f32) + vec(R_BP2, 256)),
        R_LNP2_G, R_LNP2_B, 256)
    cp_p3.wait()
    proj = jnp.dot(p2.astype(bf16), wp3_v[...], preferred_element_type=f32) + vec(R_BP3, 64)

    # ---- single lane-dense [B, 128] output: proj in lanes 0:64, cls in lane 64 ----
    pad = jnp.zeros((proj.shape[0], 63), f32)
    out_ref[...] = jnp.concatenate([proj, cls, pad], axis=-1)


def run_fused(params, x_nodes, masks, adjb, descriptors, pool):
    B = descriptors.shape[0]
    ops = [x_nodes, masks, adjb, descriptors, pool,
           params["blob"], params["W_xm"], params["Wgat"], params["W_attn"],
           params["Wd1"], params["Wc2"],
           params["W_cp1"], params["Wp2"], params["Wp3"]]
    out = pl.pallas_call(
        fused_forward_kernel,
        out_shape=jax.ShapeDtypeStruct((B, 128), jnp.float32),
        in_specs=[_VMEM_SPEC] * 11 + [_ANY_SPEC] * 3,
        out_specs=_VMEM_SPEC,
        scratch_shapes=[
            pltpu.VMEM(params["W_cp1"].shape, jnp.bfloat16),
            pltpu.VMEM(params["Wp2"].shape, jnp.bfloat16),
            pltpu.VMEM(params["Wp3"].shape, jnp.bfloat16),
            pltpu.SemaphoreType.DMA((3,)),
        ],
        compiler_params=pltpu.CompilerParams(vmem_limit_bytes=32 * 1024 * 1024),
    )(*ops)
    cls_out = out[:, 64:65]
    contrastive = out[:, :64]
    return cls_out, contrastive


# ---------------------------------------------------------------------------
# glue: graph augmentations / pooling (runs inside the same jit as the kernel)
# ---------------------------------------------------------------------------
def build_adj(edge_index, num_nodes, key, drop_p):
    """Dense adjacency: adj[i, j] = 1 if a (kept) edge j -> i exists."""
    src, dst = edge_index[0], edge_index[1]
    keep = (jax.random.uniform(key, (src.shape[0],)) > drop_p).astype(jnp.float32)
    adj = jnp.zeros((num_nodes, num_nodes), jnp.float32)
    return adj.at[dst, src].max(keep)


@functools.partial(jax.jit, static_argnames=("num_graphs",))
def forward(params, descriptors, x_nodes, edge_index, batch, num_graphs, rng):
    N = x_nodes.shape[0]
    k_e1, k_m1, k_e2, k_m2 = jax.random.split(rng, 4)

    adj1 = build_adj(edge_index, N, k_e1, DROP_EDGE_P)                       # drop_edge #1
    adj2 = jnp.maximum(build_adj(edge_index, N, k_e2, DROP_EDGE_P),          # drop_edge #2
                       jnp.eye(N, dtype=jnp.float32))                        # GAT self-loops
    adjb = jnp.stack([jnp.where(adj1 > 0, 0.0, NEG_INF),
                      jnp.where(adj2 > 0, 0.0, NEG_INF)]).astype(jnp.float32)  # [2, N, N]

    mask1 = jax.random.uniform(k_m1, (N,)) < MASK_NODE_P
    mask2 = jax.random.uniform(k_m2, (N,)) < MASK_NODE_P
    masks = jnp.stack([mask1, mask2], axis=1).astype(jnp.float32)            # [N, 2]

    onehot = (batch[None, :] == jnp.arange(num_graphs)[:, None]).astype(jnp.float32)
    pool = onehot / jnp.maximum(onehot.sum(axis=1, keepdims=True), 1.0)      # [B, N]

    return run_fused(params, x_nodes, masks, adjb, descriptors, pool)


# ---------------------------------------------------------------------------
# parameters: raw (module-like) init, then exact algebraic packing/folding
# ---------------------------------------------------------------------------
def init_raw_params(key, desc_size, num_classes=1):
    keys = iter(jax.random.split(key, 64))

    def w(*shape):
        fan_in = shape[-2] if len(shape) >= 2 else shape[-1]
        return (1.0 / math.sqrt(fan_in)) * jax.random.normal(next(keys), shape, jnp.float32)

    z = lambda *s: jnp.zeros(s, jnp.float32)
    o = lambda *s: jnp.ones(s, jnp.float32)

    H, HD, F = 2, 64, 15
    D = H * HD
    return dict(
        # TransformerConv(15, 64, heads=2)
        Wq=w(H, F, HD), bq=z(H, HD), Wk=w(H, F, HD), bk=z(H, HD), Wv=w(H, F, HD), bv=z(H, HD),
        Wskip=w(F, D), bskip=z(D),
        bn0_g=o(D), bn0_b=z(D),
        Wres=w(F, D), bres=z(D), res_weight=1.0, res_bn_g=o(D), res_bn_b=z(D),
        # GATConv(128, 64)
        Wgat=w(D, 64), att_src=w(64), att_dst=w(64), gat_bias=z(64),
        gn_g=o(64), gn_b=z(64),
        # descriptor net
        Wd1=w(desc_size, 64), bd1=z(64), ln_d_g=o(64), ln_d_b=z(64),
        # MultiheadAttention(64, 4) (length-1 K/V -> only V / out projections matter)
        Wv_attn=w(64, 64), bv_attn=z(64), Wo_attn=w(64, 64), bo_attn=z(64),
        attn_norm_g=o(192), attn_norm_b=z(192),
        fused_w=1.0, desc_w=1.0, graph_w=1.0,
        # classifier / projection heads
        Wc1=w(192, 512), bc1=z(512), ln_c_g=o(512), ln_c_b=z(512),
        Wc2=w(512, num_classes), bc2=z(num_classes),
        Wp1=w(192, 512), bp1=z(512), ln_p1_g=o(512), ln_p1_b=z(512),
        Wp2=w(512, 256), bp2=z(256), ln_p2_g=o(256), ln_p2_b=z(256),
        Wp3=w(256, 64), bp3=z(64),
    )


def pack_params(raw):
    """Exact algebraic folds + layout packing (zero runtime cost)."""
    H = raw["Wq"].shape[0]
    cols, bcols = [], []
    for h in range(H):                                   # q0|k0|v0|q1|k1|v1|skip|res
        cols += [raw["Wq"][h], raw["Wk"][h], raw["Wv"][h]]
        bcols += [raw["bq"][h], raw["bk"][h], raw["bv"][h]]
    cols += [raw["Wskip"], raw["Wres"]]
    bcols += [raw["bskip"], raw["bres"]]
    W_xm = jnp.concatenate(cols, axis=1)                 # [15, 640]
    b_xm = jnp.concatenate(bcols, axis=0)                # [640]

    # GAT: a_dst = (x@W)·att_dst == x@(W att_dst)  -> extra weight columns 64, 65
    Wgat_ext = jnp.concatenate(
        [raw["Wgat"], raw["Wgat"] @ raw["att_dst"][:, None], raw["Wgat"] @ raw["att_src"][:, None]],
        axis=1)                                          # [128, 66]

    # MHA with length-1 K/V: out = (g @ Wv + bv) @ Wo + bo  ->  one linear.
    # fused_feat_weight folded in; 1/graph_w compensates the gamma/beta fold below.
    W_attn = (raw["fused_w"] / raw["graph_w"]) * (raw["Wv_attn"] @ raw["Wo_attn"])
    b_attn = raw["fused_w"] * (raw["bv_attn"] @ raw["Wo_attn"] + raw["bo_attn"])

    W_cp1 = jnp.concatenate([raw["Wc1"], raw["Wp1"]], axis=1).astype(jnp.bfloat16)  # [192, 1024]
    b_cp1 = jnp.concatenate([raw["bc1"], raw["bp1"]], axis=0)

    rows = {
        R_B_XM: b_xm,
        R_BN0_G: raw["bn0_g"], R_BN0_B: raw["bn0_b"],
        R_RBN_G: raw["res_weight"] * raw["res_bn_g"], R_RBN_B: raw["res_weight"] * raw["res_bn_b"],
        R_GAT_B: raw["gat_bias"],
        R_GN_G: raw["graph_w"] * raw["gn_g"], R_GN_B: raw["graph_w"] * raw["gn_b"],
        R_BD1: raw["bd1"], R_LND_G: raw["ln_d_g"], R_LND_B: raw["ln_d_b"],
        R_B_ATTN: b_attn, R_DESC_W: jnp.full((64,), raw["desc_w"], jnp.float32),
        R_ATTN_G: raw["attn_norm_g"], R_ATTN_B: raw["attn_norm_b"],
        R_B_CP1: b_cp1,
        R_LNC_G: raw["ln_c_g"], R_LNC_B: raw["ln_c_b"],
        R_LNP1_G: raw["ln_p1_g"], R_LNP1_B: raw["ln_p1_b"],
        R_BP2: raw["bp2"], R_LNP2_G: raw["ln_p2_g"], R_LNP2_B: raw["ln_p2_b"],
        R_BP3: raw["bp3"], R_BC2: raw["bc2"],
    }
    blob = jnp.zeros((N_BLOB_ROWS, BLOB_W), jnp.float32)
    for r, v in rows.items():
        blob = blob.at[r, : v.shape[0]].set(v)

    return dict(
        blob=blob, W_xm=W_xm, Wgat=Wgat_ext, W_attn=W_attn, Wd1=raw["Wd1"], Wc2=raw["Wc2"],
        # large tail weights in bf16 (halved DMA; bf16 x bf16 -> f32 on the MXU)
        W_cp1=W_cp1, Wp2=raw["Wp2"].astype(jnp.bfloat16), Wp3=raw["Wp3"].astype(jnp.bfloat16),
    )


# ---------------------------------------------------------------------------
if __name__ == "__main__":
    B = 2            # number of graphs / descriptor batch
    DESC = 32        # descriptor_size
    N = 12           # total number of nodes (6 per graph)
    NODE_F = 15      # node feature size (fixed by TransformerConv(15, ...))

    key = jax.random.PRNGKey(0)
    k_x, k_d, k_aug = jax.random.split(key, 3)
    x_nodes = jax.random.normal(k_x, (N, NODE_F), jnp.float32)
    descriptors = jax.random.normal(k_d, (B, DESC), jnp.float32)
    batch = jnp.array([0] * 6 + [1] * 6, jnp.int32)
    # bidirectional ring inside each 6-node graph
    src = jnp.array([0, 1, 2, 3, 4, 5, 6, 7, 8, 9, 10, 11,
                     1, 2, 3, 4, 5, 0, 7, 8, 9, 10, 11, 6], jnp.int32)
    dst = jnp.array([1, 2, 3, 4, 5, 0, 7, 8, 9, 10, 11, 6,
                     0, 1, 2, 3, 4, 5, 6, 7, 8, 9, 10, 11], jnp.int32)
    edge_index = jnp.stack([src, dst])

    params = pack_params(init_raw_params(jax.random.PRNGKey(42), DESC))

    cls_out, contrastive = forward(params, descriptors, x_nodes, edge_index,
                                   batch, num_graphs=B, rng=k_aug)
    jax.block_until_ready((cls_out, contrastive))
    assert cls_out.shape == (B, 1) and contrastive.shape == (B, 64)
    print("KERNEL_OK")
</pallas_src>

<mosaic_0001>
module attributes {stable_mosaic.version = 11 : i64} {
  func.func @fused_forward_kernel(%arg0: memref<12x15xf32, #tpu.memory_space<vmem>>, %arg1: memref<12x2xf32, #tpu.memory_space<vmem>>, %arg2: memref<2x12x12xf32, #tpu.memory_space<vmem>>, %arg3: memref<2x32xf32, #tpu.memory_space<vmem>>, %arg4: memref<2x12xf32, #tpu.memory_space<vmem>>, %arg5: memref<25x1024xf32, #tpu.memory_space<vmem>>, %arg6: memref<15x640xf32, #tpu.memory_space<vmem>>, %arg7: memref<128x66xf32, #tpu.memory_space<vmem>>, %arg8: memref<64x64xf32, #tpu.memory_space<vmem>>, %arg9: memref<32x64xf32, #tpu.memory_space<vmem>>, %arg10: memref<512x1xf32, #tpu.memory_space<vmem>>, %arg11: memref<192x1024xbf16, #tpu.memory_space<any>>, %arg12: memref<512x256xbf16, #tpu.memory_space<any>>, %arg13: memref<256x64xbf16, #tpu.memory_space<any>>, %arg14: memref<2x128xf32, #tpu.memory_space<vmem>>, %arg15: memref<192x1024xbf16, #tpu.memory_space<vmem>>, %arg16: memref<512x256xbf16, #tpu.memory_space<vmem>>, %arg17: memref<256x64xbf16, #tpu.memory_space<vmem>>, %arg18: memref<3x!tpu.dma_semaphore, #tpu.memory_space<semaphore_mem>>) attributes {dimension_semantics = [], scalar_prefetch = 0 : i64, scratch_operands = 4 : i64, tpu.core_type = #tpu.core_type<tc>} {
    %c0_i32 = arith.constant 0 : i32
    %0 = tpu.memref_slice %arg18[%c0_i32] : memref<3x!tpu.dma_semaphore, #tpu.memory_space<semaphore_mem>> -> memref<1x!tpu.dma_semaphore, #tpu.memory_space<semaphore_mem>>
    %1 = tpu.memref_squeeze %0 : memref<1x!tpu.dma_semaphore, #tpu.memory_space<semaphore_mem>> -> memref<!tpu.dma_semaphore, #tpu.memory_space<semaphore_mem>>
    tpu.enqueue_dma source(%arg11 : memref<192x1024xbf16, #tpu.memory_space<any>>) target(%arg15 : memref<192x1024xbf16, #tpu.memory_space<vmem>>) target_semaphore(%1 : memref<!tpu.dma_semaphore, #tpu.memory_space<semaphore_mem>>)
    %c1_i32 = arith.constant 1 : i32
    %2 = tpu.memref_slice %arg18[%c1_i32] : memref<3x!tpu.dma_semaphore, #tpu.memory_space<semaphore_mem>> -> memref<1x!tpu.dma_semaphore, #tpu.memory_space<semaphore_mem>>
    %3 = tpu.memref_squeeze %2 : memref<1x!tpu.dma_semaphore, #tpu.memory_space<semaphore_mem>> -> memref<!tpu.dma_semaphore, #tpu.memory_space<semaphore_mem>>
    tpu.enqueue_dma source(%arg12 : memref<512x256xbf16, #tpu.memory_space<any>>) target(%arg16 : memref<512x256xbf16, #tpu.memory_space<vmem>>) target_semaphore(%3 : memref<!tpu.dma_semaphore, #tpu.memory_space<semaphore_mem>>)
    %c2_i32 = arith.constant 2 : i32
    %4 = tpu.memref_slice %arg18[%c2_i32] : memref<3x!tpu.dma_semaphore, #tpu.memory_space<semaphore_mem>> -> memref<1x!tpu.dma_semaphore, #tpu.memory_space<semaphore_mem>>
    %5 = tpu.memref_squeeze %4 : memref<1x!tpu.dma_semaphore, #tpu.memory_space<semaphore_mem>> -> memref<!tpu.dma_semaphore, #tpu.memory_space<semaphore_mem>>
    tpu.enqueue_dma source(%arg13 : memref<256x64xbf16, #tpu.memory_space<any>>) target(%arg17 : memref<256x64xbf16, #tpu.memory_space<vmem>>) target_semaphore(%5 : memref<!tpu.dma_semaphore, #tpu.memory_space<semaphore_mem>>)
    %c0 = arith.constant 0 : index
    %c0_0 = arith.constant 0 : index
    %6 = vector.load %arg0[%c0, %c0_0] : memref<12x15xf32, #tpu.memory_space<vmem>>, vector<12x15xf32>
    %c0_1 = arith.constant 0 : index
    %c0_2 = arith.constant 0 : index
    %7 = vector.load %arg1[%c0_1, %c0_2] : memref<12x2xf32, #tpu.memory_space<vmem>>, vector<12x2xf32>
    %cst = arith.constant dense<0.000000e+00> : vector<15xf32>
    %8 = vector.multi_reduction <add>, %6, %cst [0] : vector<12x15xf32> to vector<15xf32>
    %9 = vector.shape_cast %8 : vector<15xf32> to vector<1x15xf32>
    %cst_3 = arith.constant 1.200000e+01 : f32
    %10 = vector.broadcast %cst_3 : f32 to vector<1x15xf32>
    %11 = arith.divf %9, %10 : vector<1x15xf32>
    %12 = vector.extract_strided_slice %7 {offsets = [0, 0], sizes = [12, 1], strides = [1, 1]} : vector<12x2xf32> to vector<12x1xf32>
    %cst_4 = arith.constant 0.000000e+00 : f32
    %13 = vector.broadcast %cst_4 : f32 to vector<12x1xf32>
    %14 = arith.cmpf ogt, %12, %13 : vector<12x1xf32>
    %15 = vector.shape_cast %14 : vector<12x1xi1> to vector<12x1xi1>
    %16 = vector.broadcast %15 : vector<12x1xi1> to vector<12x15xi1>
    %17 = vector.shape_cast %11 : vector<1x15xf32> to vector<1x15xf32>
    %18 = vector.broadcast %17 : vector<1x15xf32> to vector<12x15xf32>
    %19 = arith.select %16, %18, %6 : vector<12x15xi1>, vector<12x15xf32>
    %c0_5 = arith.constant 0 : index
    %c0_6 = arith.constant 0 : index
    %c0_7 = arith.constant 0 : index
    %20 = vector.load %arg2[%c0_5, %c0_6, %c0_7] : memref<2x12x12xf32, #tpu.memory_space<vmem>>, vector<1x12x12xf32>
    %21 = vector.shape_cast %20 : vector<1x12x12xf32> to vector<12x12xf32>
    %c1 = arith.constant 1 : index
    %c0_8 = arith.constant 0 : index
    %c0_9 = arith.constant 0 : index
    %22 = vector.load %arg2[%c1, %c0_8, %c0_9] : memref<2x12x12xf32, #tpu.memory_space<vmem>>, vector<1x12x12xf32>
    %23 = vector.shape_cast %22 : vector<1x12x12xf32> to vector<12x12xf32>
    %cst_10 = arith.constant dense<0xFF800000> : vector<12xf32>
    %24 = vector.multi_reduction <maximumf>, %21, %cst_10 [1] : vector<12x12xf32> to vector<12xf32>
    %25 = vector.shape_cast %24 : vector<12xf32> to vector<12x1xf32>
    %cst_11 = arith.constant -5.000000e+29 : f32
    %26 = vector.broadcast %cst_11 : f32 to vector<12x1xf32>
    %27 = arith.cmpf ogt, %25, %26 : vector<12x1xf32>
    %c0_12 = arith.constant 0 : index
    %c0_13 = arith.constant 0 : index
    %28 = vector.load %arg6[%c0_12, %c0_13] : memref<15x640xf32, #tpu.memory_space<vmem>>, vector<15x640xf32>
    %cst_14 = arith.constant dense<0.000000e+00> : vector<12x640xf32>
    %29 = tpu.matmul %19, %28, %cst_14 {dimension_numbers = #tpu.dot_dimension_numbers<[1], [0], [0], [1], [0, 0, 1, 1], [], []>} : vector<12x15xf32>, vector<15x640xf32>, vector<12x640xf32> -> vector<12x640xf32>
    %c0_15 = arith.constant 0 : index
    %c0_16 = arith.constant 0 : index
    %30 = vector.load %arg5[%c0_15, %c0_16] : memref<25x1024xf32, #tpu.memory_space<vmem>>, vector<1x640xf32>
    %31 = vector.broadcast %30 : vector<1x640xf32> to vector<12x640xf32>
    %32 = arith.addf %29, %31 : vector<12x640xf32>
    %33 = vector.extract_strided_slice %32 {offsets = [0, 0], sizes = [12, 64], strides = [1, 1]} : vector<12x640xf32> to vector<12x64xf32>
    %34 = vector.extract_strided_slice %32 {offsets = [0, 64], sizes = [12, 64], strides = [1, 1]} : vector<12x640xf32> to vector<12x64xf32>
    %35 = vector.extract_strided_slice %32 {offsets = [0, 128], sizes = [12, 64], strides = [1, 1]} : vector<12x640xf32> to vector<12x64xf32>
    %cst_17 = arith.constant dense<0.000000e+00> : vector<12x12xf32>
    %36 = tpu.matmul %33, %34, %cst_17 {dimension_numbers = #tpu.dot_dimension_numbers<[1], [1], [0], [0], [0, 0, 1, 0], [], []>} : vector<12x64xf32>, vector<12x64xf32>, vector<12x12xf32> -> vector<12x12xf32>
    %cst_18 = arith.constant 1.250000e-01 : f32
    %37 = vector.broadcast %cst_18 : f32 to vector<12x12xf32>
    %38 = arith.mulf %36, %37 : vector<12x12xf32>
    %39 = arith.addf %38, %21 : vector<12x12xf32>
    %cst_19 = arith.constant dense<0xFF800000> : vector<12xf32>
    %40 = vector.multi_reduction <maximumf>, %39, %cst_19 [1] : vector<12x12xf32> to vector<12xf32>
    %41 = vector.shape_cast %40 : vector<12xf32> to vector<12x1xf32>
    %42 = vector.broadcast %41 : vector<12x1xf32> to vector<12x12xf32>
    %43 = arith.subf %39, %42 : vector<12x12xf32>
    %44 = math.exp %43 : vector<12x12xf32>
    %cst_20 = arith.constant dense<0.000000e+00> : vector<12xf32>
    %45 = vector.multi_reduction <add>, %44, %cst_20 [1] : vector<12x12xf32> to vector<12xf32>
    %46 = vector.shape_cast %45 : vector<12xf32> to vector<12x1xf32>
    %47 = tpu.reciprocal %46 {approx = true} : vector<12x1xf32> -> vector<12x1xf32>
    %cst_21 = arith.constant dense<0.000000e+00> : vector<12x64xf32>
    %48 = tpu.matmul %44, %35, %cst_21 {dimension_numbers = #tpu.dot_dimension_numbers<[1], [0], [0], [1], [0, 0, 1, 1], [], []>} : vector<12x12xf32>, vector<12x64xf32>, vector<12x64xf32> -> vector<12x64xf32>
    %49 = vector.broadcast %47 : vector<12x1xf32> to vector<12x64xf32>
    %50 = arith.mulf %48, %49 : vector<12x64xf32>
    %cst_22 = arith.constant 0.000000e+00 : f32
    %51 = vector.shape_cast %27 : vector<12x1xi1> to vector<12x1xi1>
    %52 = vector.broadcast %51 : vector<12x1xi1> to vector<12x64xi1>
    %53 = vector.broadcast %cst_22 : f32 to vector<12x64xf32>
    %54 = arith.select %52, %50, %53 : vector<12x64xi1>, vector<12x64xf32>
    %55 = vector.extract_strided_slice %32 {offsets = [0, 192], sizes = [12, 64], strides = [1, 1]} : vector<12x640xf32> to vector<12x64xf32>
    %56 = vector.extract_strided_slice %32 {offsets = [0, 256], sizes = [12, 64], strides = [1, 1]} : vector<12x640xf32> to vector<12x64xf32>
    %57 = vector.extract_strided_slice %32 {offsets = [0, 320], sizes = [12, 64], strides = [1, 1]} : vector<12x640xf32> to vector<12x64xf32>
    %cst_23 = arith.constant dense<0.000000e+00> : vector<12x12xf32>
    %58 = tpu.matmul %55, %56, %cst_23 {dimension_numbers = #tpu.dot_dimension_numbers<[1], [1], [0], [0], [0, 0, 1, 0], [], []>} : vector<12x64xf32>, vector<12x64xf32>, vector<12x12xf32> -> vector<12x12xf32>
    %cst_24 = arith.constant 1.250000e-01 : f32
    %59 = vector.broadcast %cst_24 : f32 to vector<12x12xf32>
    %60 = arith.mulf %58, %59 : vector<12x12xf32>
    %61 = arith.addf %60, %21 : vector<12x12xf32>
    %cst_25 = arith.constant dense<0xFF800000> : vector<12xf32>
    %62 = vector.multi_reduction <maximumf>, %61, %cst_25 [1] : vector<12x12xf32> to vector<12xf32>
    %63 = vector.shape_cast %62 : vector<12xf32> to vector<12x1xf32>
    %64 = vector.broadcast %63 : vector<12x1xf32> to vector<12x12xf32>
    %65 = arith.subf %61, %64 : vector<12x12xf32>
    %66 = math.exp %65 : vector<12x12xf32>
    %cst_26 = arith.constant dense<0.000000e+00> : vector<12xf32>
    %67 = vector.multi_reduction <add>, %66, %cst_26 [1] : vector<12x12xf32> to vector<12xf32>
    %68 = vector.shape_cast %67 : vector<12xf32> to vector<12x1xf32>
    %69 = tpu.reciprocal %68 {approx = true} : vector<12x1xf32> -> vector<12x1xf32>
    %cst_27 = arith.constant dense<0.000000e+00> : vector<12x64xf32>
    %70 = tpu.matmul %66, %57, %cst_27 {dimension_numbers = #tpu.dot_dimension_numbers<[1], [0], [0], [1], [0, 0, 1, 1], [], []>} : vector<12x12xf32>, vector<12x64xf32>, vector<12x64xf32> -> vector<12x64xf32>
    %71 = vector.broadcast %69 : vector<12x1xf32> to vector<12x64xf32>
    %72 = arith.mulf %70, %71 : vector<12x64xf32>
    %cst_28 = arith.constant 0.000000e+00 : f32
    %73 = vector.shape_cast %27 : vector<12x1xi1> to vector<12x1xi1>
    %74 = vector.broadcast %73 : vector<12x1xi1> to vector<12x64xi1>
    %75 = vector.broadcast %cst_28 : f32 to vector<12x64xf32>
    %76 = arith.select %74, %72, %75 : vector<12x64xi1>, vector<12x64xf32>
    %77 = tpu.concatenate %54, %76 in 1 : vector<12x64xf32>, vector<12x64xf32> -> vector<12x128xf32>
    %78 = vector.extract_strided_slice %32 {offsets = [0, 384], sizes = [12, 128], strides = [1, 1]} : vector<12x640xf32> to vector<12x128xf32>
    %79 = vector.extract_strided_slice %32 {offsets = [0, 512], sizes = [12, 128], strides = [1, 1]} : vector<12x640xf32> to vector<12x128xf32>
    %80 = arith.addf %77, %78 : vector<12x128xf32>
    %cst_29 = arith.constant 5.000000e-01 : f32
    %81 = vector.broadcast %cst_29 : f32 to vector<12x128xf32>
    %82 = arith.mulf %81, %80 : vector<12x128xf32>
    %cst_30 = arith.constant 0.707106769 : f32
    %83 = vector.broadcast %cst_30 : f32 to vector<12x128xf32>
    %84 = arith.mulf %80, %83 : vector<12x128xf32>
    %85 = math.erf %84 : vector<12x128xf32>
    %cst_31 = arith.constant 1.000000e+00 : f32
    %86 = vector.broadcast %cst_31 : f32 to vector<12x128xf32>
    %87 = arith.addf %86, %85 : vector<12x128xf32>
    %88 = arith.mulf %82, %87 : vector<12x128xf32>
    %cst_32 = arith.constant dense<0.000000e+00> : vector<12xf32>
    %89 = vector.multi_reduction <add>, %88, %cst_32 [1] : vector<12x128xf32> to vector<12xf32>
    %90 = vector.shape_cast %89 : vector<12xf32> to vector<12x1xf32>
    %cst_33 = arith.constant 1.280000e+02 : f32
    %91 = vector.broadcast %cst_33 : f32 to vector<12x1xf32>
    %92 = arith.divf %90, %91 : vector<12x1xf32>
    %93 = vector.broadcast %92 : vector<12x1xf32> to vector<12x128xf32>
    %94 = arith.subf %88, %93 : vector<12x128xf32>
    %95 = arith.mulf %94, %94 : vector<12x128xf32>
    %cst_34 = arith.constant dense<0.000000e+00> : vector<12xf32>
    %96 = vector.multi_reduction <add>, %95, %cst_34 [1] : vector<12x128xf32> to vector<12xf32>
    %97 = vector.shape_cast %96 : vector<12xf32> to vector<12x1xf32>
    %cst_35 = arith.constant 1.280000e+02 : f32
    %98 = vector.broadcast %cst_35 : f32 to vector<12x1xf32>
    %99 = arith.divf %97, %98 : vector<12x1xf32>
    %100 = vector.broadcast %92 : vector<12x1xf32> to vector<12x128xf32>
    %101 = arith.subf %88, %100 : vector<12x128xf32>
    %cst_36 = arith.constant 9.99999974E-6 : f32
    %102 = vector.broadcast %cst_36 : f32 to vector<12x1xf32>
    %103 = arith.addf %99, %102 : vector<12x1xf32>
    %104 = math.rsqrt %103 : vector<12x1xf32>
    %105 = vector.broadcast %104 : vector<12x1xf32> to vector<12x128xf32>
    %106 = arith.mulf %101, %105 : vector<12x128xf32>
    %c1_37 = arith.constant 1 : index
    %c0_38 = arith.constant 0 : index
    %107 = vector.load %arg5[%c1_37, %c0_38] : memref<25x1024xf32, #tpu.memory_space<vmem>>, vector<1x128xf32>
    %108 = vector.broadcast %107 : vector<1x128xf32> to vector<12x128xf32>
    %109 = arith.mulf %106, %108 : vector<12x128xf32>
    %c2 = arith.constant 2 : index
    %c0_39 = arith.constant 0 : index
    %110 = vector.load %arg5[%c2, %c0_39] : memref<25x1024xf32, #tpu.memory_space<vmem>>, vector<1x128xf32>
    %111 = vector.broadcast %110 : vector<1x128xf32> to vector<12x128xf32>
    %112 = arith.addf %109, %111 : vector<12x128xf32>
    %cst_40 = arith.constant 5.000000e-01 : f32
    %113 = vector.broadcast %cst_40 : f32 to vector<12x128xf32>
    %114 = arith.mulf %113, %79 : vector<12x128xf32>
    %cst_41 = arith.constant 0.707106769 : f32
    %115 = vector.broadcast %cst_41 : f32 to vector<12x128xf32>
    %116 = arith.mulf %79, %115 : vector<12x128xf32>
    %117 = math.erf %116 : vector<12x128xf32>
    %cst_42 = arith.constant 1.000000e+00 : f32
    %118 = vector.broadcast %cst_42 : f32 to vector<12x128xf32>
    %119 = arith.addf %118, %117 : vector<12x128xf32>
    %120 = arith.mulf %114, %119 : vector<12x128xf32>
    %cst_43 = arith.constant dense<0.000000e+00> : vector<12xf32>
    %121 = vector.multi_reduction <add>, %120, %cst_43 [1] : vector<12x128xf32> to vector<12xf32>
    %122 = vector.shape_cast %121 : vector<12xf32> to vector<12x1xf32>
    %cst_44 = arith.constant 1.280000e+02 : f32
    %123 = vector.broadcast %cst_44 : f32 to vector<12x1xf32>
    %124 = arith.divf %122, %123 : vector<12x1xf32>
    %125 = vector.broadcast %124 : vector<12x1xf32> to vector<12x128xf32>
    %126 = arith.subf %120, %125 : vector<12x128xf32>
    %127 = arith.mulf %126, %126 : vector<12x128xf32>
    %cst_45 = arith.constant dense<0.000000e+00> : vector<12xf32>
    %128 = vector.multi_reduction <add>, %127, %cst_45 [1] : vector<12x128xf32> to vector<12xf32>
    %129 = vector.shape_cast %128 : vector<12xf32> to vector<12x1xf32>
    %cst_46 = arith.constant 1.280000e+02 : f32
    %130 = vector.broadcast %cst_46 : f32 to vector<12x1xf32>
    %131 = arith.divf %129, %130 : vector<12x1xf32>
    %132 = vector.broadcast %124 : vector<12x1xf32> to vector<12x128xf32>
    %133 = arith.subf %120, %132 : vector<12x128xf32>
    %cst_47 = arith.constant 9.99999974E-6 : f32
    %134 = vector.broadcast %cst_47 : f32 to vector<12x1xf32>
    %135 = arith.addf %131, %134 : vector<12x1xf32>
    %136 = math.rsqrt %135 : vector<12x1xf32>
    %137 = vector.broadcast %136 : vector<12x1xf32> to vector<12x128xf32>
    %138 = arith.mulf %133, %137 : vector<12x128xf32>
    %c3 = arith.constant 3 : index
    %c0_48 = arith.constant 0 : index
    %139 = vector.load %arg5[%c3, %c0_48] : memref<25x1024xf32, #tpu.memory_space<vmem>>, vector<1x128xf32>
    %140 = vector.broadcast %139 : vector<1x128xf32> to vector<12x128xf32>
    %141 = arith.mulf %138, %140 : vector<12x128xf32>
    %c4 = arith.constant 4 : index
    %c0_49 = arith.constant 0 : index
    %142 = vector.load %arg5[%c4, %c0_49] : memref<25x1024xf32, #tpu.memory_space<vmem>>, vector<1x128xf32>
    %143 = vector.broadcast %142 : vector<1x128xf32> to vector<12x128xf32>
    %144 = arith.addf %141, %143 : vector<12x128xf32>
    %145 = arith.addf %112, %144 : vector<12x128xf32>
    %cst_50 = arith.constant dense<0.000000e+00> : vector<128xf32>
    %146 = vector.multi_reduction <add>, %145, %cst_50 [0] : vector<12x128xf32> to vector<128xf32>
    %147 = vector.shape_cast %146 : vector<128xf32> to vector<1x128xf32>
    %cst_51 = arith.constant 1.200000e+01 : f32
    %148 = vector.broadcast %cst_51 : f32 to vector<1x128xf32>
    %149 = arith.divf %147, %148 : vector<1x128xf32>
    %150 = vector.extract_strided_slice %7 {offsets = [0, 1], sizes = [12, 1], strides = [1, 1]} : vector<12x2xf32> to vector<12x1xf32>
    %cst_52 = arith.constant 0.000000e+00 : f32
    %151 = vector.broadcast %cst_52 : f32 to vector<12x1xf32>
    %152 = arith.cmpf ogt, %150, %151 : vector<12x1xf32>
    %153 = vector.shape_cast %152 : vector<12x1xi1> to vector<12x1xi1>
    %154 = vector.broadcast %153 : vector<12x1xi1> to vector<12x128xi1>
    %155 = vector.shape_cast %149 : vector<1x128xf32> to vector<1x128xf32>
    %156 = vector.broadcast %155 : vector<1x128xf32> to vector<12x128xf32>
    %157 = arith.select %154, %156, %145 : vector<12x128xi1>, vector<12x128xf32>
    %c0_53 = arith.constant 0 : index
    %c0_54 = arith.constant 0 : index
    %158 = vector.load %arg7[%c0_53, %c0_54] : memref<128x66xf32, #tpu.memory_space<vmem>>, vector<128x66xf32>
    %cst_55 = arith.constant dense<0.000000e+00> : vector<12x66xf32>
    %159 = tpu.matmul %157, %158, %cst_55 {dimension_numbers = #tpu.dot_dimension_numbers<[1], [0], [0], [1], [0, 0, 1, 1], [], []>} : vector<12x128xf32>, vector<128x66xf32>, vector<12x66xf32> -> vector<12x66xf32>
    %160 = vector.extract_strided_slice %159 {offsets = [0, 0], sizes = [12, 64], strides = [1, 1]} : vector<12x66xf32> to vector<12x64xf32>
    %161 = vector.extract_strided_slice %159 {offsets = [0, 64], sizes = [12, 1], strides = [1, 1]} : vector<12x66xf32> to vector<12x1xf32>
    %162 = vector.extract_strided_slice %159 {offsets = [0, 65], sizes = [12, 1], strides = [1, 1]} : vector<12x66xf32> to vector<12x1xf32>
    %cst_56 = arith.constant 1.000000e+00 : f32
    %163 = vector.broadcast %cst_56 : f32 to vector<12x1xf32>
    %164 = tpu.concatenate %161, %163 in 1 : vector<12x1xf32>, vector<12x1xf32> -> vector<12x2xf32>
    %165 = tpu.concatenate %163, %162 in 1 : vector<12x1xf32>, vector<12x1xf32> -> vector<12x2xf32>
    %cst_57 = arith.constant dense<0.000000e+00> : vector<12x12xf32>
    %166 = tpu.matmul %164, %165, %cst_57 {dimension_numbers = #tpu.dot_dimension_numbers<[1], [1], [0], [0], [0, 0, 1, 0], [], []>} : vector<12x2xf32>, vector<12x2xf32>, vector<12x12xf32> -> vector<12x12xf32>
    %cst_58 = arith.constant 0.000000e+00 : f32
    %167 = vector.broadcast %cst_58 : f32 to vector<12x12xf32>
    %168 = arith.cmpf oge, %166, %167 : vector<12x12xf32>
    %cst_59 = arith.constant 2.000000e-01 : f32
    %169 = vector.broadcast %cst_59 : f32 to vector<12x12xf32>
    %170 = arith.mulf %169, %166 : vector<12x12xf32>
    %171 = arith.select %168, %166, %170 : vector<12x12xi1>, vector<12x12xf32>
    %172 = arith.addf %171, %23 : vector<12x12xf32>
    %cst_60 = arith.constant dense<0xFF800000> : vector<12xf32>
    %173 = vector.multi_reduction <maximumf>, %172, %cst_60 [1] : vector<12x12xf32> to vector<12xf32>
    %174 = vector.shape_cast %173 : vector<12xf32> to vector<12x1xf32>
    %175 = vector.broadcast %174 : vector<12x1xf32> to vector<12x12xf32>
    %176 = arith.subf %172, %175 : vector<12x12xf32>
    %177 = math.exp %176 : vector<12x12xf32>
    %cst_61 = arith.constant dense<0.000000e+00> : vector<12xf32>
    %178 = vector.multi_reduction <add>, %177, %cst_61 [1] : vector<12x12xf32> to vector<12xf32>
    %179 = vector.shape_cast %178 : vector<12xf32> to vector<12x1xf32>
    %180 = tpu.reciprocal %179 {approx = true} : vector<12x1xf32> -> vector<12x1xf32>
    %cst_62 = arith.constant dense<0.000000e+00> : vector<12x64xf32>
    %181 = tpu.matmul %177, %160, %cst_62 {dimension_numbers = #tpu.dot_dimension_numbers<[1], [0], [0], [1], [0, 0, 1, 1], [], []>} : vector<12x12xf32>, vector<12x64xf32>, vector<12x64xf32> -> vector<12x64xf32>
    %182 = vector.broadcast %180 : vector<12x1xf32> to vector<12x64xf32>
    %183 = arith.mulf %181, %182 : vector<12x64xf32>
    %c5 = arith.constant 5 : index
    %c0_63 = arith.constant 0 : index
    %184 = vector.load %arg5[%c5, %c0_63] : memref<25x1024xf32, #tpu.memory_space<vmem>>, vector<1x64xf32>
    %185 = vector.broadcast %184 : vector<1x64xf32> to vector<12x64xf32>
    %186 = arith.addf %183, %185 : vector<12x64xf32>
    %c0_64 = arith.constant 0 : index
    %c0_65 = arith.constant 0 : index
    %187 = vector.load %arg4[%c0_64, %c0_65] : memref<2x12xf32, #tpu.memory_space<vmem>>, vector<2x12xf32>
    %cst_66 = arith.constant dense<0.000000e+00> : vector<2x64xf32>
    %188 = tpu.matmul %187, %186, %cst_66 {dimension_numbers = #tpu.dot_dimension_numbers<[1], [0], [0], [1], [0, 0, 1, 1], [], []>} : vector<2x12xf32>, vector<12x64xf32>, vector<2x64xf32> -> vector<2x64xf32>
    %cst_67 = arith.constant dense<0.000000e+00> : vector<2xf32>
    %189 = vector.multi_reduction <add>, %188, %cst_67 [1] : vector<2x64xf32> to vector<2xf32>
    %190 = vector.shape_cast %189 : vector<2xf32> to vector<2x1xf32>
    %cst_68 = arith.constant 6.400000e+01 : f32
    %191 = vector.broadcast %cst_68 : f32 to vector<2x1xf32>
    %192 = arith.divf %190, %191 : vector<2x1xf32>
    %193 = vector.broadcast %192 : vector<2x1xf32> to vector<2x64xf32>
    %194 = arith.subf %188, %193 : vector<2x64xf32>
    %195 = arith.mulf %194, %194 : vector<2x64xf32>
    %cst_69 = arith.constant dense<0.000000e+00> : vector<2xf32>
    %196 = vector.multi_reduction <add>, %195, %cst_69 [1] : vector<2x64xf32> to vector<2xf32>
    %197 = vector.shape_cast %196 : vector<2xf32> to vector<2x1xf32>
    %cst_70 = arith.constant 6.400000e+01 : f32
    %198 = vector.broadcast %cst_70 : f32 to vector<2x1xf32>
    %199 = arith.divf %197, %198 : vector<2x1xf32>
    %200 = vector.broadcast %192 : vector<2x1xf32> to vector<2x64xf32>
    %201 = arith.subf %188, %200 : vector<2x64xf32>
    %cst_71 = arith.constant 9.99999974E-6 : f32
    %202 = vector.broadcast %cst_71 : f32 to vector<2x1xf32>
    %203 = arith.addf %199, %202 : vector<2x1xf32>
    %204 = math.rsqrt %203 : vector<2x1xf32>
    %205 = vector.broadcast %204 : vector<2x1xf32> to vector<2x64xf32>
    %206 = arith.mulf %201, %205 : vector<2x64xf32>
    %c6 = arith.constant 6 : index
    %c0_72 = arith.constant 0 : index
    %207 = vector.load %arg5[%c6, %c0_72] : memref<25x1024xf32, #tpu.memory_space<vmem>>, vector<1x64xf32>
    %208 = vector.broadcast %207 : vector<1x64xf32> to vector<2x64xf32>
    %209 = arith.mulf %206, %208 : vector<2x64xf32>
    %c7 = arith.constant 7 : index
    %c0_73 = arith.constant 0 : index
    %210 = vector.load %arg5[%c7, %c0_73] : memref<25x1024xf32, #tpu.memory_space<vmem>>, vector<1x64xf32>
    %211 = vector.broadcast %210 : vector<1x64xf32> to vector<2x64xf32>
    %212 = arith.addf %209, %211 : vector<2x64xf32>
    %c0_74 = arith.constant 0 : index
    %c0_75 = arith.constant 0 : index
    %213 = vector.load %arg3[%c0_74, %c0_75] : memref<2x32xf32, #tpu.memory_space<vmem>>, vector<2x32xf32>
    %c0_76 = arith.constant 0 : index
    %c0_77 = arith.constant 0 : index
    %214 = vector.load %arg9[%c0_76, %c0_77] : memref<32x64xf32, #tpu.memory_space<vmem>>, vector<32x64xf32>
    %cst_78 = arith.constant dense<0.000000e+00> : vector<2x64xf32>
    %215 = tpu.matmul %213, %214, %cst_78 {dimension_numbers = #tpu.dot_dimension_numbers<[1], [0], [0], [1], [0, 0, 1, 1], [], []>} : vector<2x32xf32>, vector<32x64xf32>, vector<2x64xf32> -> vector<2x64xf32>
    %c8 = arith.constant 8 : index
    %c0_79 = arith.constant 0 : index
    %216 = vector.load %arg5[%c8, %c0_79] : memref<25x1024xf32, #tpu.memory_space<vmem>>, vector<1x64xf32>
    %217 = vector.broadcast %216 : vector<1x64xf32> to vector<2x64xf32>
    %218 = arith.addf %215, %217 : vector<2x64xf32>
    %cst_80 = arith.constant dense<0.000000e+00> : vector<2xf32>
    %219 = vector.multi_reduction <add>, %218, %cst_80 [1] : vector<2x64xf32> to vector<2xf32>
    %220 = vector.shape_cast %219 : vector<2xf32> to vector<2x1xf32>
    %cst_81 = arith.constant 6.400000e+01 : f32
    %221 = vector.broadcast %cst_81 : f32 to vector<2x1xf32>
    %222 = arith.divf %220, %221 : vector<2x1xf32>
    %223 = vector.broadcast %222 : vector<2x1xf32> to vector<2x64xf32>
    %224 = arith.subf %218, %223 : vector<2x64xf32>
    %225 = arith.mulf %224, %224 : vector<2x64xf32>
    %cst_82 = arith.constant dense<0.000000e+00> : vector<2xf32>
    %226 = vector.multi_reduction <add>, %225, %cst_82 [1] : vector<2x64xf32> to vector<2xf32>
    %227 = vector.shape_cast %226 : vector<2xf32> to vector<2x1xf32>
    %cst_83 = arith.constant 6.400000e+01 : f32
    %228 = vector.broadcast %cst_83 : f32 to vector<2x1xf32>
    %229 = arith.divf %227, %228 : vector<2x1xf32>
    %230 = vector.broadcast %222 : vector<2x1xf32> to vector<2x64xf32>
    %231 = arith.subf %218, %230 : vector<2x64xf32>
    %cst_84 = arith.constant 9.99999974E-6 : f32
    %232 = vector.broadcast %cst_84 : f32 to vector<2x1xf32>
    %233 = arith.addf %229, %232 : vector<2x1xf32>
    %234 = math.rsqrt %233 : vector<2x1xf32>
    %235 = vector.broadcast %234 : vector<2x1xf32> to vector<2x64xf32>
    %236 = arith.mulf %231, %235 : vector<2x64xf32>
    %c9 = arith.constant 9 : index
    %c0_85 = arith.constant 0 : index
    %237 = vector.load %arg5[%c9, %c0_85] : memref<25x1024xf32, #tpu.memory_space<vmem>>, vector<1x64xf32>
    %238 = vector.broadcast %237 : vector<1x64xf32> to vector<2x64xf32>
    %239 = arith.mulf %236, %238 : vector<2x64xf32>
    %c10 = arith.constant 10 : index
    %c0_86 = arith.constant 0 : index
    %240 = vector.load %arg5[%c10, %c0_86] : memref<25x1024xf32, #tpu.memory_space<vmem>>, vector<1x64xf32>
    %241 = vector.broadcast %240 : vector<1x64xf32> to vector<2x64xf32>
    %242 = arith.addf %239, %241 : vector<2x64xf32>
    %cst_87 = arith.constant 5.000000e-01 : f32
    %243 = vector.broadcast %cst_87 : f32 to vector<2x64xf32>
    %244 = arith.mulf %243, %242 : vector<2x64xf32>
    %cst_88 = arith.constant 0.707106769 : f32
    %245 = vector.broadcast %cst_88 : f32 to vector<2x64xf32>
    %246 = arith.mulf %242, %245 : vector<2x64xf32>
    %247 = math.erf %246 : vector<2x64xf32>
    %cst_89 = arith.constant 1.000000e+00 : f32
    %248 = vector.broadcast %cst_89 : f32 to vector<2x64xf32>
    %249 = arith.addf %248, %247 : vector<2x64xf32>
    %250 = arith.mulf %244, %249 : vector<2x64xf32>
    %c0_90 = arith.constant 0 : index
    %c0_91 = arith.constant 0 : index
    %251 = vector.load %arg8[%c0_90, %c0_91] : memref<64x64xf32, #tpu.memory_space<vmem>>, vector<64x64xf32>
    %cst_92 = arith.constant dense<0.000000e+00> : vector<2x64xf32>
    %252 = tpu.matmul %212, %251, %cst_92 {dimension_numbers = #tpu.dot_dimension_numbers<[1], [0], [0], [1], [0, 0, 1, 1], [], []>} : vector<2x64xf32>, vector<64x64xf32>, vector<2x64xf32> -> vector<2x64xf32>
    %c11 = arith.constant 11 : index
    %c0_93 = arith.constant 0 : index
    %253 = vector.load %arg5[%c11, %c0_93] : memref<25x1024xf32, #tpu.memory_space<vmem>>, vector<1x64xf32>
    %254 = vector.broadcast %253 : vector<1x64xf32> to vector<2x64xf32>
    %255 = arith.addf %252, %254 : vector<2x64xf32>
    %c12 = arith.constant 12 : index
    %c0_94 = arith.constant 0 : index
    %256 = vector.load %arg5[%c12, %c0_94] : memref<25x1024xf32, #tpu.memory_space<vmem>>, vector<1x64xf32>
    %257 = vector.broadcast %256 : vector<1x64xf32> to vector<2x64xf32>
    %258 = arith.mulf %250, %257 : vector<2x64xf32>
    %259 = tpu.concatenate %255, %258, %212 in 1 : vector<2x64xf32>, vector<2x64xf32>, vector<2x64xf32> -> vector<2x192xf32>
    %cst_95 = arith.constant 5.000000e-01 : f32
    %260 = vector.broadcast %cst_95 : f32 to vector<2x192xf32>
    %261 = arith.mulf %260, %259 : vector<2x192xf32>
    %cst_96 = arith.constant 0.707106769 : f32
    %262 = vector.broadcast %cst_96 : f32 to vector<2x192xf32>
    %263 = arith.mulf %259, %262 : vector<2x192xf32>
    %264 = math.erf %263 : vector<2x192xf32>
    %cst_97 = arith.constant 1.000000e+00 : f32
    %265 = vector.broadcast %cst_97 : f32 to vector<2x192xf32>
    %266 = arith.addf %265, %264 : vector<2x192xf32>
    %267 = arith.mulf %261, %266 : vector<2x192xf32>
    %cst_98 = arith.constant dense<0.000000e+00> : vector<2xf32>
    %268 = vector.multi_reduction <add>, %267, %cst_98 [1] : vector<2x192xf32> to vector<2xf32>
    %269 = vector.shape_cast %268 : vector<2xf32> to vector<2x1xf32>
    %cst_99 = arith.constant 1.920000e+02 : f32
    %270 = vector.broadcast %cst_99 : f32 to vector<2x1xf32>
    %271 = arith.divf %269, %270 : vector<2x1xf32>
    %272 = vector.broadcast %271 : vector<2x1xf32> to vector<2x192xf32>
    %273 = arith.subf %267, %272 : vector<2x192xf32>
    %274 = arith.mulf %273, %273 : vector<2x192xf32>
    %cst_100 = arith.constant dense<0.000000e+00> : vector<2xf32>
    %275 = vector.multi_reduction <add>, %274, %cst_100 [1] : vector<2x192xf32> to vector<2xf32>
    %276 = vector.shape_cast %275 : vector<2xf32> to vector<2x1xf32>
    %cst_101 = arith.constant 1.920000e+02 : f32
    %277 = vector.broadcast %cst_101 : f32 to vector<2x1xf32>
    %278 = arith.divf %276, %277 : vector<2x1xf32>
    %279 = vector.broadcast %271 : vector<2x1xf32> to vector<2x192xf32>
    %280 = arith.subf %267, %279 : vector<2x192xf32>
    %cst_102 = arith.constant 9.99999974E-6 : f32
    %281 = vector.broadcast %cst_102 : f32 to vector<2x1xf32>
    %282 = arith.addf %278, %281 : vector<2x1xf32>
    %283 = math.rsqrt %282 : vector<2x1xf32>
    %284 = vector.broadcast %283 : vector<2x1xf32> to vector<2x192xf32>
    %285 = arith.mulf %280, %284 : vector<2x192xf32>
    %c13 = arith.constant 13 : index
    %c0_103 = arith.constant 0 : index
    %286 = vector.load %arg5[%c13, %c0_103] : memref<25x1024xf32, #tpu.memory_space<vmem>>, vector<1x192xf32>
    %287 = vector.broadcast %286 : vector<1x192xf32> to vector<2x192xf32>
    %288 = arith.mulf %285, %287 : vector<2x192xf32>
    %c14 = arith.constant 14 : index
    %c0_104 = arith.constant 0 : index
    %289 = vector.load %arg5[%c14, %c0_104] : memref<25x1024xf32, #tpu.memory_space<vmem>>, vector<1x192xf32>
    %290 = vector.broadcast %289 : vector<1x192xf32> to vector<2x192xf32>
    %291 = arith.addf %288, %290 : vector<2x192xf32>
    %c0_i32_105 = arith.constant 0 : i32
    %292 = tpu.memref_slice %arg18[%c0_i32_105] : memref<3x!tpu.dma_semaphore, #tpu.memory_space<semaphore_mem>> -> memref<1x!tpu.dma_semaphore, #tpu.memory_space<semaphore_mem>>
    %293 = tpu.memref_squeeze %292 : memref<1x!tpu.dma_semaphore, #tpu.memory_space<semaphore_mem>> -> memref<!tpu.dma_semaphore, #tpu.memory_space<semaphore_mem>>
    tpu.wait_dma2 semaphore(%293 : memref<!tpu.dma_semaphore, #tpu.memory_space<semaphore_mem>>) src(%arg11 : memref<192x1024xbf16, #tpu.memory_space<any>>) dst(%arg15 : memref<192x1024xbf16, #tpu.memory_space<vmem>>)
    %294 = arith.truncf %291 : vector<2x192xf32> to vector<2x192xbf16>
    %c0_106 = arith.constant 0 : index
    %c0_107 = arith.constant 0 : index
    %295 = vector.load %arg15[%c0_106, %c0_107] : memref<192x1024xbf16, #tpu.memory_space<vmem>>, vector<192x1024xbf16>
    %cst_108 = arith.constant dense<0.000000e+00> : vector<2x1024xf32>
    %296 = tpu.matmul %294, %295, %cst_108 {dimension_numbers = #tpu.dot_dimension_numbers<[1], [0], [0], [1], [0, 0, 1, 1], [], []>} : vector<2x192xbf16>, vector<192x1024xbf16>, vector<2x1024xf32> -> vector<2x1024xf32>
    %c15 = arith.constant 15 : index
    %c0_109 = arith.constant 0 : index
    %297 = vector.load %arg5[%c15, %c0_109] : memref<25x1024xf32, #tpu.memory_space<vmem>>, vector<1x1024xf32>
    %298 = vector.broadcast %297 : vector<1x1024xf32> to vector<2x1024xf32>
    %299 = arith.addf %296, %298 : vector<2x1024xf32>
    %300 = vector.extract_strided_slice %299 {offsets = [0, 0], sizes = [2, 512], strides = [1, 1]} : vector<2x1024xf32> to vector<2x512xf32>
    %cst_110 = arith.constant 5.000000e-01 : f32
    %301 = vector.broadcast %cst_110 : f32 to vector<2x512xf32>
    %302 = arith.mulf %301, %300 : vector<2x512xf32>
    %cst_111 = arith.constant 0.707106769 : f32
    %303 = vector.broadcast %cst_111 : f32 to vector<2x512xf32>
    %304 = arith.mulf %300, %303 : vector<2x512xf32>
    %305 = math.erf %304 : vector<2x512xf32>
    %cst_112 = arith.constant 1.000000e+00 : f32
    %306 = vector.broadcast %cst_112 : f32 to vector<2x512xf32>
    %307 = arith.addf %306, %305 : vector<2x512xf32>
    %308 = arith.mulf %302, %307 : vector<2x512xf32>
    %cst_113 = arith.constant dense<0.000000e+00> : vector<2xf32>
    %309 = vector.multi_reduction <add>, %308, %cst_113 [1] : vector<2x512xf32> to vector<2xf32>
    %310 = vector.shape_cast %309 : vector<2xf32> to vector<2x1xf32>
    %cst_114 = arith.constant 5.120000e+02 : f32
    %311 = vector.broadcast %cst_114 : f32 to vector<2x1xf32>
    %312 = arith.divf %310, %311 : vector<2x1xf32>
    %313 = vector.broadcast %312 : vector<2x1xf32> to vector<2x512xf32>
    %314 = arith.subf %308, %313 : vector<2x512xf32>
    %315 = arith.mulf %314, %314 : vector<2x512xf32>
    %cst_115 = arith.constant dense<0.000000e+00> : vector<2xf32>
    %316 = vector.multi_reduction <add>, %315, %cst_115 [1] : vector<2x512xf32> to vector<2xf32>
    %317 = vector.shape_cast %316 : vector<2xf32> to vector<2x1xf32>
    %cst_116 = arith.constant 5.120000e+02 : f32
    %318 = vector.broadcast %cst_116 : f32 to vector<2x1xf32>
    %319 = arith.divf %317, %318 : vector<2x1xf32>
    %320 = vector.broadcast %312 : vector<2x1xf32> to vector<2x512xf32>
    %321 = arith.subf %308, %320 : vector<2x512xf32>
    %cst_117 = arith.constant 9.99999974E-6 : f32
    %322 = vector.broadcast %cst_117 : f32 to vector<2x1xf32>
    %323 = arith.addf %319, %322 : vector<2x1xf32>
    %324 = math.rsqrt %323 : vector<2x1xf32>
    %325 = vector.broadcast %324 : vector<2x1xf32> to vector<2x512xf32>
    %326 = arith.mulf %321, %325 : vector<2x512xf32>
    %c16 = arith.constant 16 : index
    %c0_118 = arith.constant 0 : index
    %327 = vector.load %arg5[%c16, %c0_118] : memref<25x1024xf32, #tpu.memory_space<vmem>>, vector<1x512xf32>
    %328 = vector.broadcast %327 : vector<1x512xf32> to vector<2x512xf32>
    %329 = arith.mulf %326, %328 : vector<2x512xf32>
    %c17 = arith.constant 17 : index
    %c0_119 = arith.constant 0 : index
    %330 = vector.load %arg5[%c17, %c0_119] : memref<25x1024xf32, #tpu.memory_space<vmem>>, vector<1x512xf32>
    %331 = vector.broadcast %330 : vector<1x512xf32> to vector<2x512xf32>
    %332 = arith.addf %329, %331 : vector<2x512xf32>
    %333 = vector.extract_strided_slice %299 {offsets = [0, 512], sizes = [2, 512], strides = [1, 1]} : vector<2x1024xf32> to vector<2x512xf32>
    %cst_120 = arith.constant 5.000000e-01 : f32
    %334 = vector.broadcast %cst_120 : f32 to vector<2x512xf32>
    %335 = arith.mulf %334, %333 : vector<2x512xf32>
    %cst_121 = arith.constant 0.707106769 : f32
    %336 = vector.broadcast %cst_121 : f32 to vector<2x512xf32>
    %337 = arith.mulf %333, %336 : vector<2x512xf32>
    %338 = math.erf %337 : vector<2x512xf32>
    %cst_122 = arith.constant 1.000000e+00 : f32
    %339 = vector.broadcast %cst_122 : f32 to vector<2x512xf32>
    %340 = arith.addf %339, %338 : vector<2x512xf32>
    %341 = arith.mulf %335, %340 : vector<2x512xf32>
    %cst_123 = arith.constant dense<0.000000e+00> : vector<2xf32>
    %342 = vector.multi_reduction <add>, %341, %cst_123 [1] : vector<2x512xf32> to vector<2xf32>
    %343 = vector.shape_cast %342 : vector<2xf32> to vector<2x1xf32>
    %cst_124 = arith.constant 5.120000e+02 : f32
    %344 = vector.broadcast %cst_124 : f32 to vector<2x1xf32>
    %345 = arith.divf %343, %344 : vector<2x1xf32>
    %346 = vector.broadcast %345 : vector<2x1xf32> to vector<2x512xf32>
    %347 = arith.subf %341, %346 : vector<2x512xf32>
    %348 = arith.mulf %347, %347 : vector<2x512xf32>
    %cst_125 = arith.constant dense<0.000000e+00> : vector<2xf32>
    %349 = vector.multi_reduction <add>, %348, %cst_125 [1] : vector<2x512xf32> to vector<2xf32>
    %350 = vector.shape_cast %349 : vector<2xf32> to vector<2x1xf32>
    %cst_126 = arith.constant 5.120000e+02 : f32
    %351 = vector.broadcast %cst_126 : f32 to vector<2x1xf32>
    %352 = arith.divf %350, %351 : vector<2x1xf32>
    %353 = vector.broadcast %345 : vector<2x1xf32> to vector<2x512xf32>
    %354 = arith.subf %341, %353 : vector<2x512xf32>
    %cst_127 = arith.constant 9.99999974E-6 : f32
    %355 = vector.broadcast %cst_127 : f32 to vector<2x1xf32>
    %356 = arith.addf %352, %355 : vector<2x1xf32>
    %357 = math.rsqrt %356 : vector<2x1xf32>
    %358 = vector.broadcast %357 : vector<2x1xf32> to vector<2x512xf32>
    %359 = arith.mulf %354, %358 : vector<2x512xf32>
    %c18 = arith.constant 18 : index
    %c0_128 = arith.constant 0 : index
    %360 = vector.load %arg5[%c18, %c0_128] : memref<25x1024xf32, #tpu.memory_space<vmem>>, vector<1x512xf32>
    %361 = vector.broadcast %360 : vector<1x512xf32> to vector<2x512xf32>
    %362 = arith.mulf %359, %361 : vector<2x512xf32>
    %c19 = arith.constant 19 : index
    %c0_129 = arith.constant 0 : index
    %363 = vector.load %arg5[%c19, %c0_129] : memref<25x1024xf32, #tpu.memory_space<vmem>>, vector<1x512xf32>
    %364 = vector.broadcast %363 : vector<1x512xf32> to vector<2x512xf32>
    %365 = arith.addf %362, %364 : vector<2x512xf32>
    %c0_130 = arith.constant 0 : index
    %c0_131 = arith.constant 0 : index
    %366 = vector.load %arg10[%c0_130, %c0_131] : memref<512x1xf32, #tpu.memory_space<vmem>>, vector<512x1xf32>
    %cst_132 = arith.constant dense<0.000000e+00> : vector<2x1xf32>
    %367 = tpu.matmul %332, %366, %cst_132 {dimension_numbers = #tpu.dot_dimension_numbers<[1], [0], [0], [1], [0, 0, 1, 1], [], []>} : vector<2x512xf32>, vector<512x1xf32>, vector<2x1xf32> -> vector<2x1xf32>
    %c24 = arith.constant 24 : index
    %c0_133 = arith.constant 0 : index
    %368 = vector.load %arg5[%c24, %c0_133] : memref<25x1024xf32, #tpu.memory_space<vmem>>, vector<1x1xf32>
    %369 = vector.broadcast %368 : vector<1x1xf32> to vector<2x1xf32>
    %370 = arith.addf %367, %369 : vector<2x1xf32>
    %371 = arith.negf %370 : vector<2x1xf32>
    %372 = math.exp %371 : vector<2x1xf32>
    %cst_134 = arith.constant 1.000000e+00 : f32
    %373 = vector.broadcast %cst_134 : f32 to vector<2x1xf32>
    %374 = arith.addf %373, %372 : vector<2x1xf32>
    %375 = arith.divf %373, %374 : vector<2x1xf32>
    %c1_i32_135 = arith.constant 1 : i32
    %376 = tpu.memref_slice %arg18[%c1_i32_135] : memref<3x!tpu.dma_semaphore, #tpu.memory_space<semaphore_mem>> -> memref<1x!tpu.dma_semaphore, #tpu.memory_space<semaphore_mem>>
    %377 = tpu.memref_squeeze %376 : memref<1x!tpu.dma_semaphore, #tpu.memory_space<semaphore_mem>> -> memref<!tpu.dma_semaphore, #tpu.memory_space<semaphore_mem>>
    tpu.wait_dma2 semaphore(%377 : memref<!tpu.dma_semaphore, #tpu.memory_space<semaphore_mem>>) src(%arg12 : memref<512x256xbf16, #tpu.memory_space<any>>) dst(%arg16 : memref<512x256xbf16, #tpu.memory_space<vmem>>)
    %378 = arith.truncf %365 : vector<2x512xf32> to vector<2x512xbf16>
    %c0_136 = arith.constant 0 : index
    %c0_137 = arith.constant 0 : index
    %379 = vector.load %arg16[%c0_136, %c0_137] : memref<512x256xbf16, #tpu.memory_space<vmem>>, vector<512x256xbf16>
    %cst_138 = arith.constant dense<0.000000e+00> : vector<2x256xf32>
    %380 = tpu.matmul %378, %379, %cst_138 {dimension_numbers = #tpu.dot_dimension_numbers<[1], [0], [0], [1], [0, 0, 1, 1], [], []>} : vector<2x512xbf16>, vector<512x256xbf16>, vector<2x256xf32> -> vector<2x256xf32>
    %c20 = arith.constant 20 : index
    %c0_139 = arith.constant 0 : index
    %381 = vector.load %arg5[%c20, %c0_139] : memref<25x1024xf32, #tpu.memory_space<vmem>>, vector<1x256xf32>
    %382 = vector.broadcast %381 : vector<1x256xf32> to vector<2x256xf32>
    %383 = arith.addf %380, %382 : vector<2x256xf32>
    %cst_140 = arith.constant 5.000000e-01 : f32
    %384 = vector.broadcast %cst_140 : f32 to vector<2x256xf32>
    %385 = arith.mulf %384, %383 : vector<2x256xf32>
    %cst_141 = arith.constant 0.707106769 : f32
    %386 = vector.broadcast %cst_141 : f32 to vector<2x256xf32>
    %387 = arith.mulf %383, %386 : vector<2x256xf32>
    %388 = math.erf %387 : vector<2x256xf32>
    %cst_142 = arith.constant 1.000000e+00 : f32
    %389 = vector.broadcast %cst_142 : f32 to vector<2x256xf32>
    %390 = arith.addf %389, %388 : vector<2x256xf32>
    %391 = arith.mulf %385, %390 : vector<2x256xf32>
    %cst_143 = arith.constant dense<0.000000e+00> : vector<2xf32>
    %392 = vector.multi_reduction <add>, %391, %cst_143 [1] : vector<2x256xf32> to vector<2xf32>
    %393 = vector.shape_cast %392 : vector<2xf32> to vector<2x1xf32>
    %cst_144 = arith.constant 2.560000e+02 : f32
    %394 = vector.broadcast %cst_144 : f32 to vector<2x1xf32>
    %395 = arith.divf %393, %394 : vector<2x1xf32>
    %396 = vector.broadcast %395 : vector<2x1xf32> to vector<2x256xf32>
    %397 = arith.subf %391, %396 : vector<2x256xf32>
    %398 = arith.mulf %397, %397 : vector<2x256xf32>
    %cst_145 = arith.constant dense<0.000000e+00> : vector<2xf32>
    %399 = vector.multi_reduction <add>, %398, %cst_145 [1] : vector<2x256xf32> to vector<2xf32>
    %400 = vector.shape_cast %399 : vector<2xf32> to vector<2x1xf32>
    %cst_146 = arith.constant 2.560000e+02 : f32
    %401 = vector.broadcast %cst_146 : f32 to vector<2x1xf32>
    %402 = arith.divf %400, %401 : vector<2x1xf32>
    %403 = vector.broadcast %395 : vector<2x1xf32> to vector<2x256xf32>
    %404 = arith.subf %391, %403 : vector<2x256xf32>
    %cst_147 = arith.constant 9.99999974E-6 : f32
    %405 = vector.broadcast %cst_147 : f32 to vector<2x1xf32>
    %406 = arith.addf %402, %405 : vector<2x1xf32>
    %407 = math.rsqrt %406 : vector<2x1xf32>
    %408 = vector.broadcast %407 : vector<2x1xf32> to vector<2x256xf32>
    %409 = arith.mulf %404, %408 : vector<2x256xf32>
    %c21 = arith.constant 21 : index
    %c0_148 = arith.constant 0 : index
    %410 = vector.load %arg5[%c21, %c0_148] : memref<25x1024xf32, #tpu.memory_space<vmem>>, vector<1x256xf32>
    %411 = vector.broadcast %410 : vector<1x256xf32> to vector<2x256xf32>
    %412 = arith.mulf %409, %411 : vector<2x256xf32>
    %c22 = arith.constant 22 : index
    %c0_149 = arith.constant 0 : index
    %413 = vector.load %arg5[%c22, %c0_149] : memref<25x1024xf32, #tpu.memory_space<vmem>>, vector<1x256xf32>
    %414 = vector.broadcast %413 : vector<1x256xf32> to vector<2x256xf32>
    %415 = arith.addf %412, %414 : vector<2x256xf32>
    %c2_i32_150 = arith.constant 2 : i32
    %416 = tpu.memref_slice %arg18[%c2_i32_150] : memref<3x!tpu.dma_semaphore, #tpu.memory_space<semaphore_mem>> -> memref<1x!tpu.dma_semaphore, #tpu.memory_space<semaphore_mem>>
    %417 = tpu.memref_squeeze %416 : memref<1x!tpu.dma_semaphore, #tpu.memory_space<semaphore_mem>> -> memref<!tpu.dma_semaphore, #tpu.memory_space<semaphore_mem>>
    tpu.wait_dma2 semaphore(%417 : memref<!tpu.dma_semaphore, #tpu.memory_space<semaphore_mem>>) src(%arg13 : memref<256x64xbf16, #tpu.memory_space<any>>) dst(%arg17 : memref<256x64xbf16, #tpu.memory_space<vmem>>)
    %418 = arith.truncf %415 : vector<2x256xf32> to vector<2x256xbf16>
    %c0_151 = arith.constant 0 : index
    %c0_152 = arith.constant 0 : index
    %419 = vector.load %arg17[%c0_151, %c0_152] : memref<256x64xbf16, #tpu.memory_space<vmem>>, vector<256x64xbf16>
    %cst_153 = arith.constant dense<0.000000e+00> : vector<2x64xf32>
    %420 = tpu.matmul %418, %419, %cst_153 {dimension_numbers = #tpu.dot_dimension_numbers<[1], [0], [0], [1], [0, 0, 1, 1], [], []>} : vector<2x256xbf16>, vector<256x64xbf16>, vector<2x64xf32> -> vector<2x64xf32>
    %c23 = arith.constant 23 : index
    %c0_154 = arith.constant 0 : index
    %421 = vector.load %arg5[%c23, %c0_154] : memref<25x1024xf32, #tpu.memory_space<vmem>>, vector<1x64xf32>
    %422 = vector.broadcast %421 : vector<1x64xf32> to vector<2x64xf32>
    %423 = arith.addf %420, %422 : vector<2x64xf32>
    %cst_155 = arith.constant 0.000000e+00 : f32
    %424 = vector.broadcast %cst_155 : f32 to vector<2x63xf32>
    %425 = tpu.concatenate %423, %375, %424 in 1 : vector<2x64xf32>, vector<2x1xf32>, vector<2x63xf32> -> vector<2x128xf32>
    %c0_156 = arith.constant 0 : index
    %c0_157 = arith.constant 0 : index
    %426 = vector.load %arg14[%c0_156, %c0_157] : memref<2x128xf32, #tpu.memory_space<vmem>>, vector<2x128xf32>
    tpu.vector_store %arg14[%c0_156, %c0_157], %425 {strides = array<i32>} : memref<2x128xf32, #tpu.memory_space<vmem>>, vector<2x128xf32>,
    return
  }
}

</mosaic_0001>

<llo_original>
// kernel: forward.3
$region0: #{forward.3}
  #allocation0 [shape = 'u32[]', space=smem, size = 0x4, offset = 0x4, fixed_abs, tag = 'smem constant byte address 0x4 - core index']
  #allocation1 [shape = 'u32[144,128]{1,0:T(1,128)}', space=vmem, size = 0x12000, scoped, tag = 'internal scratch']
  #allocation2 [shape = 'bf16[192,1024]{1,0:T(16,128)(2,1)}', space=vmem, size = 0x60000, scoped, tag = 'scratch operand']
  #allocation3 [shape = 'bf16[512,256]{1,0:T(16,128)(2,1)}', space=vmem, size = 0x40000, scoped, tag = 'scratch operand']
  #allocation4 [shape = 'bf16[256,64]{1,0:T(16,128)(2,1)}', space=vmem, size = 0x10000, scoped, tag = 'scratch operand']
  #allocation5 [shape = 's32[3]{0}', space=sflag, size = 0xc, scoped, tag = 'scratch operand']
  #allocation6 [shape = 's32[]', space=sflag, size = 0x4, offset = 0, fixed_abs, tag = 'sflag constant byte address 0x0 - dummy sync flag']
  #allocation7 [shape = 's32[]', space=sflag, size = 0x4, offset = 0, fixed_abs, tag = 'sflag constant byte address 0x0 - dummy sync flag']
  #allocation8 [shape = 's32[]', space=sflag, size = 0x4, offset = 0, fixed_abs, tag = 'sflag constant byte address 0x0 - dummy sync flag']
  %s0 = inlined_call_operand.vmem [shape: f32[12,15], index: 0, kind: input, shape index: {}]
  %s1 = inlined_call_operand.vmem [shape: f32[12,2], index: 1, kind: input, shape index: {}]
  %s2 = inlined_call_operand.vmem [shape: f32[2,12,12], index: 2, kind: input, shape index: {}]
  %s3 = inlined_call_operand.vmem [shape: f32[2,32], index: 3, kind: input, shape index: {}]
  %s4 = inlined_call_operand.vmem [shape: f32[2,12], index: 4, kind: input, shape index: {}]
  %s5 = inlined_call_operand.vmem [shape: f32[25,1024], index: 5, kind: input, shape index: {}]
  %s6 = inlined_call_operand.vmem [shape: f32[15,640], index: 6, kind: input, shape index: {}]
  %s7 = inlined_call_operand.vmem [shape: f32[128,66], index: 7, kind: input, shape index: {}]
  %s8 = inlined_call_operand.vmem [shape: f32[64,64], index: 8, kind: input, shape index: {}]
  %s9 = inlined_call_operand.vmem [shape: f32[32,64], index: 9, kind: input, shape index: {}]
  %s10 = inlined_call_operand.vmem [shape: f32[512,1], index: 10, kind: input, shape index: {}]
  %s11 = inlined_call_operand.vmem [shape: bf16[192,1024], index: 11, kind: input, shape index: {}]
  %s12 = inlined_call_operand.vmem [shape: bf16[512,256], index: 12, kind: input, shape index: {}]
  %s13 = inlined_call_operand.vmem [shape: bf16[256,64], index: 13, kind: input, shape index: {}]
  %s14 = inlined_call_operand.vmem [shape: f32[2,128], index: 14, kind: output, shape index: {}]
  %s15 = sld [smem:[#allocation0]]
  $region162: #{forward.3} parent=0
    _
  %s17 = ssub.s32 1, %s15
  %s18 = scalar_select 0, %s17, %s15
  // Predicated region
  $region2: #{forward.3} parent=0 // pred_check
    _
  $region3: #{forward.3} parent=0 // pred_check_branch
    %20 = sbr.rel (0) target = $region5
  $region4: #{forward.3} parent=0 // pred_region
    _
  $region5: #{forward.3} parent=0 // pred_fallthru
    _
  // Predicated region
  $region6: #{forward.3} parent=0 // pred_check
    _
  $region7: #{forward.3} parent=0 // pred_check_branch
    %22 = sbr.rel (0) target = $region9
  $region8: #{forward.3} parent=0 // pred_region
    _
  $region9: #{forward.3} parent=0 // pred_fallthru
    _
  // Predicated region
  $region10: #{forward.3} parent=0 // pred_check
    _
  $region11: #{forward.3} parent=0 // pred_check_branch
    %24 = sbr.rel (0) target = $region13
  $region12: #{forward.3} parent=0 // pred_region
    _
  $region13: #{forward.3} parent=0 // pred_fallthru
    _
  // Predicated region
  $region14: #{forward.3} parent=0 // pred_check
    _
  $region15: #{forward.3} parent=0 // pred_check_branch
    %26 = sbr.rel (0) target = $region17
  $region16: #{forward.3} parent=0 // pred_region
    _
  $region17: #{forward.3} parent=0 // pred_fallthru
    _
  // Predicated region
  $region18: #{forward.3} parent=0 // pred_check
    _
  $region19: #{forward.3} parent=0 // pred_check_branch
    %28 = sbr.rel (0) target = $region21
  $region20: #{forward.3} parent=0 // pred_region
    _
  $region21: #{forward.3} parent=0 // pred_fallthru
    _
  // Predicated region
  $region22: #{forward.3} parent=0 // pred_check
    _
  $region23: #{forward.3} parent=0 // pred_check_branch
    %30 = sbr.rel (0) target = $region25
  $region24: #{forward.3} parent=0 // pred_region
    _
  $region25: #{forward.3} parent=0 // pred_fallthru
    _
  // Predicated region
  $region26: #{forward.3} parent=0 // pred_check
    _
  $region27: #{forward.3} parent=0 // pred_check_branch
    %32 = sbr.rel (0) target = $region29
  $region28: #{forward.3} parent=0 // pred_region
    _
  $region29: #{forward.3} parent=0 // pred_fallthru
    _
  // Predicated region
  $region30: #{forward.3} parent=0 // pred_check
    _
  $region31: #{forward.3} parent=0 // pred_check_branch
    %34 = sbr.rel (0) target = $region33
  $region32: #{forward.3} parent=0 // pred_region
    _
  $region33: #{forward.3} parent=0 // pred_fallthru
    _
  // Predicated region
  $region34: #{forward.3} parent=0 // pred_check
    _
  $region35: #{forward.3} parent=0 // pred_check_branch
    %36 = sbr.rel (0) target = $region37
  $region36: #{forward.3} parent=0 // pred_region
    _
  $region37: #{forward.3} parent=0 // pred_fallthru
    _
  // Predicated region
  $region38: #{forward.3} parent=0 // pred_check
    _
  $region39: #{forward.3} parent=0 // pred_check_branch
    %38 = sbr.rel (0) target = $region41
  $region40: #{forward.3} parent=0 // pred_region
    _
  $region41: #{forward.3} parent=0 // pred_fallthru
    _
  // Predicated region
  $region42: #{forward.3} parent=0 // pred_check
    _
  $region43: #{forward.3} parent=0 // pred_check_branch
    %40 = sbr.rel (0) target = $region45
  $region44: #{forward.3} parent=0 // pred_region
    _
  $region45: #{forward.3} parent=0 // pred_fallthru
    _
  %p43 = scmp.lt.u32.totalorder 4, 8
  %p44 = pneg %p43
  // Predicated region
  $region46: #{forward.3} parent=0 // pred_check
    _
  $region47: #{forward.3} parent=0 // pred_check_branch
    %46 = sbr.rel (%p43) target = $region49
  $region48: #{forward.3} parent=0 // pred_region
    %s443 = sand.u32 4, 7
    %p444 = scmp.eq.s32.totalorder %s443, 0
    %p445 = pneg %p444
    // Predicated region
    $region61: #{forward.3} parent=48 // pred_check
      _
    $region62: #{forward.3} parent=48 // pred_check_branch
      %447 = sbr.rel (%p444) target = $region64
    $region63: #{forward.3} parent=48 // pred_region
      %s448 = sand.u32 4, 7
      %s449 = ssub.s32 4, %s448
      %s450 = scalar_lea.vmem %s11, %s449
      %s451 = ssub.s32 4, %s448
      %s452 = scalar_lea.vmem [#allocation2], %s451
      loop: start=0, step=1, limit=1
      $region65: #{forward.3} parent=63 // loop_pre_header
        _
      $region66: #{forward.3} parent=63 // loop_header
        %s454 = sphi 0, %s458
        %p455 = scmp.ge.s32.totalorder %s454, 1
        %s459 = sphi %s11, %s11
        %s460 = sphi [#allocation2], [#allocation2]
      $region67: #{forward.3} parent=63 // loop_header_branch
        %457 = sbr.rel (%p455) target = $region71
      $region68: #{forward.3} parent=63 // loop_body
        _
      $region69: #{forward.3} parent=63 // loop_footer
        %s458 = sadd.s32 1, %s454
      $region70: #{forward.3} parent=63 // loop_footer_branch
        %453 = sbr.rel target = $region66
      $region71: #{forward.3} parent=63 // loop_exit
        _
      %s461 = sshllo.u32 0, %s448
      loop: start=0, step=1, limit=1
      $region72: #{forward.3} parent=63 // loop_pre_header
        _
      $region73: #{forward.3} parent=63 // loop_header
        %s463 = sphi 0, %s467
        %p464 = scmp.ge.s32.totalorder %s463, 1
        %s468 = sphi %s450, %s450
        %s469 = sphi %s452, %s452
      $region74: #{forward.3} parent=63 // loop_header_branch
        %466 = sbr.rel (%p464) target = $region78
      $region75: #{forward.3} parent=63 // loop_body
        %v470 = vld [vmem:[%s468] sm:%s461]
        %471 = vst [vmem:[%s469] sm:%s461] %v470
        %v472 = vld [vmem:[%s468 + $0x20] sm:%s461]
        %473 = vst [vmem:[%s469 + $0x4] sm:%s461] %v472
        %v474 = vld [vmem:[%s468 + $0x4] sm:%s461]
        %475 = vst [vmem:[%s469 + $0x8] sm:%s461] %v474
        %v476 = vld [vmem:[%s468 + $0x24] sm:%s461]
        %477 = vst [vmem:[%s469 + $0xc] sm:%s461] %v476
        %v478 = vld [vmem:[%s468 + $0x8] sm:%s461]
        %479 = vst [vmem:[%s469 + $0x10] sm:%s461] %v478
        %v480 = vld [vmem:[%s468 + $0x28] sm:%s461]
        %481 = vst [vmem:[%s469 + $0x14] sm:%s461] %v480
        %v482 = vld [vmem:[%s468 + $0xc] sm:%s461]
        %483 = vst [vmem:[%s469 + $0x18] sm:%s461] %v482
        %v484 = vld [vmem:[%s468 + $0x2c] sm:%s461]
        %485 = vst [vmem:[%s469 + $0x1c] sm:%s461] %v484
        %v486 = vld [vmem:[%s468 + $0x10] sm:%s461]
        %487 = vst [vmem:[%s469 + $0x20] sm:%s461] %v486
        %v488 = vld [vmem:[%s468 + $0x30] sm:%s461]
        %489 = vst [vmem:[%s469 + $0x24] sm:%s461] %v488
        %v490 = vld [vmem:[%s468 + $0x14] sm:%s461]
        %491 = vst [vmem:[%s469 + $0x28] sm:%s461] %v490
        %v492 = vld [vmem:[%s468 + $0x34] sm:%s461]
        %493 = vst [vmem:[%s469 + $0x2c] sm:%s461] %v492
        %v494 = vld [vmem:[%s468 + $0x18] sm:%s461]
        %495 = vst [vmem:[%s469 + $0x30] sm:%s461] %v494
        %v496 = vld [vmem:[%s468 + $0x38] sm:%s461]
        %497 = vst [vmem:[%s469 + $0x34] sm:%s461] %v496
        %v498 = vld [vmem:[%s468 + $0x1c] sm:%s461]
        %499 = vst [vmem:[%s469 + $0x38] sm:%s461] %v498
        %v500 = vld [vmem:[%s468 + $0x3c] sm:%s461]
        %501 = vst [vmem:[%s469 + $0x3c] sm:%s461] %v500
        %v502 = vld [vmem:[%s468 + $0x40] sm:%s461]
        %503 = vst [vmem:[%s469 + $0x40] sm:%s461] %v502
        %v504 = vld [vmem:[%s468 + $0x60] sm:%s461]
        %505 = vst [vmem:[%s469 + $0x44] sm:%s461] %v504
        %v506 = vld [vmem:[%s468 + $0x44] sm:%s461]
        %507 = vst [vmem:[%s469 + $0x48] sm:%s461] %v506
        %v508 = vld [vmem:[%s468 + $0x64] sm:%s461]
        %509 = vst [vmem:[%s469 + $0x4c] sm:%s461] %v508
        %v510 = vld [vmem:[%s468 + $0x48] sm:%s461]
        %511 = vst [vmem:[%s469 + $0x50] sm:%s461] %v510
        %v512 = vld [vmem:[%s468 + $0x68] sm:%s461]
        %513 = vst [vmem:[%s469 + $0x54] sm:%s461] %v512
        %v514 = vld [vmem:[%s468 + $0x4c] sm:%s461]
        %515 = vst [vmem:[%s469 + $0x58] sm:%s461] %v514
        %v516 = vld [vmem:[%s468 + $0x6c] sm:%s461]
        %517 = vst [vmem:[%s469 + $0x5c] sm:%s461] %v516
        %v518 = vld [vmem:[%s468 + $0x50] sm:%s461]
        %519 = vst [vmem:[%s469 + $0x60] sm:%s461] %v518
        %v520 = vld [vmem:[%s468 + $0x70] sm:%s461]
        %521 = vst [vmem:[%s469 + $0x64] sm:%s461] %v520
        %v522 = vld [vmem:[%s468 + $0x54] sm:%s461]
        %523 = vst [vmem:[%s469 + $0x68] sm:%s461] %v522
        %v524 = vld [vmem:[%s468 + $0x74] sm:%s461]
        %525 = vst [vmem:[%s469 + $0x6c] sm:%s461] %v524
        %v526 = vld [vmem:[%s468 + $0x58] sm:%s461]
        %527 = vst [vmem:[%s469 + $0x70] sm:%s461] %v526
        %v528 = vld [vmem:[%s468 + $0x78] sm:%s461]
        %529 = vst [vmem:[%s469 + $0x74] sm:%s461] %v528
        %v530 = vld [vmem:[%s468 + $0x5c] sm:%s461]
        %531 = vst [vmem:[%s469 + $0x78] sm:%s461] %v530
        %v532 = vld [vmem:[%s468 + $0x7c] sm:%s461]
        %533 = vst [vmem:[%s469 + $0x7c] sm:%s461] %v532
        %v534 = vld [vmem:[%s468 + $0x80] sm:%s461]
        %535 = vst [vmem:[%s469 + $0x80] sm:%s461] %v534
        %v536 = vld [vmem:[%s468 + $0xa0] sm:%s461]
        %537 = vst [vmem:[%s469 + $0x84] sm:%s461] %v536
        %v538 = vld [vmem:[%s468 + $0x84] sm:%s461]
        %539 = vst [vmem:[%s469 + $0x88] sm:%s461] %v538
        %v540 = vld [vmem:[%s468 + $0xa4] sm:%s461]
        %541 = vst [vmem:[%s469 + $0x8c] sm:%s461] %v540
        %v542 = vld [vmem:[%s468 + $0x88] sm:%s461]
        %543 = vst [vmem:[%s469 + $0x90] sm:%s461] %v542
        %v544 = vld [vmem:[%s468 + $0xa8] sm:%s461]
        %545 = vst [vmem:[%s469 + $0x94] sm:%s461] %v544
        %v546 = vld [vmem:[%s468 + $0x8c] sm:%s461]
        %547 = vst [vmem:[%s469 + $0x98] sm:%s461] %v546
        %v548 = vld [vmem:[%s468 + $0xac] sm:%s461]
        %549 = vst [vmem:[%s469 + $0x9c] sm:%s461] %v548
        %v550 = vld [vmem:[%s468 + $0x90] sm:%s461]
        %551 = vst [vmem:[%s469 + $0xa0] sm:%s461] %v550
        %v552 = vld [vmem:[%s468 + $0xb0] sm:%s461]
        %553 = vst [vmem:[%s469 + $0xa4] sm:%s461] %v552
        %v554 = vld [vmem:[%s468 + $0x94] sm:%s461]
        %555 = vst [vmem:[%s469 + $0xa8] sm:%s461] %v554
        %v556 = vld [vmem:[%s468 + $0xb4] sm:%s461]
        %557 = vst [vmem:[%s469 + $0xac] sm:%s461] %v556
        %v558 = vld [vmem:[%s468 + $0x98] sm:%s461]
        %559 = vst [vmem:[%s469 + $0xb0] sm:%s461] %v558
        %v560 = vld [vmem:[%s468 + $0xb8] sm:%s461]
        %561 = vst [vmem:[%s469 + $0xb4] sm:%s461] %v560
        %v562 = vld [vmem:[%s468 + $0x9c] sm:%s461]
        %563 = vst [vmem:[%s469 + $0xb8] sm:%s461] %v562
        %v564 = vld [vmem:[%s468 + $0xbc] sm:%s461]
        %565 = vst [vmem:[%s469 + $0xbc] sm:%s461] %v564
        %v566 = vld [vmem:[%s468 + $0xc0] sm:%s461]
        %567 = vst [vmem:[%s469 + $0xc0] sm:%s461] %v566
        %v568 = vld [vmem:[%s468 + $0xe0] sm:%s461]
        %569 = vst [vmem:[%s469 + $0xc4] sm:%s461] %v568
        %v570 = vld [vmem:[%s468 + $0xc4] sm:%s461]
        %571 = vst [vmem:[%s469 + $0xc8] sm:%s461] %v570
        %v572 = vld [vmem:[%s468 + $0xe4] sm:%s461]
        %573 = vst [vmem:[%s469 + $0xcc] sm:%s461] %v572
        %v574 = vld [vmem:[%s468 + $0xc8] sm:%s461]
        %575 = vst [vmem:[%s469 + $0xd0] sm:%s461] %v574
        %v576 = vld [vmem:[%s468 + $0xe8] sm:%s461]
        %577 = vst [vmem:[%s469 + $0xd4] sm:%s461] %v576
        %v578 = vld [vmem:[%s468 + $0xcc] sm:%s461]
        %579 = vst [vmem:[%s469 + $0xd8] sm:%s461] %v578
        %v580 = vld [vmem:[%s468 + $0xec] sm:%s461]
        %581 = vst [vmem:[%s469 + $0xdc] sm:%s461] %v580
        %v582 = vld [vmem:[%s468 + $0xd0] sm:%s461]
        %583 = vst [vmem:[%s469 + $0xe0] sm:%s461] %v582
        %v584 = vld [vmem:[%s468 + $0xf0] sm:%s461]
        %585 = vst [vmem:[%s469 + $0xe4] sm:%s461] %v584
        %v586 = vld [vmem:[%s468 + $0xd4] sm:%s461]
        %587 = vst [vmem:[%s469 + $0xe8] sm:%s461] %v586
        %v588 = vld [vmem:[%s468 + $0xf4] sm:%s461]
        %589 = vst [vmem:[%s469 + $0xec] sm:%s461] %v588
        %v590 = vld [vmem:[%s468 + $0xd8] sm:%s461]
        %591 = vst [vmem:[%s469 + $0xf0] sm:%s461] %v590
        %v592 = vld [vmem:[%s468 + $0xf8] sm:%s461]
        %593 = vst [vmem:[%s469 + $0xf4] sm:%s461] %v592
        %v594 = vld [vmem:[%s468 + $0xdc] sm:%s461]
        %595 = vst [vmem:[%s469 + $0xf8] sm:%s461] %v594
        %v596 = vld [vmem:[%s468 + $0xfc] sm:%s461]
        %597 = vst [vmem:[%s469 + $0xfc] sm:%s461] %v596
        %v598 = vld [vmem:[%s468 + $0x100] sm:%s461]
        %599 = vst [vmem:[%s469 + $0x100] sm:%s461] %v598
        %v600 = vld [vmem:[%s468 + $0x120] sm:%s461]
        %601 = vst [vmem:[%s469 + $0x104] sm:%s461] %v600
        %v602 = vld [vmem:[%s468 + $0x104] sm:%s461]
        %603 = vst [vmem:[%s469 + $0x108] sm:%s461] %v602
        %v604 = vld [vmem:[%s468 + $0x124] sm:%s461]
        %605 = vst [vmem:[%s469 + $0x10c] sm:%s461] %v604
        %v606 = vld [vmem:[%s468 + $0x108] sm:%s461]
        %607 = vst [vmem:[%s469 + $0x110] sm:%s461] %v606
        %v608 = vld [vmem:[%s468 + $0x128] sm:%s461]
        %609 = vst [vmem:[%s469 + $0x114] sm:%s461] %v608
        %v610 = vld [vmem:[%s468 + $0x10c] sm:%s461]
        %611 = vst [vmem:[%s469 + $0x118] sm:%s461] %v610
        %v612 = vld [vmem:[%s468 + $0x12c] sm:%s461]
        %613 = vst [vmem:[%s469 + $0x11c] sm:%s461] %v612
        %v614 = vld [vmem:[%s468 + $0x110] sm:%s461]
        %615 = vst [vmem:[%s469 + $0x120] sm:%s461] %v614
        %v616 = vld [vmem:[%s468 + $0x130] sm:%s461]
        %617 = vst [vmem:[%s469 + $0x124] sm:%s461] %v616
        %v618 = vld [vmem:[%s468 + $0x114] sm:%s461]
        %619 = vst [vmem:[%s469 + $0x128] sm:%s461] %v618
        %v620 = vld [vmem:[%s468 + $0x134] sm:%s461]
        %621 = vst [vmem:[%s469 + $0x12c] sm:%s461] %v620
        %v622 = vld [vmem:[%s468 + $0x118] sm:%s461]
        %623 = vst [vmem:[%s469 + $0x130] sm:%s461] %v622
        %v624 = vld [vmem:[%s468 + $0x138] sm:%s461]
        %625 = vst [vmem:[%s469 + $0x134] sm:%s461] %v624
        %v626 = vld [vmem:[%s468 + $0x11c] sm:%s461]
        %627 = vst [vmem:[%s469 + $0x138] sm:%s461] %v626
        %v628 = vld [vmem:[%s468 + $0x13c] sm:%s461]
        %629 = vst [vmem:[%s469 + $0x13c] sm:%s461] %v628
        %v630 = vld [vmem:[%s468 + $0x140] sm:%s461]
        %631 = vst [vmem:[%s469 + $0x140] sm:%s461] %v630
        %v632 = vld [vmem:[%s468 + $0x160] sm:%s461]
        %633 = vst [vmem:[%s469 + $0x144] sm:%s461] %v632
        %v634 = vld [vmem:[%s468 + $0x144] sm:%s461]
        %635 = vst [vmem:[%s469 + $0x148] sm:%s461] %v634
        %v636 = vld [vmem:[%s468 + $0x164] sm:%s461]
        %637 = vst [vmem:[%s469 + $0x14c] sm:%s461] %v636
        %v638 = vld [vmem:[%s468 + $0x148] sm:%s461]
        %639 = vst [vmem:[%s469 + $0x150] sm:%s461] %v638
        %v640 = vld [vmem:[%s468 + $0x168] sm:%s461]
        %641 = vst [vmem:[%s469 + $0x154] sm:%s461] %v640
        %v642 = vld [vmem:[%s468 + $0x14c] sm:%s461]
        %643 = vst [vmem:[%s469 + $0x158] sm:%s461] %v642
        %v644 = vld [vmem:[%s468 + $0x16c] sm:%s461]
        %645 = vst [vmem:[%s469 + $0x15c] sm:%s461] %v644
        %v646 = vld [vmem:[%s468 + $0x150] sm:%s461]
        %647 = vst [vmem:[%s469 + $0x160] sm:%s461] %v646
        %v648 = vld [vmem:[%s468 + $0x170] sm:%s461]
        %649 = vst [vmem:[%s469 + $0x164] sm:%s461] %v648
        %v650 = vld [vmem:[%s468 + $0x154] sm:%s461]
        %651 = vst [vmem:[%s469 + $0x168] sm:%s461] %v650
        %v652 = vld [vmem:[%s468 + $0x174] sm:%s461]
        %653 = vst [vmem:[%s469 + $0x16c] sm:%s461] %v652
        %v654 = vld [vmem:[%s468 + $0x158] sm:%s461]
        %655 = vst [vmem:[%s469 + $0x170] sm:%s461] %v654
        %v656 = vld [vmem:[%s468 + $0x178] sm:%s461]
        %657 = vst [vmem:[%s469 + $0x174] sm:%s461] %v656
        %v658 = vld [vmem:[%s468 + $0x15c] sm:%s461]
        %659 = vst [vmem:[%s469 + $0x178] sm:%s461] %v658
        %v660 = vld [vmem:[%s468 + $0x17c] sm:%s461]
        %661 = vst [vmem:[%s469 + $0x17c] sm:%s461] %v660
        %v662 = vld [vmem:[%s468 + $0x180] sm:%s461]
        %663 = vst [vmem:[%s469 + $0x180] sm:%s461] %v662
        %v664 = vld [vmem:[%s468 + $0x1a0] sm:%s461]
        %665 = vst [vmem:[%s469 + $0x184] sm:%s461] %v664
        %v666 = vld [vmem:[%s468 + $0x184] sm:%s461]
        %667 = vst [vmem:[%s469 + $0x188] sm:%s461] %v666
        %v668 = vld [vmem:[%s468 + $0x1a4] sm:%s461]
        %669 = vst [vmem:[%s469 + $0x18c] sm:%s461] %v668
        %v670 = vld [vmem:[%s468 + $0x188] sm:%s461]
        %671 = vst [vmem:[%s469 + $0x190] sm:%s461] %v670
        %v672 = vld [vmem:[%s468 + $0x1a8] sm:%s461]
        %673 = vst [vmem:[%s469 + $0x194] sm:%s461] %v672
        %v674 = vld [vmem:[%s468 + $0x18c] sm:%s461]
        %675 = vst [vmem:[%s469 + $0x198] sm:%s461] %v674
        %v676 = vld [vmem:[%s468 + $0x1ac] sm:%s461]
        %677 = vst [vmem:[%s469 + $0x19c] sm:%s461] %v676
        %v678 = vld [vmem:[%s468 + $0x190] sm:%s461]
        %679 = vst [vmem:[%s469 + $0x1a0] sm:%s461] %v678
        %v680 = vld [vmem:[%s468 + $0x1b0] sm:%s461]
        %681 = vst [vmem:[%s469 + $0x1a4] sm:%s461] %v680
        %v682 = vld [vmem:[%s468 + $0x194] sm:%s461]
        %683 = vst [vmem:[%s469 + $0x1a8] sm:%s461] %v682
        %v684 = vld [vmem:[%s468 + $0x1b4] sm:%s461]
        %685 = vst [vmem:[%s469 + $0x1ac] sm:%s461] %v684
        %v686 = vld [vmem:[%s468 + $0x198] sm:%s461]
        %687 = vst [vmem:[%s469 + $0x1b0] sm:%s461] %v686
        %v688 = vld [vmem:[%s468 + $0x1b8] sm:%s461]
        %689 = vst [vmem:[%s469 + $0x1b4] sm:%s461] %v688
        %v690 = vld [vmem:[%s468 + $0x19c] sm:%s461]
        %691 = vst [vmem:[%s469 + $0x1b8] sm:%s461] %v690
        %v692 = vld [vmem:[%s468 + $0x1bc] sm:%s461]
        %693 = vst [vmem:[%s469 + $0x1bc] sm:%s461] %v692
        %v694 = vld [vmem:[%s468 + $0x1c0] sm:%s461]
        %695 = vst [vmem:[%s469 + $0x1c0] sm:%s461] %v694
        %v696 = vld [vmem:[%s468 + $0x1e0] sm:%s461]
        %697 = vst [vmem:[%s469 + $0x1c4] sm:%s461] %v696
        %v698 = vld [vmem:[%s468 + $0x1c4] sm:%s461]
        %699 = vst [vmem:[%s469 + $0x1c8] sm:%s461] %v698
        %v700 = vld [vmem:[%s468 + $0x1e4] sm:%s461]
        %701 = vst [vmem:[%s469 + $0x1cc] sm:%s461] %v700
        %v702 = vld [vmem:[%s468 + $0x1c8] sm:%s461]
        %703 = vst [vmem:[%s469 + $0x1d0] sm:%s461] %v702
        %v704 = vld [vmem:[%s468 + $0x1e8] sm:%s461]
        %705 = vst [vmem:[%s469 + $0x1d4] sm:%s461] %v704
        %v706 = vld [vmem:[%s468 + $0x1cc] sm:%s461]
        %707 = vst [vmem:[%s469 + $0x1d8] sm:%s461] %v706
        %v708 = vld [vmem:[%s468 + $0x1ec] sm:%s461]
        %709 = vst [vmem:[%s469 + $0x1dc] sm:%s461] %v708
        %v710 = vld [vmem:[%s468 + $0x1d0] sm:%s461]
        %711 = vst [vmem:[%s469 + $0x1e0] sm:%s461] %v710
        %v712 = vld [vmem:[%s468 + $0x1f0] sm:%s461]
        %713 = vst [vmem:[%s469 + $0x1e4] sm:%s461] %v712
        %v714 = vld [vmem:[%s468 + $0x1d4] sm:%s461]
        %715 = vst [vmem:[%s469 + $0x1e8] sm:%s461] %v714
        %v716 = vld [vmem:[%s468 + $0x1f4] sm:%s461]
        %717 = vst [vmem:[%s469 + $0x1ec] sm:%s461] %v716
        %v718 = vld [vmem:[%s468 + $0x1d8] sm:%s461]
        %719 = vst [vmem:[%s469 + $0x1f0] sm:%s461] %v718
        %v720 = vld [vmem:[%s468 + $0x1f8] sm:%s461]
        %721 = vst [vmem:[%s469 + $0x1f4] sm:%s461] %v720
        %v722 = vld [vmem:[%s468 + $0x1dc] sm:%s461]
        %723 = vst [vmem:[%s469 + $0x1f8] sm:%s461] %v722
        %v724 = vld [vmem:[%s468 + $0x1fc] sm:%s461]
        %725 = vst [vmem:[%s469 + $0x1fc] sm:%s461] %v724
        %v726 = vld [vmem:[%s468 + $0x200] sm:%s461]
        %727 = vst [vmem:[%s469 + $0x200] sm:%s461] %v726
        %v728 = vld [vmem:[%s468 + $0x220] sm:%s461]
        %729 = vst [vmem:[%s469 + $0x204] sm:%s461] %v728
        %v730 = vld [vmem:[%s468 + $0x204] sm:%s461]
        %731 = vst [vmem:[%s469 + $0x208] sm:%s461] %v730
        %v732 = vld [vmem:[%s468 + $0x224] sm:%s461]
        %733 = vst [vmem:[%s469 + $0x20c] sm:%s461] %v732
        %v734 = vld [vmem:[%s468 + $0x208] sm:%s461]
        %735 = vst [vmem:[%s469 + $0x210] sm:%s461] %v734
        %v736 = vld [vmem:[%s468 + $0x228] sm:%s461]
        %737 = vst [vmem:[%s469 + $0x214] sm:%s461] %v736
        %v738 = vld [vmem:[%s468 + $0x20c] sm:%s461]
        %739 = vst [vmem:[%s469 + $0x218] sm:%s461] %v738
        %v740 = vld [vmem:[%s468 + $0x22c] sm:%s461]
        %741 = vst [vmem:[%s469 + $0x21c] sm:%s461] %v740
        %v742 = vld [vmem:[%s468 + $0x210] sm:%s461]
        %743 = vst [vmem:[%s469 + $0x220] sm:%s461] %v742
        %v744 = vld [vmem:[%s468 + $0x230] sm:%s461]
        %745 = vst [vmem:[%s469 + $0x224] sm:%s461] %v744
        %v746 = vld [vmem:[%s468 + $0x214] sm:%s461]
        %747 = vst [vmem:[%s469 + $0x228] sm:%s461] %v746
        %v748 = vld [vmem:[%s468 + $0x234] sm:%s461]
        %749 = vst [vmem:[%s469 + $0x22c] sm:%s461] %v748
        %v750 = vld [vmem:[%s468 + $0x218] sm:%s461]
        %751 = vst [vmem:[%s469 + $0x230] sm:%s461] %v750
        %v752 = vld [vmem:[%s468 + $0x238] sm:%s461]
        %753 = vst [vmem:[%s469 + $0x234] sm:%s461] %v752
        %v754 = vld [vmem:[%s468 + $0x21c] sm:%s461]
        %755 = vst [vmem:[%s469 + $0x238] sm:%s461] %v754
        %v756 = vld [vmem:[%s468 + $0x23c] sm:%s461]
        %757 = vst [vmem:[%s469 + $0x23c] sm:%s461] %v756
        %v758 = vld [vmem:[%s468 + $0x240] sm:%s461]
        %759 = vst [vmem:[%s469 + $0x240] sm:%s461] %v758
        %v760 = vld [vmem:[%s468 + $0x260] sm:%s461]
        %761 = vst [vmem:[%s469 + $0x244] sm:%s461] %v760
        %v762 = vld [vmem:[%s468 + $0x244] sm:%s461]
        %763 = vst [vmem:[%s469 + $0x248] sm:%s461] %v762
        %v764 = vld [vmem:[%s468 + $0x264] sm:%s461]
        %765 = vst [vmem:[%s469 + $0x24c] sm:%s461] %v764
        %v766 = vld [vmem:[%s468 + $0x248] sm:%s461]
        %767 = vst [vmem:[%s469 + $0x250] sm:%s461] %v766
        %v768 = vld [vmem:[%s468 + $0x268] sm:%s461]
        %769 = vst [vmem:[%s469 + $0x254] sm:%s461] %v768
        %v770 = vld [vmem:[%s468 + $0x24c] sm:%s461]
        %771 = vst [vmem:[%s469 + $0x258] sm:%s461] %v770
        %v772 = vld [vmem:[%s468 + $0x26c] sm:%s461]
        %773 = vst [vmem:[%s469 + $0x25c] sm:%s461] %v772
        %v774 = vld [vmem:[%s468 + $0x250] sm:%s461]
        %775 = vst [vmem:[%s469 + $0x260] sm:%s461] %v774
        %v776 = vld [vmem:[%s468 + $0x270] sm:%s461]
        %777 = vst [vmem:[%s469 + $0x264] sm:%s461] %v776
        %v778 = vld [vmem:[%s468 + $0x254] sm:%s461]
        %779 = vst [vmem:[%s469 + $0x268] sm:%s461] %v778
        %v780 = vld [vmem:[%s468 + $0x274] sm:%s461]
        %781 = vst [vmem:[%s469 + $0x26c] sm:%s461] %v780
        %v782 = vld [vmem:[%s468 + $0x258] sm:%s461]
        %783 = vst [vmem:[%s469 + $0x270] sm:%s461] %v782
        %v784 = vld [vmem:[%s468 + $0x278] sm:%s461]
        %785 = vst [vmem:[%s469 + $0x274] sm:%s461] %v784
        %v786 = vld [vmem:[%s468 + $0x25c] sm:%s461]
        %787 = vst [vmem:[%s469 + $0x278] sm:%s461] %v786
        %v788 = vld [vmem:[%s468 + $0x27c] sm:%s461]
        %789 = vst [vmem:[%s469 + $0x27c] sm:%s461] %v788
        %v790 = vld [vmem:[%s468 + $0x280] sm:%s461]
        %791 = vst [vmem:[%s469 + $0x280] sm:%s461] %v790
        %v792 = vld [vmem:[%s468 + $0x2a0] sm:%s461]
        %793 = vst [vmem:[%s469 + $0x284] sm:%s461] %v792
        %v794 = vld [vmem:[%s468 + $0x284] sm:%s461]
        %795 = vst [vmem:[%s469 + $0x288] sm:%s461] %v794
        %v796 = vld [vmem:[%s468 + $0x2a4] sm:%s461]
        %797 = vst [vmem:[%s469 + $0x28c] sm:%s461] %v796
        %v798 = vld [vmem:[%s468 + $0x288] sm:%s461]
        %799 = vst [vmem:[%s469 + $0x290] sm:%s461] %v798
        %v800 = vld [vmem:[%s468 + $0x2a8] sm:%s461]
        %801 = vst [vmem:[%s469 + $0x294] sm:%s461] %v800
        %v802 = vld [vmem:[%s468 + $0x28c] sm:%s461]
        %803 = vst [vmem:[%s469 + $0x298] sm:%s461] %v802
        %v804 = vld [vmem:[%s468 + $0x2ac] sm:%s461]
        %805 = vst [vmem:[%s469 + $0x29c] sm:%s461] %v804
        %v806 = vld [vmem:[%s468 + $0x290] sm:%s461]
        %807 = vst [vmem:[%s469 + $0x2a0] sm:%s461] %v806
        %v808 = vld [vmem:[%s468 + $0x2b0] sm:%s461]
        %809 = vst [vmem:[%s469 + $0x2a4] sm:%s461] %v808
        %v810 = vld [vmem:[%s468 + $0x294] sm:%s461]
        %811 = vst [vmem:[%s469 + $0x2a8] sm:%s461] %v810
        %v812 = vld [vmem:[%s468 + $0x2b4] sm:%s461]
        %813 = vst [vmem:[%s469 + $0x2ac] sm:%s461] %v812
        %v814 = vld [vmem:[%s468 + $0x298] sm:%s461]
        %815 = vst [vmem:[%s469 + $0x2b0] sm:%s461] %v814
        %v816 = vld [vmem:[%s468 + $0x2b8] sm:%s461]
        %817 = vst [vmem:[%s469 + $0x2b4] sm:%s461] %v816
        %v818 = vld [vmem:[%s468 + $0x29c] sm:%s461]
        %819 = vst [vmem:[%s469 + $0x2b8] sm:%s461] %v818
        %v820 = vld [vmem:[%s468 + $0x2bc] sm:%s461]
        %821 = vst [vmem:[%s469 + $0x2bc] sm:%s461] %v820
        %v822 = vld [vmem:[%s468 + $0x2c0] sm:%s461]
        %823 = vst [vmem:[%s469 + $0x2c0] sm:%s461] %v822
        %v824 = vld [vmem:[%s468 + $0x2e0] sm:%s461]
        %825 = vst [vmem:[%s469 + $0x2c4] sm:%s461] %v824
        %v826 = vld [vmem:[%s468 + $0x2c4] sm:%s461]
        %827 = vst [vmem:[%s469 + $0x2c8] sm:%s461] %v826
        %v828 = vld [vmem:[%s468 + $0x2e4] sm:%s461]
        %829 = vst [vmem:[%s469 + $0x2cc] sm:%s461] %v828
        %v830 = vld [vmem:[%s468 + $0x2c8] sm:%s461]
        %831 = vst [vmem:[%s469 + $0x2d0] sm:%s461] %v830
        %v832 = vld [vmem:[%s468 + $0x2e8] sm:%s461]
        %833 = vst [vmem:[%s469 + $0x2d4] sm:%s461] %v832
        %v834 = vld [vmem:[%s468 + $0x2cc] sm:%s461]
        %835 = vst [vmem:[%s469 + $0x2d8] sm:%s461] %v834
        %v836 = vld [vmem:[%s468 + $0x2ec] sm:%s461]
        %837 = vst [vmem:[%s469 + $0x2dc] sm:%s461] %v836
        %v838 = vld [vmem:[%s468 + $0x2d0] sm:%s461]
        %839 = vst [vmem:[%s469 + $0x2e0] sm:%s461] %v838
        %v840 = vld [vmem:[%s468 + $0x2f0] sm:%s461]
        %841 = vst [vmem:[%s469 + $0x2e4] sm:%s461] %v840
        %v842 = vld [vmem:[%s468 + $0x2d4] sm:%s461]
        %843 = vst [vmem:[%s469 + $0x2e8] sm:%s461] %v842
        %v844 = vld [vmem:[%s468 + $0x2f4] sm:%s461]
        %845 = vst [vmem:[%s469 + $0x2ec] sm:%s461] %v844
        %v846 = vld [vmem:[%s468 + $0x2d8] sm:%s461]
        %847 = vst [vmem:[%s469 + $0x2f0] sm:%s461] %v846
        %v848 = vld [vmem:[%s468 + $0x2f8] sm:%s461]
        %849 = vst [vmem:[%s469 + $0x2f4] sm:%s461] %v848
        %v850 = vld [vmem:[%s468 + $0x2dc] sm:%s461]
        %851 = vst [vmem:[%s469 + $0x2f8] sm:%s461] %v850
        %v852 = vld [vmem:[%s468 + $0x2fc] sm:%s461]
        %853 = vst [vmem:[%s469 + $0x2fc] sm:%s461] %v852
      $region76: #{forward.3} parent=63 // loop_footer
        %s467 = sadd.s32 1, %s463
      $region77: #{forward.3} parent=63 // loop_footer_branch
        %462 = sbr.rel target = $region73
      $region78: #{forward.3} parent=63 // loop_exit
        _
    $region64: #{forward.3} parent=48 // pred_fallthru
      _
  $region49: #{forward.3} parent=0 // pred_fallthru
    _
  // Predicated region
  $region50: #{forward.3} parent=0 // pred_check
    %p47 = pneg %p43
  $region51: #{forward.3} parent=0 // pred_check_branch
    %49 = sbr.rel (%p47) target = $region53
  $region52: #{forward.3} parent=0 // pred_region
    %s50 = sshllo.u32 0, 4
    loop: start=0, step=1, limit=1
    $region54: #{forward.3} parent=52 // loop_pre_header
      _
    $region55: #{forward.3} parent=52 // loop_header
      %s52 = sphi 0, %s56
      %p53 = scmp.ge.s32.totalorder %s52, 1
      %s57 = sphi %s11, %s11
      %s58 = sphi [#allocation2], [#allocation2]
    $region56: #{forward.3} parent=52 // loop_header_branch
      %55 = sbr.rel (%p53) target = $region60
    $region57: #{forward.3} parent=52 // loop_body
      %v59 = vld [vmem:[%s57] sm:%s50]
      %60 = vst [vmem:[%s58] sm:%s50] %v59
      %v61 = vld [vmem:[%s57 + $0x20] sm:%s50]
      %62 = vst [vmem:[%s58 + $0x4] sm:%s50] %v61
      %v63 = vld [vmem:[%s57 + $0x4] sm:%s50]
      %64 = vst [vmem:[%s58 + $0x8] sm:%s50] %v63
      %v65 = vld [vmem:[%s57 + $0x24] sm:%s50]
      %66 = vst [vmem:[%s58 + $0xc] sm:%s50] %v65
      %v67 = vld [vmem:[%s57 + $0x8] sm:%s50]
      %68 = vst [vmem:[%s58 + $0x10] sm:%s50] %v67
      %v69 = vld [vmem:[%s57 + $0x28] sm:%s50]
      %70 = vst [vmem:[%s58 + $0x14] sm:%s50] %v69
      %v71 = vld [vmem:[%s57 + $0xc] sm:%s50]
      %72 = vst [vmem:[%s58 + $0x18] sm:%s50] %v71
      %v73 = vld [vmem:[%s57 + $0x2c] sm:%s50]
      %74 = vst [vmem:[%s58 + $0x1c] sm:%s50] %v73
      %v75 = vld [vmem:[%s57 + $0x10] sm:%s50]
      %76 = vst [vmem:[%s58 + $0x20] sm:%s50] %v75
      %v77 = vld [vmem:[%s57 + $0x30] sm:%s50]
      %78 = vst [vmem:[%s58 + $0x24] sm:%s50] %v77
      %v79 = vld [vmem:[%s57 + $0x14] sm:%s50]
      %80 = vst [vmem:[%s58 + $0x28] sm:%s50] %v79
      %v81 = vld [vmem:[%s57 + $0x34] sm:%s50]
      %82 = vst [vmem:[%s58 + $0x2c] sm:%s50] %v81
      %v83 = vld [vmem:[%s57 + $0x18] sm:%s50]
      %84 = vst [vmem:[%s58 + $0x30] sm:%s50] %v83
      %v85 = vld [vmem:[%s57 + $0x38] sm:%s50]
      %86 = vst [vmem:[%s58 + $0x34] sm:%s50] %v85
      %v87 = vld [vmem:[%s57 + $0x1c] sm:%s50]
      %88 = vst [vmem:[%s58 + $0x38] sm:%s50] %v87
      %v89 = vld [vmem:[%s57 + $0x3c] sm:%s50]
      %90 = vst [vmem:[%s58 + $0x3c] sm:%s50] %v89
      %v91 = vld [vmem:[%s57 + $0x40] sm:%s50]
      %92 = vst [vmem:[%s58 + $0x40] sm:%s50] %v91
      %v93 = vld [vmem:[%s57 + $0x60] sm:%s50]
      %94 = vst [vmem:[%s58 + $0x44] sm:%s50] %v93
      %v95 = vld [vmem:[%s57 + $0x44] sm:%s50]
      %96 = vst [vmem:[%s58 + $0x48] sm:%s50] %v95
      %v97 = vld [vmem:[%s57 + $0x64] sm:%s50]
      %98 = vst [vmem:[%s58 + $0x4c] sm:%s50] %v97
      %v99 = vld [vmem:[%s57 + $0x48] sm:%s50]
      %100 = vst [vmem:[%s58 + $0x50] sm:%s50] %v99
      %v101 = vld [vmem:[%s57 + $0x68] sm:%s50]
      %102 = vst [vmem:[%s58 + $0x54] sm:%s50] %v101
      %v103 = vld [vmem:[%s57 + $0x4c] sm:%s50]
      %104 = vst [vmem:[%s58 + $0x58] sm:%s50] %v103
      %v105 = vld [vmem:[%s57 + $0x6c] sm:%s50]
      %106 = vst [vmem:[%s58 + $0x5c] sm:%s50] %v105
      %v107 = vld [vmem:[%s57 + $0x50] sm:%s50]
      %108 = vst [vmem:[%s58 + $0x60] sm:%s50] %v107
      %v109 = vld [vmem:[%s57 + $0x70] sm:%s50]
      %110 = vst [vmem:[%s58 + $0x64] sm:%s50] %v109
      %v111 = vld [vmem:[%s57 + $0x54] sm:%s50]
      %112 = vst [vmem:[%s58 + $0x68] sm:%s50] %v111
      %v113 = vld [vmem:[%s57 + $0x74] sm:%s50]
      %114 = vst [vmem:[%s58 + $0x6c] sm:%s50] %v113
      %v115 = vld [vmem:[%s57 + $0x58] sm:%s50]
      %116 = vst [vmem:[%s58 + $0x70] sm:%s50] %v115
      %v117 = vld [vmem:[%s57 + $0x78] sm:%s50]
      %118 = vst [vmem:[%s58 + $0x74] sm:%s50] %v117
      %v119 = vld [vmem:[%s57 + $0x5c] sm:%s50]
      %120 = vst [vmem:[%s58 + $0x78] sm:%s50] %v119
      %v121 = vld [vmem:[%s57 + $0x7c] sm:%s50]
      %122 = vst [vmem:[%s58 + $0x7c] sm:%s50] %v121
      %v123 = vld [vmem:[%s57 + $0x80] sm:%s50]
      %124 = vst [vmem:[%s58 + $0x80] sm:%s50] %v123
      %v125 = vld [vmem:[%s57 + $0xa0] sm:%s50]
      %126 = vst [vmem:[%s58 + $0x84] sm:%s50] %v125
      %v127 = vld [vmem:[%s57 + $0x84] sm:%s50]
      %128 = vst [vmem:[%s58 + $0x88] sm:%s50] %v127
      %v129 = vld [vmem:[%s57 + $0xa4] sm:%s50]
      %130 = vst [vmem:[%s58 + $0x8c] sm:%s50] %v129
      %v131 = vld [vmem:[%s57 + $0x88] sm:%s50]
      %132 = vst [vmem:[%s58 + $0x90] sm:%s50] %v131
      %v133 = vld [vmem:[%s57 + $0xa8] sm:%s50]
      %134 = vst [vmem:[%s58 + $0x94] sm:%s50] %v133
      %v135 = vld [vmem:[%s57 + $0x8c] sm:%s50]
      %136 = vst [vmem:[%s58 + $0x98] sm:%s50] %v135
      %v137 = vld [vmem:[%s57 + $0xac] sm:%s50]
      %138 = vst [vmem:[%s58 + $0x9c] sm:%s50] %v137
      %v139 = vld [vmem:[%s57 + $0x90] sm:%s50]
      %140 = vst [vmem:[%s58 + $0xa0] sm:%s50] %v139
      %v141 = vld [vmem:[%s57 + $0xb0] sm:%s50]
      %142 = vst [vmem:[%s58 + $0xa4] sm:%s50] %v141
      %v143 = vld [vmem:[%s57 + $0x94] sm:%s50]
      %144 = vst [vmem:[%s58 + $0xa8] sm:%s50] %v143
      %v145 = vld [vmem:[%s57 + $0xb4] sm:%s50]
      %146 = vst [vmem:[%s58 + $0xac] sm:%s50] %v145
      %v147 = vld [vmem:[%s57 + $0x98] sm:%s50]
      %148 = vst [vmem:[%s58 + $0xb0] sm:%s50] %v147
      %v149 = vld [vmem:[%s57 + $0xb8] sm:%s50]
      %150 = vst [vmem:[%s58 + $0xb4] sm:%s50] %v149
      %v151 = vld [vmem:[%s57 + $0x9c] sm:%s50]
      %152 = vst [vmem:[%s58 + $0xb8] sm:%s50] %v151
      %v153 = vld [vmem:[%s57 + $0xbc] sm:%s50]
      %154 = vst [vmem:[%s58 + $0xbc] sm:%s50] %v153
      %v155 = vld [vmem:[%s57 + $0xc0] sm:%s50]
      %156 = vst [vmem:[%s58 + $0xc0] sm:%s50] %v155
      %v157 = vld [vmem:[%s57 + $0xe0] sm:%s50]
      %158 = vst [vmem:[%s58 + $0xc4] sm:%s50] %v157
      %v159 = vld [vmem:[%s57 + $0xc4] sm:%s50]
      %160 = vst [vmem:[%s58 + $0xc8] sm:%s50] %v159
      %v161 = vld [vmem:[%s57 + $0xe4] sm:%s50]
      %162 = vst [vmem:[%s58 + $0xcc] sm:%s50] %v161
      %v163 = vld [vmem:[%s57 + $0xc8] sm:%s50]
      %164 = vst [vmem:[%s58 + $0xd0] sm:%s50] %v163
      %v165 = vld [vmem:[%s57 + $0xe8] sm:%s50]
      %166 = vst [vmem:[%s58 + $0xd4] sm:%s50] %v165
      %v167 = vld [vmem:[%s57 + $0xcc] sm:%s50]
      %168 = vst [vmem:[%s58 + $0xd8] sm:%s50] %v167
      %v169 = vld [vmem:[%s57 + $0xec] sm:%s50]
      %170 = vst [vmem:[%s58 + $0xdc] sm:%s50] %v169
      %v171 = vld [vmem:[%s57 + $0xd0] sm:%s50]
      %172 = vst [vmem:[%s58 + $0xe0] sm:%s50] %v171
      %v173 = vld [vmem:[%s57 + $0xf0] sm:%s50]
      %174 = vst [vmem:[%s58 + $0xe4] sm:%s50] %v173
      %v175 = vld [vmem:[%s57 + $0xd4] sm:%s50]
      %176 = vst [vmem:[%s58 + $0xe8] sm:%s50] %v175
      %v177 = vld [vmem:[%s57 + $0xf4] sm:%s50]
      %178 = vst [vmem:[%s58 + $0xec] sm:%s50] %v177
      %v179 = vld [vmem:[%s57 + $0xd8] sm:%s50]
      %180 = vst [vmem:[%s58 + $0xf0] sm:%s50] %v179
      %v181 = vld [vmem:[%s57 + $0xf8] sm:%s50]
      %182 = vst [vmem:[%s58 + $0xf4] sm:%s50] %v181
      %v183 = vld [vmem:[%s57 + $0xdc] sm:%s50]
      %184 = vst [vmem:[%s58 + $0xf8] sm:%s50] %v183
      %v185 = vld [vmem:[%s57 + $0xfc] sm:%s50]
      %186 = vst [vmem:[%s58 + $0xfc] sm:%s50] %v185
      %v187 = vld [vmem:[%s57 + $0x100] sm:%s50]
      %188 = vst [vmem:[%s58 + $0x100] sm:%s50] %v187
      %v189 = vld [vmem:[%s57 + $0x120] sm:%s50]
      %190 = vst [vmem:[%s58 + $0x104] sm:%s50] %v189
      %v191 = vld [vmem:[%s57 + $0x104] sm:%s50]
      %192 = vst [vmem:[%s58 + $0x108] sm:%s50] %v191
      %v193 = vld [vmem:[%s57 + $0x124] sm:%s50]
      %194 = vst [vmem:[%s58 + $0x10c] sm:%s50] %v193
      %v195 = vld [vmem:[%s57 + $0x108] sm:%s50]
      %196 = vst [vmem:[%s58 + $0x110] sm:%s50] %v195
      %v197 = vld [vmem:[%s57 + $0x128] sm:%s50]
      %198 = vst [vmem:[%s58 + $0x114] sm:%s50] %v197
      %v199 = vld [vmem:[%s57 + $0x10c] sm:%s50]
      %200 = vst [vmem:[%s58 + $0x118] sm:%s50] %v199
      %v201 = vld [vmem:[%s57 + $0x12c] sm:%s50]
      %202 = vst [vmem:[%s58 + $0x11c] sm:%s50] %v201
      %v203 = vld [vmem:[%s57 + $0x110] sm:%s50]
      %204 = vst [vmem:[%s58 + $0x120] sm:%s50] %v203
      %v205 = vld [vmem:[%s57 + $0x130] sm:%s50]
      %206 = vst [vmem:[%s58 + $0x124] sm:%s50] %v205
      %v207 = vld [vmem:[%s57 + $0x114] sm:%s50]
      %208 = vst [vmem:[%s58 + $0x128] sm:%s50] %v207
      %v209 = vld [vmem:[%s57 + $0x134] sm:%s50]
      %210 = vst [vmem:[%s58 + $0x12c] sm:%s50] %v209
      %v211 = vld [vmem:[%s57 + $0x118] sm:%s50]
      %212 = vst [vmem:[%s58 + $0x130] sm:%s50] %v211
      %v213 = vld [vmem:[%s57 + $0x138] sm:%s50]
      %214 = vst [vmem:[%s58 + $0x134] sm:%s50] %v213
      %v215 = vld [vmem:[%s57 + $0x11c] sm:%s50]
      %216 = vst [vmem:[%s58 + $0x138] sm:%s50] %v215
      %v217 = vld [vmem:[%s57 + $0x13c] sm:%s50]
      %218 = vst [vmem:[%s58 + $0x13c] sm:%s50] %v217
      %v219 = vld [vmem:[%s57 + $0x140] sm:%s50]
      %220 = vst [vmem:[%s58 + $0x140] sm:%s50] %v219
      %v221 = vld [vmem:[%s57 + $0x160] sm:%s50]
      %222 = vst [vmem:[%s58 + $0x144] sm:%s50] %v221
      %v223 = vld [vmem:[%s57 + $0x144] sm:%s50]
      %224 = vst [vmem:[%s58 + $0x148] sm:%s50] %v223
      %v225 = vld [vmem:[%s57 + $0x164] sm:%s50]
      %226 = vst [vmem:[%s58 + $0x14c] sm:%s50] %v225
      %v227 = vld [vmem:[%s57 + $0x148] sm:%s50]
      %228 = vst [vmem:[%s58 + $0x150] sm:%s50] %v227
      %v229 = vld [vmem:[%s57 + $0x168] sm:%s50]
      %230 = vst [vmem:[%s58 + $0x154] sm:%s50] %v229
      %v231 = vld [vmem:[%s57 + $0x14c] sm:%s50]
      %232 = vst [vmem:[%s58 + $0x158] sm:%s50] %v231
      %v233 = vld [vmem:[%s57 + $0x16c] sm:%s50]
      %234 = vst [vmem:[%s58 + $0x15c] sm:%s50] %v233
      %v235 = vld [vmem:[%s57 + $0x150] sm:%s50]
      %236 = vst [vmem:[%s58 + $0x160] sm:%s50] %v235
      %v237 = vld [vmem:[%s57 + $0x170] sm:%s50]
      %238 = vst [vmem:[%s58 + $0x164] sm:%s50] %v237
      %v239 = vld [vmem:[%s57 + $0x154] sm:%s50]
      %240 = vst [vmem:[%s58 + $0x168] sm:%s50] %v239
      %v241 = vld [vmem:[%s57 + $0x174] sm:%s50]
      %242 = vst [vmem:[%s58 + $0x16c] sm:%s50] %v241
      %v243 = vld [vmem:[%s57 + $0x158] sm:%s50]
      %244 = vst [vmem:[%s58 + $0x170] sm:%s50] %v243
      %v245 = vld [vmem:[%s57 + $0x178] sm:%s50]
      %246 = vst [vmem:[%s58 + $0x174] sm:%s50] %v245
      %v247 = vld [vmem:[%s57 + $0x15c] sm:%s50]
      %248 = vst [vmem:[%s58 + $0x178] sm:%s50] %v247
      %v249 = vld [vmem:[%s57 + $0x17c] sm:%s50]
      %250 = vst [vmem:[%s58 + $0x17c] sm:%s50] %v249
      %v251 = vld [vmem:[%s57 + $0x180] sm:%s50]
      %252 = vst [vmem:[%s58 + $0x180] sm:%s50] %v251
      %v253 = vld [vmem:[%s57 + $0x1a0] sm:%s50]
      %254 = vst [vmem:[%s58 + $0x184] sm:%s50] %v253
      %v255 = vld [vmem:[%s57 + $0x184] sm:%s50]
      %256 = vst [vmem:[%s58 + $0x188] sm:%s50] %v255
      %v257 = vld [vmem:[%s57 + $0x1a4] sm:%s50]
      %258 = vst [vmem:[%s58 + $0x18c] sm:%s50] %v257
      %v259 = vld [vmem:[%s57 + $0x188] sm:%s50]
      %260 = vst [vmem:[%s58 + $0x190] sm:%s50] %v259
      %v261 = vld [vmem:[%s57 + $0x1a8] sm:%s50]
      %262 = vst [vmem:[%s58 + $0x194] sm:%s50] %v261
      %v263 = vld [vmem:[%s57 + $0x18c] sm:%s50]
      %264 = vst [vmem:[%s58 + $0x198] sm:%s50] %v263
      %v265 = vld [vmem:[%s57 + $0x1ac] sm:%s50]
      %266 = vst [vmem:[%s58 + $0x19c] sm:%s50] %v265
      %v267 = vld [vmem:[%s57 + $0x190] sm:%s50]
      %268 = vst [vmem:[%s58 + $0x1a0] sm:%s50] %v267
      %v269 = vld [vmem:[%s57 + $0x1b0] sm:%s50]
      %270 = vst [vmem:[%s58 + $0x1a4] sm:%s50] %v269
      %v271 = vld [vmem:[%s57 + $0x194] sm:%s50]
      %272 = vst [vmem:[%s58 + $0x1a8] sm:%s50] %v271
      %v273 = vld [vmem:[%s57 + $0x1b4] sm:%s50]
      %274 = vst [vmem:[%s58 + $0x1ac] sm:%s50] %v273
      %v275 = vld [vmem:[%s57 + $0x198] sm:%s50]
      %276 = vst [vmem:[%s58 + $0x1b0] sm:%s50] %v275
      %v277 = vld [vmem:[%s57 + $0x1b8] sm:%s50]
      %278 = vst [vmem:[%s58 + $0x1b4] sm:%s50] %v277
      %v279 = vld [vmem:[%s57 + $0x19c] sm:%s50]
      %280 = vst [vmem:[%s58 + $0x1b8] sm:%s50] %v279
      %v281 = vld [vmem:[%s57 + $0x1bc] sm:%s50]
      %282 = vst [vmem:[%s58 + $0x1bc] sm:%s50] %v281
      %v283 = vld [vmem:[%s57 + $0x1c0] sm:%s50]
      %284 = vst [vmem:[%s58 + $0x1c0] sm:%s50] %v283
      %v285 = vld [vmem:[%s57 + $0x1e0] sm:%s50]
      %286 = vst [vmem:[%s58 + $0x1c4] sm:%s50] %v285
      %v287 = vld [vmem:[%s57 + $0x1c4] sm:%s50]
      %288 = vst [vmem:[%s58 + $0x1c8] sm:%s50] %v287
      %v289 = vld [vmem:[%s57 + $0x1e4] sm:%s50]
      %290 = vst [vmem:[%s58 + $0x1cc] sm:%s50] %v289
      %v291 = vld [vmem:[%s57 + $0x1c8] sm:%s50]
      %292 = vst [vmem:[%s58 + $0x1d0] sm:%s50] %v291
      %v293 = vld [vmem:[%s57 + $0x1e8] sm:%s50]
      %294 = vst [vmem:[%s58 + $0x1d4] sm:%s50] %v293
      %v295 = vld [vmem:[%s57 + $0x1cc] sm:%s50]
      %296 = vst [vmem:[%s58 + $0x1d8] sm:%s50] %v295
      %v297 = vld [vmem:[%s57 + $0x1ec] sm:%s50]
      %298 = vst [vmem:[%s58 + $0x1dc] sm:%s50] %v297
      %v299 = vld [vmem:[%s57 + $0x1d0] sm:%s50]
      %300 = vst [vmem:[%s58 + $0x1e0] sm:%s50] %v299
      %v301 = vld [vmem:[%s57 + $0x1f0] sm:%s50]
      %302 = vst [vmem:[%s58 + $0x1e4] sm:%s50] %v301
      %v303 = vld [vmem:[%s57 + $0x1d4] sm:%s50]
      %304 = vst [vmem:[%s58 + $0x1e8] sm:%s50] %v303
      %v305 = vld [vmem:[%s57 + $0x1f4] sm:%s50]
      %306 = vst [vmem:[%s58 + $0x1ec] sm:%s50] %v305
      %v307 = vld [vmem:[%s57 + $0x1d8] sm:%s50]
      %308 = vst [vmem:[%s58 + $0x1f0] sm:%s50] %v307
      %v309 = vld [vmem:[%s57 + $0x1f8] sm:%s50]
      %310 = vst [vmem:[%s58 + $0x1f4] sm:%s50] %v309
      %v311 = vld [vmem:[%s57 + $0x1dc] sm:%s50]
      %312 = vst [vmem:[%s58 + $0x1f8] sm:%s50] %v311
      %v313 = vld [vmem:[%s57 + $0x1fc] sm:%s50]
      %314 = vst [vmem:[%s58 + $0x1fc] sm:%s50] %v313
      %v315 = vld [vmem:[%s57 + $0x200] sm:%s50]
      %316 = vst [vmem:[%s58 + $0x200] sm:%s50] %v315
      %v317 = vld [vmem:[%s57 + $0x220] sm:%s50]
      %318 = vst [vmem:[%s58 + $0x204] sm:%s50] %v317
      %v319 = vld [vmem:[%s57 + $0x204] sm:%s50]
      %320 = vst [vmem:[%s58 + $0x208] sm:%s50] %v319
      %v321 = vld [vmem:[%s57 + $0x224] sm:%s50]
      %322 = vst [vmem:[%s58 + $0x20c] sm:%s50] %v321
      %v323 = vld [vmem:[%s57 + $0x208] sm:%s50]
      %324 = vst [vmem:[%s58 + $0x210] sm:%s50] %v323
      %v325 = vld [vmem:[%s57 + $0x228] sm:%s50]
      %326 = vst [vmem:[%s58 + $0x214] sm:%s50] %v325
      %v327 = vld [vmem:[%s57 + $0x20c] sm:%s50]
      %328 = vst [vmem:[%s58 + $0x218] sm:%s50] %v327
      %v329 = vld [vmem:[%s57 + $0x22c] sm:%s50]
      %330 = vst [vmem:[%s58 + $0x21c] sm:%s50] %v329
      %v331 = vld [vmem:[%s57 + $0x210] sm:%s50]
      %332 = vst [vmem:[%s58 + $0x220] sm:%s50] %v331
      %v333 = vld [vmem:[%s57 + $0x230] sm:%s50]
      %334 = vst [vmem:[%s58 + $0x224] sm:%s50] %v333
      %v335 = vld [vmem:[%s57 + $0x214] sm:%s50]
      %336 = vst [vmem:[%s58 + $0x228] sm:%s50] %v335
      %v337 = vld [vmem:[%s57 + $0x234] sm:%s50]
      %338 = vst [vmem:[%s58 + $0x22c] sm:%s50] %v337
      %v339 = vld [vmem:[%s57 + $0x218] sm:%s50]
      %340 = vst [vmem:[%s58 + $0x230] sm:%s50] %v339
      %v341 = vld [vmem:[%s57 + $0x238] sm:%s50]
      %342 = vst [vmem:[%s58 + $0x234] sm:%s50] %v341
      %v343 = vld [vmem:[%s57 + $0x21c] sm:%s50]
      %344 = vst [vmem:[%s58 + $0x238] sm:%s50] %v343
      %v345 = vld [vmem:[%s57 + $0x23c] sm:%s50]
      %346 = vst [vmem:[%s58 + $0x23c] sm:%s50] %v345
      %v347 = vld [vmem:[%s57 + $0x240] sm:%s50]
      %348 = vst [vmem:[%s58 + $0x240] sm:%s50] %v347
      %v349 = vld [vmem:[%s57 + $0x260] sm:%s50]
      %350 = vst [vmem:[%s58 + $0x244] sm:%s50] %v349
      %v351 = vld [vmem:[%s57 + $0x244] sm:%s50]
      %352 = vst [vmem:[%s58 + $0x248] sm:%s50] %v351
      %v353 = vld [vmem:[%s57 + $0x264] sm:%s50]
      %354 = vst [vmem:[%s58 + $0x24c] sm:%s50] %v353
      %v355 = vld [vmem:[%s57 + $0x248] sm:%s50]
      %356 = vst [vmem:[%s58 + $0x250] sm:%s50] %v355
      %v357 = vld [vmem:[%s57 + $0x268] sm:%s50]
      %358 = vst [vmem:[%s58 + $0x254] sm:%s50] %v357
      %v359 = vld [vmem:[%s57 + $0x24c] sm:%s50]
      %360 = vst [vmem:[%s58 + $0x258] sm:%s50] %v359
      %v361 = vld [vmem:[%s57 + $0x26c] sm:%s50]
      %362 = vst [vmem:[%s58 + $0x25c] sm:%s50] %v361
      %v363 = vld [vmem:[%s57 + $0x250] sm:%s50]
      %364 = vst [vmem:[%s58 + $0x260] sm:%s50] %v363
      %v365 = vld [vmem:[%s57 + $0x270] sm:%s50]
      %366 = vst [vmem:[%s58 + $0x264] sm:%s50] %v365
      %v367 = vld [vmem:[%s57 + $0x254] sm:%s50]
      %368 = vst [vmem:[%s58 + $0x268] sm:%s50] %v367
      %v369 = vld [vmem:[%s57 + $0x274] sm:%s50]
      %370 = vst [vmem:[%s58 + $0x26c] sm:%s50] %v369
      %v371 = vld [vmem:[%s57 + $0x258] sm:%s50]
      %372 = vst [vmem:[%s58 + $0x270] sm:%s50] %v371
      %v373 = vld [vmem:[%s57 + $0x278] sm:%s50]
      %374 = vst [vmem:[%s58 + $0x274] sm:%s50] %v373
      %v375 = vld [vmem:[%s57 + $0x25c] sm:%s50]
      %376 = vst [vmem:[%s58 + $0x278] sm:%s50] %v375
      %v377 = vld [vmem:[%s57 + $0x27c] sm:%s50]
      %378 = vst [vmem:[%s58 + $0x27c] sm:%s50] %v377
      %v379 = vld [vmem:[%s57 + $0x280] sm:%s50]
      %380 = vst [vmem:[%s58 + $0x280] sm:%s50] %v379
      %v381 = vld [vmem:[%s57 + $0x2a0] sm:%s50]
      %382 = vst [vmem:[%s58 + $0x284] sm:%s50] %v381
      %v383 = vld [vmem:[%s57 + $0x284] sm:%s50]
      %384 = vst [vmem:[%s58 + $0x288] sm:%s50] %v383
      %v385 = vld [vmem:[%s57 + $0x2a4] sm:%s50]
      %386 = vst [vmem:[%s58 + $0x28c] sm:%s50] %v385
      %v387 = vld [vmem:[%s57 + $0x288] sm:%s50]
      %388 = vst [vmem:[%s58 + $0x290] sm:%s50] %v387
      %v389 = vld [vmem:[%s57 + $0x2a8] sm:%s50]
      %390 = vst [vmem:[%s58 + $0x294] sm:%s50] %v389
      %v391 = vld [vmem:[%s57 + $0x28c] sm:%s50]
      %392 = vst [vmem:[%s58 + $0x298] sm:%s50] %v391
      %v393 = vld [vmem:[%s57 + $0x2ac] sm:%s50]
      %394 = vst [vmem:[%s58 + $0x29c] sm:%s50] %v393
      %v395 = vld [vmem:[%s57 + $0x290] sm:%s50]
      %396 = vst [vmem:[%s58 + $0x2a0] sm:%s50] %v395
      %v397 = vld [vmem:[%s57 + $0x2b0] sm:%s50]
      %398 = vst [vmem:[%s58 + $0x2a4] sm:%s50] %v397
      %v399 = vld [vmem:[%s57 + $0x294] sm:%s50]
      %400 = vst [vmem:[%s58 + $0x2a8] sm:%s50] %v399
      %v401 = vld [vmem:[%s57 + $0x2b4] sm:%s50]
      %402 = vst [vmem:[%s58 + $0x2ac] sm:%s50] %v401
      %v403 = vld [vmem:[%s57 + $0x298] sm:%s50]
      %404 = vst [vmem:[%s58 + $0x2b0] sm:%s50] %v403
      %v405 = vld [vmem:[%s57 + $0x2b8] sm:%s50]
      %406 = vst [vmem:[%s58 + $0x2b4] sm:%s50] %v405
      %v407 = vld [vmem:[%s57 + $0x29c] sm:%s50]
      %408 = vst [vmem:[%s58 + $0x2b8] sm:%s50] %v407
      %v409 = vld [vmem:[%s57 + $0x2bc] sm:%s50]
      %410 = vst [vmem:[%s58 + $0x2bc] sm:%s50] %v409
      %v411 = vld [vmem:[%s57 + $0x2c0] sm:%s50]
      %412 = vst [vmem:[%s58 + $0x2c0] sm:%s50] %v411
      %v413 = vld [vmem:[%s57 + $0x2e0] sm:%s50]
      %414 = vst [vmem:[%s58 + $0x2c4] sm:%s50] %v413
      %v415 = vld [vmem:[%s57 + $0x2c4] sm:%s50]
      %416 = vst [vmem:[%s58 + $0x2c8] sm:%s50] %v415
      %v417 = vld [vmem:[%s57 + $0x2e4] sm:%s50]
      %418 = vst [vmem:[%s58 + $0x2cc] sm:%s50] %v417
      %v419 = vld [vmem:[%s57 + $0x2c8] sm:%s50]
      %420 = vst [vmem:[%s58 + $0x2d0] sm:%s50] %v419
      %v421 = vld [vmem:[%s57 + $0x2e8] sm:%s50]
      %422 = vst [vmem:[%s58 + $0x2d4] sm:%s50] %v421
      %v423 = vld [vmem:[%s57 + $0x2cc] sm:%s50]
      %424 = vst [vmem:[%s58 + $0x2d8] sm:%s50] %v423
      %v425 = vld [vmem:[%s57 + $0x2ec] sm:%s50]
      %426 = vst [vmem:[%s58 + $0x2dc] sm:%s50] %v425
      %v427 = vld [vmem:[%s57 + $0x2d0] sm:%s50]
      %428 = vst [vmem:[%s58 + $0x2e0] sm:%s50] %v427
      %v429 = vld [vmem:[%s57 + $0x2f0] sm:%s50]
      %430 = vst [vmem:[%s58 + $0x2e4] sm:%s50] %v429
      %v431 = vld [vmem:[%s57 + $0x2d4] sm:%s50]
      %432 = vst [vmem:[%s58 + $0x2e8] sm:%s50] %v431
      %v433 = vld [vmem:[%s57 + $0x2f4] sm:%s50]
      %434 = vst [vmem:[%s58 + $0x2ec] sm:%s50] %v433
      %v435 = vld [vmem:[%s57 + $0x2d8] sm:%s50]
      %436 = vst [vmem:[%s58 + $0x2f0] sm:%s50] %v435
      %v437 = vld [vmem:[%s57 + $0x2f8] sm:%s50]
      %438 = vst [vmem:[%s58 + $0x2f4] sm:%s50] %v437
      %v439 = vld [vmem:[%s57 + $0x2dc] sm:%s50]
      %440 = vst [vmem:[%s58 + $0x2f8] sm:%s50] %v439
      %v441 = vld [vmem:[%s57 + $0x2fc] sm:%s50]
      %442 = vst [vmem:[%s58 + $0x2fc] sm:%s50] %v441
    $region58: #{forward.3} parent=52 // loop_footer
      %s56 = sadd.s32 1, %s52
    $region59: #{forward.3} parent=52 // loop_footer_branch
      %51 = sbr.rel target = $region55
    $region60: #{forward.3} parent=52 // loop_exit
      _
  $region53: #{forward.3} parent=0 // pred_fallthru
    _
  // Predicated region
  $region79: #{forward.3} parent=0 // pred_check
    _
  $region80: #{forward.3} parent=0 // pred_check_branch
    %856 = sbr.rel (0) target = $region82
  $region81: #{forward.3} parent=0 // pred_region
    %857 = vsyncadd [#allocation5], 12288
  $region82: #{forward.3} parent=0 // pred_fallthru
    _
  %s858 = scalar_lea.sflag [#allocation5], 1
  %p860 = scmp.lt.u32.totalorder 4, 8
  %p861 = pneg %p860
  // Predicated region
  $region83: #{forward.3} parent=0 // pred_check
    _
  $region84: #{forward.3} parent=0 // pred_check_branch
    %863 = sbr.rel (%p860) target = $region86
  $region85: #{forward.3} parent=0 // pred_region
    %s1132 = sand.u32 4, 7
    %p1133 = scmp.eq.s32.totalorder %s1132, 0
    %p1134 = pneg %p1133
    // Predicated region
    $region98: #{forward.3} parent=85 // pred_check
      _
    $region99: #{forward.3} parent=85 // pred_check_branch
      %1136 = sbr.rel (%p1133) target = $region101
    $region100: #{forward.3} parent=85 // pred_region
      %s1137 = sand.u32 4, 7
      %s1138 = ssub.s32 4, %s1137
      %s1139 = scalar_lea.vmem %s12, %s1138
      %s1140 = ssub.s32 4, %s1137
      %s1141 = scalar_lea.vmem [#allocation3], %s1140
      loop: start=0, step=1, limit=1
      $region102: #{forward.3} parent=100 // loop_pre_header
        _
      $region103: #{forward.3} parent=100 // loop_header
        %s1143 = sphi 0, %s1147
        %p1144 = scmp.ge.s32.totalorder %s1143, 1
        %s1148 = sphi %s12, %s12
        %s1149 = sphi [#allocation3], [#allocation3]
      $region104: #{forward.3} parent=100 // loop_header_branch
        %1146 = sbr.rel (%p1144) target = $region108
      $region105: #{forward.3} parent=100 // loop_body
        _
      $region106: #{forward.3} parent=100 // loop_footer
        %s1147 = sadd.s32 1, %s1143
      $region107: #{forward.3} parent=100 // loop_footer_branch
        %1142 = sbr.rel target = $region103
      $region108: #{forward.3} parent=100 // loop_exit
        _
      %s1150 = sshllo.u32 0, %s1137
      loop: start=0, step=1, limit=1
      $region109: #{forward.3} parent=100 // loop_pre_header
        _
      $region110: #{forward.3} parent=100 // loop_header
        %s1152 = sphi 0, %s1156
        %p1153 = scmp.ge.s32.totalorder %s1152, 1
        %s1157 = sphi %s1139, %s1139
        %s1158 = sphi %s1141, %s1141
      $region111: #{forward.3} parent=100 // loop_header_branch
        %1155 = sbr.rel (%p1153) target = $region115
      $region112: #{forward.3} parent=100 // loop_body
        %v1159 = vld [vmem:[%s1157] sm:%s1150]
        %1160 = vst [vmem:[%s1158] sm:%s1150] %v1159
        %v1161 = vld [vmem:[%s1157 + $0x8] sm:%s1150]
        %1162 = vst [vmem:[%s1158 + $0x4] sm:%s1150] %v1161
        %v1163 = vld [vmem:[%s1157 + $0x4] sm:%s1150]
        %1164 = vst [vmem:[%s1158 + $0x8] sm:%s1150] %v1163
        %v1165 = vld [vmem:[%s1157 + $0xc] sm:%s1150]
        %1166 = vst [vmem:[%s1158 + $0xc] sm:%s1150] %v1165
        %v1167 = vld [vmem:[%s1157 + $0x10] sm:%s1150]
        %1168 = vst [vmem:[%s1158 + $0x10] sm:%s1150] %v1167
        %v1169 = vld [vmem:[%s1157 + $0x18] sm:%s1150]
        %1170 = vst [vmem:[%s1158 + $0x14] sm:%s1150] %v1169
        %v1171 = vld [vmem:[%s1157 + $0x14] sm:%s1150]
        %1172 = vst [vmem:[%s1158 + $0x18] sm:%s1150] %v1171
        %v1173 = vld [vmem:[%s1157 + $0x1c] sm:%s1150]
        %1174 = vst [vmem:[%s1158 + $0x1c] sm:%s1150] %v1173
        %v1175 = vld [vmem:[%s1157 + $0x20] sm:%s1150]
        %1176 = vst [vmem:[%s1158 + $0x20] sm:%s1150] %v1175
        %v1177 = vld [vmem:[%s1157 + $0x28] sm:%s1150]
        %1178 = vst [vmem:[%s1158 + $0x24] sm:%s1150] %v1177
        %v1179 = vld [vmem:[%s1157 + $0x24] sm:%s1150]
        %1180 = vst [vmem:[%s1158 + $0x28] sm:%s1150] %v1179
        %v1181 = vld [vmem:[%s1157 + $0x2c] sm:%s1150]
        %1182 = vst [vmem:[%s1158 + $0x2c] sm:%s1150] %v1181
        %v1183 = vld [vmem:[%s1157 + $0x30] sm:%s1150]
        %1184 = vst [vmem:[%s1158 + $0x30] sm:%s1150] %v1183
        %v1185 = vld [vmem:[%s1157 + $0x38] sm:%s1150]
        %1186 = vst [vmem:[%s1158 + $0x34] sm:%s1150] %v1185
        %v1187 = vld [vmem:[%s1157 + $0x34] sm:%s1150]
        %1188 = vst [vmem:[%s1158 + $0x38] sm:%s1150] %v1187
        %v1189 = vld [vmem:[%s1157 + $0x3c] sm:%s1150]
        %1190 = vst [vmem:[%s1158 + $0x3c] sm:%s1150] %v1189
        %v1191 = vld [vmem:[%s1157 + $0x40] sm:%s1150]
        %1192 = vst [vmem:[%s1158 + $0x40] sm:%s1150] %v1191
        %v1193 = vld [vmem:[%s1157 + $0x48] sm:%s1150]
        %1194 = vst [vmem:[%s1158 + $0x44] sm:%s1150] %v1193
        %v1195 = vld [vmem:[%s1157 + $0x44] sm:%s1150]
        %1196 = vst [vmem:[%s1158 + $0x48] sm:%s1150] %v1195
        %v1197 = vld [vmem:[%s1157 + $0x4c] sm:%s1150]
        %1198 = vst [vmem:[%s1158 + $0x4c] sm:%s1150] %v1197
        %v1199 = vld [vmem:[%s1157 + $0x50] sm:%s1150]
        %1200 = vst [vmem:[%s1158 + $0x50] sm:%s1150] %v1199
        %v1201 = vld [vmem:[%s1157 + $0x58] sm:%s1150]
        %1202 = vst [vmem:[%s1158 + $0x54] sm:%s1150] %v1201
        %v1203 = vld [vmem:[%s1157 + $0x54] sm:%s1150]
        %1204 = vst [vmem:[%s1158 + $0x58] sm:%s1150] %v1203
        %v1205 = vld [vmem:[%s1157 + $0x5c] sm:%s1150]
        %1206 = vst [vmem:[%s1158 + $0x5c] sm:%s1150] %v1205
        %v1207 = vld [vmem:[%s1157 + $0x60] sm:%s1150]
        %1208 = vst [vmem:[%s1158 + $0x60] sm:%s1150] %v1207
        %v1209 = vld [vmem:[%s1157 + $0x68] sm:%s1150]
        %1210 = vst [vmem:[%s1158 + $0x64] sm:%s1150] %v1209
        %v1211 = vld [vmem:[%s1157 + $0x64] sm:%s1150]
        %1212 = vst [vmem:[%s1158 + $0x68] sm:%s1150] %v1211
        %v1213 = vld [vmem:[%s1157 + $0x6c] sm:%s1150]
        %1214 = vst [vmem:[%s1158 + $0x6c] sm:%s1150] %v1213
        %v1215 = vld [vmem:[%s1157 + $0x70] sm:%s1150]
        %1216 = vst [vmem:[%s1158 + $0x70] sm:%s1150] %v1215
        %v1217 = vld [vmem:[%s1157 + $0x78] sm:%s1150]
        %1218 = vst [vmem:[%s1158 + $0x74] sm:%s1150] %v1217
        %v1219 = vld [vmem:[%s1157 + $0x74] sm:%s1150]
        %1220 = vst [vmem:[%s1158 + $0x78] sm:%s1150] %v1219
        %v1221 = vld [vmem:[%s1157 + $0x7c] sm:%s1150]
        %1222 = vst [vmem:[%s1158 + $0x7c] sm:%s1150] %v1221
        %v1223 = vld [vmem:[%s1157 + $0x80] sm:%s1150]
        %1224 = vst [vmem:[%s1158 + $0x80] sm:%s1150] %v1223
        %v1225 = vld [vmem:[%s1157 + $0x88] sm:%s1150]
        %1226 = vst [vmem:[%s1158 + $0x84] sm:%s1150] %v1225
        %v1227 = vld [vmem:[%s1157 + $0x84] sm:%s1150]
        %1228 = vst [vmem:[%s1158 + $0x88] sm:%s1150] %v1227
        %v1229 = vld [vmem:[%s1157 + $0x8c] sm:%s1150]
        %1230 = vst [vmem:[%s1158 + $0x8c] sm:%s1150] %v1229
        %v1231 = vld [vmem:[%s1157 + $0x90] sm:%s1150]
        %1232 = vst [vmem:[%s1158 + $0x90] sm:%s1150] %v1231
        %v1233 = vld [vmem:[%s1157 + $0x98] sm:%s1150]
        %1234 = vst [vmem:[%s1158 + $0x94] sm:%s1150] %v1233
        %v1235 = vld [vmem:[%s1157 + $0x94] sm:%s1150]
        %1236 = vst [vmem:[%s1158 + $0x98] sm:%s1150] %v1235
        %v1237 = vld [vmem:[%s1157 + $0x9c] sm:%s1150]
        %1238 = vst [vmem:[%s1158 + $0x9c] sm:%s1150] %v1237
        %v1239 = vld [vmem:[%s1157 + $0xa0] sm:%s1150]
        %1240 = vst [vmem:[%s1158 + $0xa0] sm:%s1150] %v1239
        %v1241 = vld [vmem:[%s1157 + $0xa8] sm:%s1150]
        %1242 = vst [vmem:[%s1158 + $0xa4] sm:%s1150] %v1241
        %v1243 = vld [vmem:[%s1157 + $0xa4] sm:%s1150]
        %1244 = vst [vmem:[%s1158 + $0xa8] sm:%s1150] %v1243
        %v1245 = vld [vmem:[%s1157 + $0xac] sm:%s1150]
        %1246 = vst [vmem:[%s1158 + $0xac] sm:%s1150] %v1245
        %v1247 = vld [vmem:[%s1157 + $0xb0] sm:%s1150]
        %1248 = vst [vmem:[%s1158 + $0xb0] sm:%s1150] %v1247
        %v1249 = vld [vmem:[%s1157 + $0xb8] sm:%s1150]
        %1250 = vst [vmem:[%s1158 + $0xb4] sm:%s1150] %v1249
        %v1251 = vld [vmem:[%s1157 + $0xb4] sm:%s1150]
        %1252 = vst [vmem:[%s1158 + $0xb8] sm:%s1150] %v1251
        %v1253 = vld [vmem:[%s1157 + $0xbc] sm:%s1150]
        %1254 = vst [vmem:[%s1158 + $0xbc] sm:%s1150] %v1253
        %v1255 = vld [vmem:[%s1157 + $0xc0] sm:%s1150]
        %1256 = vst [vmem:[%s1158 + $0xc0] sm:%s1150] %v1255
        %v1257 = vld [vmem:[%s1157 + $0xc8] sm:%s1150]
        %1258 = vst [vmem:[%s1158 + $0xc4] sm:%s1150] %v1257
        %v1259 = vld [vmem:[%s1157 + $0xc4] sm:%s1150]
        %1260 = vst [vmem:[%s1158 + $0xc8] sm:%s1150] %v1259
        %v1261 = vld [vmem:[%s1157 + $0xcc] sm:%s1150]
        %1262 = vst [vmem:[%s1158 + $0xcc] sm:%s1150] %v1261
        %v1263 = vld [vmem:[%s1157 + $0xd0] sm:%s1150]
        %1264 = vst [vmem:[%s1158 + $0xd0] sm:%s1150] %v1263
        %v1265 = vld [vmem:[%s1157 + $0xd8] sm:%s1150]
        %1266 = vst [vmem:[%s1158 + $0xd4] sm:%s1150] %v1265
        %v1267 = vld [vmem:[%s1157 + $0xd4] sm:%s1150]
        %1268 = vst [vmem:[%s1158 + $0xd8] sm:%s1150] %v1267
        %v1269 = vld [vmem:[%s1157 + $0xdc] sm:%s1150]
        %1270 = vst [vmem:[%s1158 + $0xdc] sm:%s1150] %v1269
        %v1271 = vld [vmem:[%s1157 + $0xe0] sm:%s1150]
        %1272 = vst [vmem:[%s1158 + $0xe0] sm:%s1150] %v1271
        %v1273 = vld [vmem:[%s1157 + $0xe8] sm:%s1150]
        %1274 = vst [vmem:[%s1158 + $0xe4] sm:%s1150] %v1273
        %v1275 = vld [vmem:[%s1157 + $0xe4] sm:%s1150]
        %1276 = vst [vmem:[%s1158 + $0xe8] sm:%s1150] %v1275
        %v1277 = vld [vmem:[%s1157 + $0xec] sm:%s1150]
        %1278 = vst [vmem:[%s1158 + $0xec] sm:%s1150] %v1277
        %v1279 = vld [vmem:[%s1157 + $0xf0] sm:%s1150]
        %1280 = vst [vmem:[%s1158 + $0xf0] sm:%s1150] %v1279
        %v1281 = vld [vmem:[%s1157 + $0xf8] sm:%s1150]
        %1282 = vst [vmem:[%s1158 + $0xf4] sm:%s1150] %v1281
        %v1283 = vld [vmem:[%s1157 + $0xf4] sm:%s1150]
        %1284 = vst [vmem:[%s1158 + $0xf8] sm:%s1150] %v1283
        %v1285 = vld [vmem:[%s1157 + $0xfc] sm:%s1150]
        %1286 = vst [vmem:[%s1158 + $0xfc] sm:%s1150] %v1285
        %v1287 = vld [vmem:[%s1157 + $0x100] sm:%s1150]
        %1288 = vst [vmem:[%s1158 + $0x100] sm:%s1150] %v1287
        %v1289 = vld [vmem:[%s1157 + $0x108] sm:%s1150]
        %1290 = vst [vmem:[%s1158 + $0x104] sm:%s1150] %v1289
        %v1291 = vld [vmem:[%s1157 + $0x104] sm:%s1150]
        %1292 = vst [vmem:[%s1158 + $0x108] sm:%s1150] %v1291
        %v1293 = vld [vmem:[%s1157 + $0x10c] sm:%s1150]
        %1294 = vst [vmem:[%s1158 + $0x10c] sm:%s1150] %v1293
        %v1295 = vld [vmem:[%s1157 + $0x110] sm:%s1150]
        %1296 = vst [vmem:[%s1158 + $0x110] sm:%s1150] %v1295
        %v1297 = vld [vmem:[%s1157 + $0x118] sm:%s1150]
        %1298 = vst [vmem:[%s1158 + $0x114] sm:%s1150] %v1297
        %v1299 = vld [vmem:[%s1157 + $0x114] sm:%s1150]
        %1300 = vst [vmem:[%s1158 + $0x118] sm:%s1150] %v1299
        %v1301 = vld [vmem:[%s1157 + $0x11c] sm:%s1150]
        %1302 = vst [vmem:[%s1158 + $0x11c] sm:%s1150] %v1301
        %v1303 = vld [vmem:[%s1157 + $0x120] sm:%s1150]
        %1304 = vst [vmem:[%s1158 + $0x120] sm:%s1150] %v1303
        %v1305 = vld [vmem:[%s1157 + $0x128] sm:%s1150]
        %1306 = vst [vmem:[%s1158 + $0x124] sm:%s1150] %v1305
        %v1307 = vld [vmem:[%s1157 + $0x124] sm:%s1150]
        %1308 = vst [vmem:[%s1158 + $0x128] sm:%s1150] %v1307
        %v1309 = vld [vmem:[%s1157 + $0x12c] sm:%s1150]
        %1310 = vst [vmem:[%s1158 + $0x12c] sm:%s1150] %v1309
        %v1311 = vld [vmem:[%s1157 + $0x130] sm:%s1150]
        %1312 = vst [vmem:[%s1158 + $0x130] sm:%s1150] %v1311
        %v1313 = vld [vmem:[%s1157 + $0x138] sm:%s1150]
        %1314 = vst [vmem:[%s1158 + $0x134] sm:%s1150] %v1313
        %v1315 = vld [vmem:[%s1157 + $0x134] sm:%s1150]
        %1316 = vst [vmem:[%s1158 + $0x138] sm:%s1150] %v1315
        %v1317 = vld [vmem:[%s1157 + $0x13c] sm:%s1150]
        %1318 = vst [vmem:[%s1158 + $0x13c] sm:%s1150] %v1317
        %v1319 = vld [vmem:[%s1157 + $0x140] sm:%s1150]
        %1320 = vst [vmem:[%s1158 + $0x140] sm:%s1150] %v1319
        %v1321 = vld [vmem:[%s1157 + $0x148] sm:%s1150]
        %1322 = vst [vmem:[%s1158 + $0x144] sm:%s1150] %v1321
        %v1323 = vld [vmem:[%s1157 + $0x144] sm:%s1150]
        %1324 = vst [vmem:[%s1158 + $0x148] sm:%s1150] %v1323
        %v1325 = vld [vmem:[%s1157 + $0x14c] sm:%s1150]
        %1326 = vst [vmem:[%s1158 + $0x14c] sm:%s1150] %v1325
        %v1327 = vld [vmem:[%s1157 + $0x150] sm:%s1150]
        %1328 = vst [vmem:[%s1158 + $0x150] sm:%s1150] %v1327
        %v1329 = vld [vmem:[%s1157 + $0x158] sm:%s1150]
        %1330 = vst [vmem:[%s1158 + $0x154] sm:%s1150] %v1329
        %v1331 = vld [vmem:[%s1157 + $0x154] sm:%s1150]
        %1332 = vst [vmem:[%s1158 + $0x158] sm:%s1150] %v1331
        %v1333 = vld [vmem:[%s1157 + $0x15c] sm:%s1150]
        %1334 = vst [vmem:[%s1158 + $0x15c] sm:%s1150] %v1333
        %v1335 = vld [vmem:[%s1157 + $0x160] sm:%s1150]
        %1336 = vst [vmem:[%s1158 + $0x160] sm:%s1150] %v1335
        %v1337 = vld [vmem:[%s1157 + $0x168] sm:%s1150]
        %1338 = vst [vmem:[%s1158 + $0x164] sm:%s1150] %v1337
        %v1339 = vld [vmem:[%s1157 + $0x164] sm:%s1150]
        %1340 = vst [vmem:[%s1158 + $0x168] sm:%s1150] %v1339
        %v1341 = vld [vmem:[%s1157 + $0x16c] sm:%s1150]
        %1342 = vst [vmem:[%s1158 + $0x16c] sm:%s1150] %v1341
        %v1343 = vld [vmem:[%s1157 + $0x170] sm:%s1150]
        %1344 = vst [vmem:[%s1158 + $0x170] sm:%s1150] %v1343
        %v1345 = vld [vmem:[%s1157 + $0x178] sm:%s1150]
        %1346 = vst [vmem:[%s1158 + $0x174] sm:%s1150] %v1345
        %v1347 = vld [vmem:[%s1157 + $0x174] sm:%s1150]
        %1348 = vst [vmem:[%s1158 + $0x178] sm:%s1150] %v1347
        %v1349 = vld [vmem:[%s1157 + $0x17c] sm:%s1150]
        %1350 = vst [vmem:[%s1158 + $0x17c] sm:%s1150] %v1349
        %v1351 = vld [vmem:[%s1157 + $0x180] sm:%s1150]
        %1352 = vst [vmem:[%s1158 + $0x180] sm:%s1150] %v1351
        %v1353 = vld [vmem:[%s1157 + $0x188] sm:%s1150]
        %1354 = vst [vmem:[%s1158 + $0x184] sm:%s1150] %v1353
        %v1355 = vld [vmem:[%s1157 + $0x184] sm:%s1150]
        %1356 = vst [vmem:[%s1158 + $0x188] sm:%s1150] %v1355
        %v1357 = vld [vmem:[%s1157 + $0x18c] sm:%s1150]
        %1358 = vst [vmem:[%s1158 + $0x18c] sm:%s1150] %v1357
        %v1359 = vld [vmem:[%s1157 + $0x190] sm:%s1150]
        %1360 = vst [vmem:[%s1158 + $0x190] sm:%s1150] %v1359
        %v1361 = vld [vmem:[%s1157 + $0x198] sm:%s1150]
        %1362 = vst [vmem:[%s1158 + $0x194] sm:%s1150] %v1361
        %v1363 = vld [vmem:[%s1157 + $0x194] sm:%s1150]
        %1364 = vst [vmem:[%s1158 + $0x198] sm:%s1150] %v1363
        %v1365 = vld [vmem:[%s1157 + $0x19c] sm:%s1150]
        %1366 = vst [vmem:[%s1158 + $0x19c] sm:%s1150] %v1365
        %v1367 = vld [vmem:[%s1157 + $0x1a0] sm:%s1150]
        %1368 = vst [vmem:[%s1158 + $0x1a0] sm:%s1150] %v1367
        %v1369 = vld [vmem:[%s1157 + $0x1a8] sm:%s1150]
        %1370 = vst [vmem:[%s1158 + $0x1a4] sm:%s1150] %v1369
        %v1371 = vld [vmem:[%s1157 + $0x1a4] sm:%s1150]
        %1372 = vst [vmem:[%s1158 + $0x1a8] sm:%s1150] %v1371
        %v1373 = vld [vmem:[%s1157 + $0x1ac] sm:%s1150]
        %1374 = vst [vmem:[%s1158 + $0x1ac] sm:%s1150] %v1373
        %v1375 = vld [vmem:[%s1157 + $0x1b0] sm:%s1150]
        %1376 = vst [vmem:[%s1158 + $0x1b0] sm:%s1150] %v1375
        %v1377 = vld [vmem:[%s1157 + $0x1b8] sm:%s1150]
        %1378 = vst [vmem:[%s1158 + $0x1b4] sm:%s1150] %v1377
        %v1379 = vld [vmem:[%s1157 + $0x1b4] sm:%s1150]
        %1380 = vst [vmem:[%s1158 + $0x1b8] sm:%s1150] %v1379
        %v1381 = vld [vmem:[%s1157 + $0x1bc] sm:%s1150]
        %1382 = vst [vmem:[%s1158 + $0x1bc] sm:%s1150] %v1381
        %v1383 = vld [vmem:[%s1157 + $0x1c0] sm:%s1150]
        %1384 = vst [vmem:[%s1158 + $0x1c0] sm:%s1150] %v1383
        %v1385 = vld [vmem:[%s1157 + $0x1c8] sm:%s1150]
        %1386 = vst [vmem:[%s1158 + $0x1c4] sm:%s1150] %v1385
        %v1387 = vld [vmem:[%s1157 + $0x1c4] sm:%s1150]
        %1388 = vst [vmem:[%s1158 + $0x1c8] sm:%s1150] %v1387
        %v1389 = vld [vmem:[%s1157 + $0x1cc] sm:%s1150]
        %1390 = vst [vmem:[%s1158 + $0x1cc] sm:%s1150] %v1389
        %v1391 = vld [vmem:[%s1157 + $0x1d0] sm:%s1150]
        %1392 = vst [vmem:[%s1158 + $0x1d0] sm:%s1150] %v1391
        %v1393 = vld [vmem:[%s1157 + $0x1d8] sm:%s1150]
        %1394 = vst [vmem:[%s1158 + $0x1d4] sm:%s1150] %v1393
        %v1395 = vld [vmem:[%s1157 + $0x1d4] sm:%s1150]
        %1396 = vst [vmem:[%s1158 + $0x1d8] sm:%s1150] %v1395
        %v1397 = vld [vmem:[%s1157 + $0x1dc] sm:%s1150]
        %1398 = vst [vmem:[%s1158 + $0x1dc] sm:%s1150] %v1397
        %v1399 = vld [vmem:[%s1157 + $0x1e0] sm:%s1150]
        %1400 = vst [vmem:[%s1158 + $0x1e0] sm:%s1150] %v1399
        %v1401 = vld [vmem:[%s1157 + $0x1e8] sm:%s1150]
        %1402 = vst [vmem:[%s1158 + $0x1e4] sm:%s1150] %v1401
        %v1403 = vld [vmem:[%s1157 + $0x1e4] sm:%s1150]
        %1404 = vst [vmem:[%s1158 + $0x1e8] sm:%s1150] %v1403
        %v1405 = vld [vmem:[%s1157 + $0x1ec] sm:%s1150]
        %1406 = vst [vmem:[%s1158 + $0x1ec] sm:%s1150] %v1405
        %v1407 = vld [vmem:[%s1157 + $0x1f0] sm:%s1150]
        %1408 = vst [vmem:[%s1158 + $0x1f0] sm:%s1150] %v1407
        %v1409 = vld [vmem:[%s1157 + $0x1f8] sm:%s1150]
        %1410 = vst [vmem:[%s1158 + $0x1f4] sm:%s1150] %v1409
        %v1411 = vld [vmem:[%s1157 + $0x1f4] sm:%s1150]
        %1412 = vst [vmem:[%s1158 + $0x1f8] sm:%s1150] %v1411
        %v1413 = vld [vmem:[%s1157 + $0x1fc] sm:%s1150]
        %1414 = vst [vmem:[%s1158 + $0x1fc] sm:%s1150] %v1413
      $region113: #{forward.3} parent=100 // loop_footer
        %s1156 = sadd.s32 1, %s1152
      $region114: #{forward.3} parent=100 // loop_footer_branch
        %1151 = sbr.rel target = $region110
      $region115: #{forward.3} parent=100 // loop_exit
        _
    $region101: #{forward.3} parent=85 // pred_fallthru
      _
  $region86: #{forward.3} parent=0 // pred_fallthru
    _
  // Predicated region
  $region87: #{forward.3} parent=0 // pred_check
    %p864 = pneg %p860
  $region88: #{forward.3} parent=0 // pred_check_branch
    %866 = sbr.rel (%p864) target = $region90
  $region89: #{forward.3} parent=0 // pred_region
    %s867 = sshllo.u32 0, 4
    loop: start=0, step=1, limit=1
    $region91: #{forward.3} parent=89 // loop_pre_header
      _
    $region92: #{forward.3} parent=89 // loop_header
      %s869 = sphi 0, %s873
      %p870 = scmp.ge.s32.totalorder %s869, 1
      %s874 = sphi %s12, %s12
      %s875 = sphi [#allocation3], [#allocation3]
    $region93: #{forward.3} parent=89 // loop_header_branch
      %872 = sbr.rel (%p870) target = $region97
    $region94: #{forward.3} parent=89 // loop_body
      %v876 = vld [vmem:[%s874] sm:%s867]
      %877 = vst [vmem:[%s875] sm:%s867] %v876
      %v878 = vld [vmem:[%s874 + $0x8] sm:%s867]
      %879 = vst [vmem:[%s875 + $0x4] sm:%s867] %v878
      %v880 = vld [vmem:[%s874 + $0x4] sm:%s867]
      %881 = vst [vmem:[%s875 + $0x8] sm:%s867] %v880
      %v882 = vld [vmem:[%s874 + $0xc] sm:%s867]
      %883 = vst [vmem:[%s875 + $0xc] sm:%s867] %v882
      %v884 = vld [vmem:[%s874 + $0x10] sm:%s867]
      %885 = vst [vmem:[%s875 + $0x10] sm:%s867] %v884
      %v886 = vld [vmem:[%s874 + $0x18] sm:%s867]
      %887 = vst [vmem:[%s875 + $0x14] sm:%s867] %v886
      %v888 = vld [vmem:[%s874 + $0x14] sm:%s867]
      %889 = vst [vmem:[%s875 + $0x18] sm:%s867] %v888
      %v890 = vld [vmem:[%s874 + $0x1c] sm:%s867]
      %891 = vst [vmem:[%s875 + $0x1c] sm:%s867] %v890
      %v892 = vld [vmem:[%s874 + $0x20] sm:%s867]
      %893 = vst [vmem:[%s875 + $0x20] sm:%s867] %v892
      %v894 = vld [vmem:[%s874 + $0x28] sm:%s867]
      %895 = vst [vmem:[%s875 + $0x24] sm:%s867] %v894
      %v896 = vld [vmem:[%s874 + $0x24] sm:%s867]
      %897 = vst [vmem:[%s875 + $0x28] sm:%s867] %v896
      %v898 = vld [vmem:[%s874 + $0x2c] sm:%s867]
      %899 = vst [vmem:[%s875 + $0x2c] sm:%s867] %v898
      %v900 = vld [vmem:[%s874 + $0x30] sm:%s867]
      %901 = vst [vmem:[%s875 + $0x30] sm:%s867] %v900
      %v902 = vld [vmem:[%s874 + $0x38] sm:%s867]
      %903 = vst [vmem:[%s875 + $0x34] sm:%s867] %v902
      %v904 = vld [vmem:[%s874 + $0x34] sm:%s867]
      %905 = vst [vmem:[%s875 + $0x38] sm:%s867] %v904
      %v906 = vld [vmem:[%s874 + $0x3c] sm:%s867]
      %907 = vst [vmem:[%s875 + $0x3c] sm:%s867] %v906
      %v908 = vld [vmem:[%s874 + $0x40] sm:%s867]
      %909 = vst [vmem:[%s875 + $0x40] sm:%s867] %v908
      %v910 = vld [vmem:[%s874 + $0x48] sm:%s867]
      %911 = vst [vmem:[%s875 + $0x44] sm:%s867] %v910
      %v912 = vld [vmem:[%s874 + $0x44] sm:%s867]
      %913 = vst [vmem:[%s875 + $0x48] sm:%s867] %v912
      %v914 = vld [vmem:[%s874 + $0x4c] sm:%s867]
      %915 = vst [vmem:[%s875 + $0x4c] sm:%s867] %v914
      %v916 = vld [vmem:[%s874 + $0x50] sm:%s867]
      %917 = vst [vmem:[%s875 + $0x50] sm:%s867] %v916
      %v918 = vld [vmem:[%s874 + $0x58] sm:%s867]
      %919 = vst [vmem:[%s875 + $0x54] sm:%s867] %v918
      %v920 = vld [vmem:[%s874 + $0x54] sm:%s867]
      %921 = vst [vmem:[%s875 + $0x58] sm:%s867] %v920
      %v922 = vld [vmem:[%s874 + $0x5c] sm:%s867]
      %923 = vst [vmem:[%s875 + $0x5c] sm:%s867] %v922
      %v924 = vld [vmem:[%s874 + $0x60] sm:%s867]
      %925 = vst [vmem:[%s875 + $0x60] sm:%s867] %v924
      %v926 = vld [vmem:[%s874 + $0x68] sm:%s867]
      %927 = vst [vmem:[%s875 + $0x64] sm:%s867] %v926
      %v928 = vld [vmem:[%s874 + $0x64] sm:%s867]
      %929 = vst [vmem:[%s875 + $0x68] sm:%s867] %v928
      %v930 = vld [vmem:[%s874 + $0x6c] sm:%s867]
      %931 = vst [vmem:[%s875 + $0x6c] sm:%s867] %v930
      %v932 = vld [vmem:[%s874 + $0x70] sm:%s867]
      %933 = vst [vmem:[%s875 + $0x70] sm:%s867] %v932
      %v934 = vld [vmem:[%s874 + $0x78] sm:%s867]
      %935 = vst [vmem:[%s875 + $0x74] sm:%s867] %v934
      %v936 = vld [vmem:[%s874 + $0x74] sm:%s867]
      %937 = vst [vmem:[%s875 + $0x78] sm:%s867] %v936
      %v938 = vld [vmem:[%s874 + $0x7c] sm:%s867]
      %939 = vst [vmem:[%s875 + $0x7c] sm:%s867] %v938
      %v940 = vld [vmem:[%s874 + $0x80] sm:%s867]
      %941 = vst [vmem:[%s875 + $0x80] sm:%s867] %v940
      %v942 = vld [vmem:[%s874 + $0x88] sm:%s867]
      %943 = vst [vmem:[%s875 + $0x84] sm:%s867] %v942
      %v944 = vld [vmem:[%s874 + $0x84] sm:%s867]
      %945 = vst [vmem:[%s875 + $0x88] sm:%s867] %v944
      %v946 = vld [vmem:[%s874 + $0x8c] sm:%s867]
      %947 = vst [vmem:[%s875 + $0x8c] sm:%s867] %v946
      %v948 = vld [vmem:[%s874 + $0x90] sm:%s867]
      %949 = vst [vmem:[%s875 + $0x90] sm:%s867] %v948
      %v950 = vld [vmem:[%s874 + $0x98] sm:%s867]
      %951 = vst [vmem:[%s875 + $0x94] sm:%s867] %v950
      %v952 = vld [vmem:[%s874 + $0x94] sm:%s867]
      %953 = vst [vmem:[%s875 + $0x98] sm:%s867] %v952
      %v954 = vld [vmem:[%s874 + $0x9c] sm:%s867]
      %955 = vst [vmem:[%s875 + $0x9c] sm:%s867] %v954
      %v956 = vld [vmem:[%s874 + $0xa0] sm:%s867]
      %957 = vst [vmem:[%s875 + $0xa0] sm:%s867] %v956
      %v958 = vld [vmem:[%s874 + $0xa8] sm:%s867]
      %959 = vst [vmem:[%s875 + $0xa4] sm:%s867] %v958
      %v960 = vld [vmem:[%s874 + $0xa4] sm:%s867]
      %961 = vst [vmem:[%s875 + $0xa8] sm:%s867] %v960
      %v962 = vld [vmem:[%s874 + $0xac] sm:%s867]
      %963 = vst [vmem:[%s875 + $0xac] sm:%s867] %v962
      %v964 = vld [vmem:[%s874 + $0xb0] sm:%s867]
      %965 = vst [vmem:[%s875 + $0xb0] sm:%s867] %v964
      %v966 = vld [vmem:[%s874 + $0xb8] sm:%s867]
      %967 = vst [vmem:[%s875 + $0xb4] sm:%s867] %v966
      %v968 = vld [vmem:[%s874 + $0xb4] sm:%s867]
      %969 = vst [vmem:[%s875 + $0xb8] sm:%s867] %v968
      %v970 = vld [vmem:[%s874 + $0xbc] sm:%s867]
      %971 = vst [vmem:[%s875 + $0xbc] sm:%s867] %v970
      %v972 = vld [vmem:[%s874 + $0xc0] sm:%s867]
      %973 = vst [vmem:[%s875 + $0xc0] sm:%s867] %v972
      %v974 = vld [vmem:[%s874 + $0xc8] sm:%s867]
      %975 = vst [vmem:[%s875 + $0xc4] sm:%s867] %v974
      %v976 = vld [vmem:[%s874 + $0xc4] sm:%s867]
      %977 = vst [vmem:[%s875 + $0xc8] sm:%s867] %v976
      %v978 = vld [vmem:[%s874 + $0xcc] sm:%s867]
      %979 = vst [vmem:[%s875 + $0xcc] sm:%s867] %v978
      %v980 = vld [vmem:[%s874 + $0xd0] sm:%s867]
      %981 = vst [vmem:[%s875 + $0xd0] sm:%s867] %v980
      %v982 = vld [vmem:[%s874 + $0xd8] sm:%s867]
      %983 = vst [vmem:[%s875 + $0xd4] sm:%s867] %v982
      %v984 = vld [vmem:[%s874 + $0xd4] sm:%s867]
      %985 = vst [vmem:[%s875 + $0xd8] sm:%s867] %v984
      %v986 = vld [vmem:[%s874 + $0xdc] sm:%s867]
      %987 = vst [vmem:[%s875 + $0xdc] sm:%s867] %v986
      %v988 = vld [vmem:[%s874 + $0xe0] sm:%s867]
      %989 = vst [vmem:[%s875 + $0xe0] sm:%s867] %v988
      %v990 = vld [vmem:[%s874 + $0xe8] sm:%s867]
      %991 = vst [vmem:[%s875 + $0xe4] sm:%s867] %v990
      %v992 = vld [vmem:[%s874 + $0xe4] sm:%s867]
      %993 = vst [vmem:[%s875 + $0xe8] sm:%s867] %v992
      %v994 = vld [vmem:[%s874 + $0xec] sm:%s867]
      %995 = vst [vmem:[%s875 + $0xec] sm:%s867] %v994
      %v996 = vld [vmem:[%s874 + $0xf0] sm:%s867]
      %997 = vst [vmem:[%s875 + $0xf0] sm:%s867] %v996
      %v998 = vld [vmem:[%s874 + $0xf8] sm:%s867]
      %999 = vst [vmem:[%s875 + $0xf4] sm:%s867] %v998
      %v1000 = vld [vmem:[%s874 + $0xf4] sm:%s867]
      %1001 = vst [vmem:[%s875 + $0xf8] sm:%s867] %v1000
      %v1002 = vld [vmem:[%s874 + $0xfc] sm:%s867]
      %1003 = vst [vmem:[%s875 + $0xfc] sm:%s867] %v1002
      %v1004 = vld [vmem:[%s874 + $0x100] sm:%s867]
      %1005 = vst [vmem:[%s875 + $0x100] sm:%s867] %v1004
      %v1006 = vld [vmem:[%s874 + $0x108] sm:%s867]
      %1007 = vst [vmem:[%s875 + $0x104] sm:%s867] %v1006
      %v1008 = vld [vmem:[%s874 + $0x104] sm:%s867]
      %1009 = vst [vmem:[%s875 + $0x108] sm:%s867] %v1008
      %v1010 = vld [vmem:[%s874 + $0x10c] sm:%s867]
      %1011 = vst [vmem:[%s875 + $0x10c] sm:%s867] %v1010
      %v1012 = vld [vmem:[%s874 + $0x110] sm:%s867]
      %1013 = vst [vmem:[%s875 + $0x110] sm:%s867] %v1012
      %v1014 = vld [vmem:[%s874 + $0x118] sm:%s867]
      %1015 = vst [vmem:[%s875 + $0x114] sm:%s867] %v1014
      %v1016 = vld [vmem:[%s874 + $0x114] sm:%s867]
      %1017 = vst [vmem:[%s875 + $0x118] sm:%s867] %v1016
      %v1018 = vld [vmem:[%s874 + $0x11c] sm:%s867]
      %1019 = vst [vmem:[%s875 + $0x11c] sm:%s867] %v1018
      %v1020 = vld [vmem:[%s874 + $0x120] sm:%s867]
      %1021 = vst [vmem:[%s875 + $0x120] sm:%s867] %v1020
      %v1022 = vld [vmem:[%s874 + $0x128] sm:%s867]
      %1023 = vst [vmem:[%s875 + $0x124] sm:%s867] %v1022
      %v1024 = vld [vmem:[%s874 + $0x124] sm:%s867]
      %1025 = vst [vmem:[%s875 + $0x128] sm:%s867] %v1024
      %v1026 = vld [vmem:[%s874 + $0x12c] sm:%s867]
      %1027 = vst [vmem:[%s875 + $0x12c] sm:%s867] %v1026
      %v1028 = vld [vmem:[%s874 + $0x130] sm:%s867]
      %1029 = vst [vmem:[%s875 + $0x130] sm:%s867] %v1028
      %v1030 = vld [vmem:[%s874 + $0x138] sm:%s867]
      %1031 = vst [vmem:[%s875 + $0x134] sm:%s867] %v1030
      %v1032 = vld [vmem:[%s874 + $0x134] sm:%s867]
      %1033 = vst [vmem:[%s875 + $0x138] sm:%s867] %v1032
      %v1034 = vld [vmem:[%s874 + $0x13c] sm:%s867]
      %1035 = vst [vmem:[%s875 + $0x13c] sm:%s867] %v1034
      %v1036 = vld [vmem:[%s874 + $0x140] sm:%s867]
      %1037 = vst [vmem:[%s875 + $0x140] sm:%s867] %v1036
      %v1038 = vld [vmem:[%s874 + $0x148] sm:%s867]
      %1039 = vst [vmem:[%s875 + $0x144] sm:%s867] %v1038
      %v1040 = vld [vmem:[%s874 + $0x144] sm:%s867]
      %1041 = vst [vmem:[%s875 + $0x148] sm:%s867] %v1040
      %v1042 = vld [vmem:[%s874 + $0x14c] sm:%s867]
      %1043 = vst [vmem:[%s875 + $0x14c] sm:%s867] %v1042
      %v1044 = vld [vmem:[%s874 + $0x150] sm:%s867]
      %1045 = vst [vmem:[%s875 + $0x150] sm:%s867] %v1044
      %v1046 = vld [vmem:[%s874 + $0x158] sm:%s867]
      %1047 = vst [vmem:[%s875 + $0x154] sm:%s867] %v1046
      %v1048 = vld [vmem:[%s874 + $0x154] sm:%s867]
      %1049 = vst [vmem:[%s875 + $0x158] sm:%s867] %v1048
      %v1050 = vld [vmem:[%s874 + $0x15c] sm:%s867]
      %1051 = vst [vmem:[%s875 + $0x15c] sm:%s867] %v1050
      %v1052 = vld [vmem:[%s874 + $0x160] sm:%s867]
      %1053 = vst [vmem:[%s875 + $0x160] sm:%s867] %v1052
      %v1054 = vld [vmem:[%s874 + $0x168] sm:%s867]
      %1055 = vst [vmem:[%s875 + $0x164] sm:%s867] %v1054
      %v1056 = vld [vmem:[%s874 + $0x164] sm:%s867]
      %1057 = vst [vmem:[%s875 + $0x168] sm:%s867] %v1056
      %v1058 = vld [vmem:[%s874 + $0x16c] sm:%s867]
      %1059 = vst [vmem:[%s875 + $0x16c] sm:%s867] %v1058
      %v1060 = vld [vmem:[%s874 + $0x170] sm:%s867]
      %1061 = vst [vmem:[%s875 + $0x170] sm:%s867] %v1060
      %v1062 = vld [vmem:[%s874 + $0x178] sm:%s867]
      %1063 = vst [vmem:[%s875 + $0x174] sm:%s867] %v1062
      %v1064 = vld [vmem:[%s874 + $0x174] sm:%s867]
      %1065 = vst [vmem:[%s875 + $0x178] sm:%s867] %v1064
      %v1066 = vld [vmem:[%s874 + $0x17c] sm:%s867]
      %1067 = vst [vmem:[%s875 + $0x17c] sm:%s867] %v1066
      %v1068 = vld [vmem:[%s874 + $0x180] sm:%s867]
      %1069 = vst [vmem:[%s875 + $0x180] sm:%s867] %v1068
      %v1070 = vld [vmem:[%s874 + $0x188] sm:%s867]
      %1071 = vst [vmem:[%s875 + $0x184] sm:%s867] %v1070
      %v1072 = vld [vmem:[%s874 + $0x184] sm:%s867]
      %1073 = vst [vmem:[%s875 + $0x188] sm:%s867] %v1072
      %v1074 = vld [vmem:[%s874 + $0x18c] sm:%s867]
      %1075 = vst [vmem:[%s875 + $0x18c] sm:%s867] %v1074
      %v1076 = vld [vmem:[%s874 + $0x190] sm:%s867]
      %1077 = vst [vmem:[%s875 + $0x190] sm:%s867] %v1076
      %v1078 = vld [vmem:[%s874 + $0x198] sm:%s867]
      %1079 = vst [vmem:[%s875 + $0x194] sm:%s867] %v1078
      %v1080 = vld [vmem:[%s874 + $0x194] sm:%s867]
      %1081 = vst [vmem:[%s875 + $0x198] sm:%s867] %v1080
      %v1082 = vld [vmem:[%s874 + $0x19c] sm:%s867]
      %1083 = vst [vmem:[%s875 + $0x19c] sm:%s867] %v1082
      %v1084 = vld [vmem:[%s874 + $0x1a0] sm:%s867]
      %1085 = vst [vmem:[%s875 + $0x1a0] sm:%s867] %v1084
      %v1086 = vld [vmem:[%s874 + $0x1a8] sm:%s867]
      %1087 = vst [vmem:[%s875 + $0x1a4] sm:%s867] %v1086
      %v1088 = vld [vmem:[%s874 + $0x1a4] sm:%s867]
      %1089 = vst [vmem:[%s875 + $0x1a8] sm:%s867] %v1088
      %v1090 = vld [vmem:[%s874 + $0x1ac] sm:%s867]
      %1091 = vst [vmem:[%s875 + $0x1ac] sm:%s867] %v1090
      %v1092 = vld [vmem:[%s874 + $0x1b0] sm:%s867]
      %1093 = vst [vmem:[%s875 + $0x1b0] sm:%s867] %v1092
      %v1094 = vld [vmem:[%s874 + $0x1b8] sm:%s867]
      %1095 = vst [vmem:[%s875 + $0x1b4] sm:%s867] %v1094
      %v1096 = vld [vmem:[%s874 + $0x1b4] sm:%s867]
      %1097 = vst [vmem:[%s875 + $0x1b8] sm:%s867] %v1096
      %v1098 = vld [vmem:[%s874 + $0x1bc] sm:%s867]
      %1099 = vst [vmem:[%s875 + $0x1bc] sm:%s867] %v1098
      %v1100 = vld [vmem:[%s874 + $0x1c0] sm:%s867]
      %1101 = vst [vmem:[%s875 + $0x1c0] sm:%s867] %v1100
      %v1102 = vld [vmem:[%s874 + $0x1c8] sm:%s867]
      %1103 = vst [vmem:[%s875 + $0x1c4] sm:%s867] %v1102
      %v1104 = vld [vmem:[%s874 + $0x1c4] sm:%s867]
      %1105 = vst [vmem:[%s875 + $0x1c8] sm:%s867] %v1104
      %v1106 = vld [vmem:[%s874 + $0x1cc] sm:%s867]
      %1107 = vst [vmem:[%s875 + $0x1cc] sm:%s867] %v1106
      %v1108 = vld [vmem:[%s874 + $0x1d0] sm:%s867]
      %1109 = vst [vmem:[%s875 + $0x1d0] sm:%s867] %v1108
      %v1110 = vld [vmem:[%s874 + $0x1d8] sm:%s867]
      %1111 = vst [vmem:[%s875 + $0x1d4] sm:%s867] %v1110
      %v1112 = vld [vmem:[%s874 + $0x1d4] sm:%s867]
      %1113 = vst [vmem:[%s875 + $0x1d8] sm:%s867] %v1112
      %v1114 = vld [vmem:[%s874 + $0x1dc] sm:%s867]
      %1115 = vst [vmem:[%s875 + $0x1dc] sm:%s867] %v1114
      %v1116 = vld [vmem:[%s874 + $0x1e0] sm:%s867]
      %1117 = vst [vmem:[%s875 + $0x1e0] sm:%s867] %v1116
      %v1118 = vld [vmem:[%s874 + $0x1e8] sm:%s867]
      %1119 = vst [vmem:[%s875 + $0x1e4] sm:%s867] %v1118
      %v1120 = vld [vmem:[%s874 + $0x1e4] sm:%s867]
      %1121 = vst [vmem:[%s875 + $0x1e8] sm:%s867] %v1120
      %v1122 = vld [vmem:[%s874 + $0x1ec] sm:%s867]
      %1123 = vst [vmem:[%s875 + $0x1ec] sm:%s867] %v1122
      %v1124 = vld [vmem:[%s874 + $0x1f0] sm:%s867]
      %1125 = vst [vmem:[%s875 + $0x1f0] sm:%s867] %v1124
      %v1126 = vld [vmem:[%s874 + $0x1f8] sm:%s867]
      %1127 = vst [vmem:[%s875 + $0x1f4] sm:%s867] %v1126
      %v1128 = vld [vmem:[%s874 + $0x1f4] sm:%s867]
      %1129 = vst [vmem:[%s875 + $0x1f8] sm:%s867] %v1128
      %v1130 = vld [vmem:[%s874 + $0x1fc] sm:%s867]
      %1131 = vst [vmem:[%s875 + $0x1fc] sm:%s867] %v1130
    $region95: #{forward.3} parent=89 // loop_footer
      %s873 = sadd.s32 1, %s869
    $region96: #{forward.3} parent=89 // loop_footer_branch
      %868 = sbr.rel target = $region92
    $region97: #{forward.3} parent=89 // loop_exit
      _
  $region90: #{forward.3} parent=0 // pred_fallthru
    _
  // Predicated region
  $region116: #{forward.3} parent=0 // pred_check
    _
  $region117: #{forward.3} parent=0 // pred_check_branch
    %1417 = sbr.rel (0) target = $region119
  $region118: #{forward.3} parent=0 // pred_region
    %1418 = vsyncadd %s858, 8192
  $region119: #{forward.3} parent=0 // pred_fallthru
    _
  %s1419 = scalar_lea.sflag [#allocation5], 2
  %p1421 = scmp.lt.u32.totalorder 128, 8
  %p1422 = pneg %p1421
  // Predicated region
  $region120: #{forward.3} parent=0 // pred_check
    _
  $region121: #{forward.3} parent=0 // pred_check_branch
    %1424 = sbr.rel (%p1421) target = $region123
  $region122: #{forward.3} parent=0 // pred_region
    %s1439 = sand.u32 128, 7
    %p1440 = scmp.eq.s32.totalorder %s1439, 0
    // Predicated region
    $region135: #{forward.3} parent=122 // pred_check
      %p1441 = pneg %p1440
    $region136: #{forward.3} parent=122 // pred_check_branch
      %1443 = sbr.rel (%p1441) target = $region138
    $region137: #{forward.3} parent=122 // pred_region
      loop: start=0, step=1, limit=1
      $region139: #{forward.3} parent=137 // loop_pre_header
        _
      $region140: #{forward.3} parent=137 // loop_header
        %s1445 = sphi 0, %s1449
        %p1446 = scmp.ge.s32.totalorder %s1445, 1
        %s1450 = sphi %s13, %s13
        %s1451 = sphi [#allocation4], [#allocation4]
      $region141: #{forward.3} parent=137 // loop_header_branch
        %1448 = sbr.rel (%p1446) target = $region145
      $region142: #{forward.3} parent=137 // loop_body
        %v1452 = vld [vmem:[%s1450] sm:$0xff]
        %1453 = vst [vmem:[%s1451] sm:$0xff] %v1452
        %v1454 = vld [vmem:[%s1450 + $0x8] sm:$0xff]
        %1455 = vst [vmem:[%s1451 + $0x8] sm:$0xff] %v1454
        %v1456 = vld [vmem:[%s1450 + $0x10] sm:$0xff]
        %1457 = vst [vmem:[%s1451 + $0x10] sm:$0xff] %v1456
        %v1458 = vld [vmem:[%s1450 + $0x18] sm:$0xff]
        %1459 = vst [vmem:[%s1451 + $0x18] sm:$0xff] %v1458
        %v1460 = vld [vmem:[%s1450 + $0x20] sm:$0xff]
        %1461 = vst [vmem:[%s1451 + $0x20] sm:$0xff] %v1460
        %v1462 = vld [vmem:[%s1450 + $0x28] sm:$0xff]
        %1463 = vst [vmem:[%s1451 + $0x28] sm:$0xff] %v1462
        %v1464 = vld [vmem:[%s1450 + $0x30] sm:$0xff]
        %1465 = vst [vmem:[%s1451 + $0x30] sm:$0xff] %v1464
        %v1466 = vld [vmem:[%s1450 + $0x38] sm:$0xff]
        %1467 = vst [vmem:[%s1451 + $0x38] sm:$0xff] %v1466
        %v1468 = vld [vmem:[%s1450 + $0x40] sm:$0xff]
        %1469 = vst [vmem:[%s1451 + $0x40] sm:$0xff] %v1468
        %v1470 = vld [vmem:[%s1450 + $0x48] sm:$0xff]
        %1471 = vst [vmem:[%s1451 + $0x48] sm:$0xff] %v1470
        %v1472 = vld [vmem:[%s1450 + $0x50] sm:$0xff]
        %1473 = vst [vmem:[%s1451 + $0x50] sm:$0xff] %v1472
        %v1474 = vld [vmem:[%s1450 + $0x58] sm:$0xff]
        %1475 = vst [vmem:[%s1451 + $0x58] sm:$0xff] %v1474
        %v1476 = vld [vmem:[%s1450 + $0x60] sm:$0xff]
        %1477 = vst [vmem:[%s1451 + $0x60] sm:$0xff] %v1476
        %v1478 = vld [vmem:[%s1450 + $0x68] sm:$0xff]
        %1479 = vst [vmem:[%s1451 + $0x68] sm:$0xff] %v1478
        %v1480 = vld [vmem:[%s1450 + $0x70] sm:$0xff]
        %1481 = vst [vmem:[%s1451 + $0x70] sm:$0xff] %v1480
        %v1482 = vld [vmem:[%s1450 + $0x78] sm:$0xff]
        %1483 = vst [vmem:[%s1451 + $0x78] sm:$0xff] %v1482
      $region143: #{forward.3} parent=137 // loop_footer
        %s1449 = sadd.s32 1, %s1445
      $region144: #{forward.3} parent=137 // loop_footer_branch
        %1444 = sbr.rel target = $region140
      $region145: #{forward.3} parent=137 // loop_exit
        _
    $region138: #{forward.3} parent=122 // pred_fallthru
      _
    %p1484 = pneg %p1440
    // Predicated region
    $region146: #{forward.3} parent=122 // pred_check
      _
    $region147: #{forward.3} parent=122 // pred_check_branch
      %1486 = sbr.rel (%p1440) target = $region149
    $region148: #{forward.3} parent=122 // pred_region
      %s1487 = sand.u32 128, 7
    $region149: #{forward.3} parent=122 // pred_fallthru
      _
  $region123: #{forward.3} parent=0 // pred_fallthru
    _
  // Predicated region
  $region124: #{forward.3} parent=0 // pred_check
    %p1425 = pneg %p1421
  $region125: #{forward.3} parent=0 // pred_check_branch
    %1427 = sbr.rel (%p1425) target = $region127
  $region126: #{forward.3} parent=0 // pred_region
    %s1428 = sshllo.u32 0, 128
    loop: start=0, step=1, limit=1
    $region128: #{forward.3} parent=126 // loop_pre_header
      _
    $region129: #{forward.3} parent=126 // loop_header
      %s1430 = sphi 0, %s1434
      %p1431 = scmp.ge.s32.totalorder %s1430, 1
      %s1435 = sphi %s13, %s13
      %s1436 = sphi [#allocation4], [#allocation4]
    $region130: #{forward.3} parent=126 // loop_header_branch
      %1433 = sbr.rel (%p1431) target = $region134
    $region131: #{forward.3} parent=126 // loop_body
      %v1437 = vld [vmem:[%s1435] sm:%s1428]
      %1438 = vst [vmem:[%s1436] sm:%s1428] %v1437
    $region132: #{forward.3} parent=126 // loop_footer
      %s1434 = sadd.s32 1, %s1430
    $region133: #{forward.3} parent=126 // loop_footer_branch
      %1429 = sbr.rel target = $region129
    $region134: #{forward.3} parent=126 // loop_exit
      _
  $region127: #{forward.3} parent=0 // pred_fallthru
    _
  // Predicated region
  $region150: #{forward.3} parent=0 // pred_check
    _
  $region151: #{forward.3} parent=0 // pred_check_branch
    %1490 = sbr.rel (0) target = $region153
  $region152: #{forward.3} parent=0 // pred_region
    %1491 = vsyncadd %s1419, 2048
  $region153: #{forward.3} parent=0 // pred_fallthru
    _
  %v1492 = vld [vmem:[%s0] sm:$0xff]
  %v1493 = vld [vmem:[%s0 + $0x8] sm:$0xf]
  %v1494 = vld [vmem:[%s1] sm:$0xff]
  %v1495 = vld [vmem:[%s1 + $0x8] sm:$0xf]
  %vm1496 = vcmask 121856
  %v1497 = vsel %vm1496, %v1492, 0.0
  %vm1498 = vcmask 117760
  %v1499 = vsel %vm1498, %v1493, 0.0
  %v1500 = vadd.f32 %v1497, %v1499
  %v1501 = vrot.slane %v1500, 4
  %v1502 = vadd.f32 %v1500, %v1501
  %v1503 = vrot.slane %v1502, 2
  %v1504 = vadd.f32 %v1502, %v1503
  %v1505 = vrot.slane %v1504, 1
  %v1506 = vadd.f32 %v1504, %v1505
  %v1507 = vrcp.pop 12.0
  %v1508 = vmul.f32 %v1506, %v1507
  %vm1509 = vcmp.gt.f32.partialorder %v1494, 0.0
  %vm1510 = vcmp.gt.f32.partialorder %v1495, 0.0
  %v1511 = vsel %vm1509, 1, 0
  %v1512 = vsel %vm1510, 1, 0
  %1513 = vset.pattern.permute.xlu0 0
  %1514 = vperm.xlu0 %1513, %v1511
  %v1515 = vpop.permute.xlu0 %1514
  %1516 = vset.pattern.permute.xlu0 0
  %1517 = vperm.xlu0 %1516, %v1512
  %v1518 = vpop.permute.xlu0 %1517
  %vm1519 = vcmp.eq.s32.totalorder %v1515, 1
  %vm1520 = vcmp.eq.s32.totalorder %v1518, 1
  %v1521 = vsel %vm1519, %v1508, %v1492
  %v1522 = vsel %vm1520, %v1508, %v1493
  %v1523 = vld [vmem:[%s2] sm:$0xff]
  %v1524 = vld [vmem:[%s2 + $0x8] sm:$0xf]
  %s1525 = scalar_lea.vmem %s2, 16
  %v1526 = vld [vmem:[%s1525] sm:$0xff]
  %v1527 = vld [vmem:[%s1525 + $0x8] sm:$0xf]
  %vm1528 = vcmask 97280
  %v1529 = vsel %vm1528, %v1523, -inf
  %1530 = vmax.xlane.f32.xlu0 %v1529
  %v1531 = vpop.xlane.xlu0 %1530
  %vm1532 = vcmask 93184
  %v1533 = vsel %vm1532, %v1524, -inf
  %1534 = vmax.xlane.f32.xlu0 %v1533
  %v1535 = vpop.xlane.xlu0 %1534
  %vm1536 = vcmp.gt.f32.partialorder %v1531, -5e+29
  %vm1537 = vcmp.gt.f32.partialorder %v1535, -5e+29
  %v1538 = vld [vmem:[%s6] sm:$0xff]
  %v1539 = vld [vmem:[%s6 + $0x8] sm:$0xff]
  %v1540 = vld [vmem:[%s6 + $0x10] sm:$0xff]
  %v1541 = vld [vmem:[%s6 + $0x18] sm:$0xff]
  %v1542 = vld [vmem:[%s6 + $0x20] sm:$0xff]
  %v1543 = vld [vmem:[%s6 + $0x28] sm:$0x7f]
  %v1544 = vld [vmem:[%s6 + $0x30] sm:$0x7f]
  %v1545 = vld [vmem:[%s6 + $0x38] sm:$0x7f]
  %v1546 = vld [vmem:[%s6 + $0x40] sm:$0x7f]
  %v1547 = vld [vmem:[%s6 + $0x48] sm:$0x7f]
  %v1548 = vld [vmem:[%s5] ss:$8 sm:$0xf]
  %v1549 = vld [vmem:[%s5] ss:$8 sm:$0x10]
  %v1550 = vor.u32 %v1548, %v1549
  %v1552 = vlaneseq
  %v1553 = vshrl.u32 %v1552, 7
  %v1554 = vsub.s32 0, %v1553
  %v1555 = vrot.slane %v1550, %v1554
  %v1556 = vlaneseq
  %v1557 = vshrl.u32 %v1556, 7
  %v1558 = vsub.s32 1, %v1557
  %v1559 = vrot.slane %v1550, %v1558
  %v1560 = vlaneseq
  %v1561 = vshrl.u32 %v1560, 7
  %v1562 = vsub.s32 2, %v1561
  %v1563 = vrot.slane %v1550, %v1562
  %v1564 = vlaneseq
  %v1565 = vshrl.u32 %v1564, 7
  %v1566 = vsub.s32 3, %v1565
  %v1567 = vrot.slane %v1550, %v1566
  %v1568 = vlaneseq
  %v1569 = vshrl.u32 %v1568, 7
  %v1570 = vsub.s32 4, %v1569
  %v1571 = vrot.slane %v1550, %v1570
  %v1578 = vsel %vm1496, %v1521, 0
  %v1581 = vsel %vm1496, %v1522, 0
  %vm1583 = vcmask 1046528
  %v1585 = vsel %vm1583, %v1543, 0
  %v1588 = vsel %vm1583, %v1544, 0
  %v1591 = vsel %vm1583, %v1545, 0
  %v1594 = vsel %vm1583, %v1546, 0
  %v1597 = vsel %vm1583, %v1547, 0
  %1599 = vmatprep.subr.mxu0 %v1539
  %1600 = vmatpush1.msra.mxu0 %v1538
  %1601 = vmatprep.subr.mxu0 %v1588
  %1602 = vmatpush1.msra.mxu0 %v1585
  %1603 = vmatprep.subr.mxu0 0.0
  %1604 = vmatpush1.msra.mxu0 0.0
  %1605 = vmatprep.subr.mxu0 0.0
  %1606 = vmatpush1.msra.mxu0 0.0
  %1607 = vmatprep.subr.mxu0 0.0
  %1608 = vmatpush1.msra.mxu0 0.0
  %1609 = vmatprep.subr.mxu0 0.0
  %1610 = vmatpush1.msra.mxu0 0.0
  %1611 = vmatprep.subr.mxu0 0.0
  %1612 = vmatpush1.msra.mxu0 0.0
  %1613 = vmatprep.subr.mxu0 0.0
  %1614 = vmatpush1.msra.mxu0 0.0
  %1615 = vmatprep.subr.mxu0 0.0
  %1616 = vmatpush1.msra.mxu0 0.0
  %1617 = vmatprep.subr.mxu0 0.0
  %1618 = vmatpush1.msra.mxu0 0.0
  %1619 = vmatprep.subr.mxu0 0.0
  %1620 = vmatpush1.msra.mxu0 0.0
  %1621 = vmatprep.subr.mxu0 0.0
  %1622 = vmatpush1.msra.mxu0 0.0
  %1623 = vmatprep.subr.mxu0 0.0
  %1624 = vmatpush1.msra.mxu0 0.0
  %1625 = vmatprep.subr.mxu0 0.0
  %1626 = vmatpush1.msra.mxu0 0.0
  %1627 = vmatprep.subr.mxu0 0.0
  %1628 = vmatpush1.msra.mxu0 0.0
  %1629 = vmatprep.subr.mxu0 0.0
  %1630 = vmatpush1.msra.mxu0 0.0
  %1631 = vmatprep.subr.mxu0 0.0
  %1632 = vmatpush1.msra.mxu0 0.0
  %1633 = vmatprep.subr.mxu0 0.0
  %1634 = vmatpush1.msra.mxu0 0.0
  %1635 = vmatprep.subr.mxu0 0.0
  %1636 = vmatpush1.msra.mxu0 0.0
  %1637 = vmatprep.subr.mxu0 0.0
  %1638 = vmatpush1.msra.mxu0 0.0
  %1639 = vmatprep.subr.mxu0 0.0
  %1640 = vmatpush1.msra.mxu0 0.0
  %1641 = vmatprep.subr.mxu0 0.0
  %1642 = vmatpush1.msra.mxu0 0.0
  %1643 = vmatprep.subr.mxu0 0.0
  %1644 = vmatpush1.msra.mxu0 0.0
  %1645 = vmatprep.subr.mxu0 0.0
  %1646 = vmatpush1.msra.mxu0 0.0
  %1647 = vmatprep.subr.mxu0 0.0
  %1648 = vmatpush1.msra.mxu0 0.0
  %1649 = vmatprep.subr.mxu0 0.0
  %1650 = vmatpush1.msra.mxu0 0.0
  %1651 = vmatprep.subr.mxu0 0.0
  %1652 = vmatpush1.msra.mxu0 0.0
  %1653 = vmatprep.subr.mxu0 0.0
  %1654 = vmatpush1.msra.mxu0 0.0
  %1655 = vmatprep.subr.mxu0 0.0
  %1656 = vmatpush1.msra.mxu0 0.0
  %1657 = vmatprep.subr.mxu0 0.0
  %1658 = vmatpush1.msra.mxu0 0.0
  %1659 = vmatprep.subr.mxu0 0.0
  %1660 = vmatpush1.msra.mxu0 0.0
  %1661 = vmatprep.subr.mxu0 0.0
  %1662 = vmatpush1.msra.mxu0 0.0
  %1663 = vmatprep.mubr.f32.mxu0 0.0
  %1664 = vmatmul.mubr.f32.gmra.mrb[0].mxu0 %v1578
  %v1665 = vpop.f32.mrb[0].mxu0
  %v1666 = vadd.f32 %v1555, %v1665
  %v1667 = vpop.f32.mrb[0].mxu0
  %v1668 = vadd.f32 %v1559, %v1667
  %1669 = vmatprep.mubr.f32.mxu0 0.0
  %1670 = vmatmul.mubr.f32.gmra.mrb[0].mxu0 %v1581
  %v1671 = vpop.f32.mrb[0].mxu0
  %v1672 = vadd.f32 %v1555, %v1671
  %v1673 = vpop.f32.mrb[0].mxu0
  %v1674 = vadd.f32 %v1559, %v1673
  %1675 = vdwg.mxu0
  %1676 = vmatprep.subr.mxu0 %v1541
  %1677 = vmatpush1.msra.mxu0 %v1540
  %1678 = vmatprep.subr.mxu0 %v1594
  %1679 = vmatpush1.msra.mxu0 %v1591
  %1680 = vmatprep.subr.mxu0 0.0
  %1681 = vmatpush1.msra.mxu0 0.0
  %1682 = vmatprep.subr.mxu0 0.0
  %1683 = vmatpush1.msra.mxu0 0.0
  %1684 = vmatprep.subr.mxu0 0.0
  %1685 = vmatpush1.msra.mxu0 0.0
  %1686 = vmatprep.subr.mxu0 0.0
  %1687 = vmatpush1.msra.mxu0 0.0
  %1688 = vmatprep.subr.mxu0 0.0
  %1689 = vmatpush1.msra.mxu0 0.0
  %1690 = vmatprep.subr.mxu0 0.0
  %1691 = vmatpush1.msra.mxu0 0.0
  %1692 = vmatprep.subr.mxu0 0.0
  %1693 = vmatpush1.msra.mxu0 0.0
  %1694 = vmatprep.subr.mxu0 0.0
  %1695 = vmatpush1.msra.mxu0 0.0
  %1696 = vmatprep.subr.mxu0 0.0
  %1697 = vmatpush1.msra.mxu0 0.0
  %1698 = vmatprep.subr.mxu0 0.0
  %1699 = vmatpush1.msra.mxu0 0.0
  %1700 = vmatprep.subr.mxu0 0.0
  %1701 = vmatpush1.msra.mxu0 0.0
  %1702 = vmatprep.subr.mxu0 0.0
  %1703 = vmatpush1.msra.mxu0 0.0
  %1704 = vmatprep.subr.mxu0 0.0
  %1705 = vmatpush1.msra.mxu0 0.0
  %1706 = vmatprep.subr.mxu0 0.0
  %1707 = vmatpush1.msra.mxu0 0.0
  %1708 = vmatprep.subr.mxu0 0.0
  %1709 = vmatpush1.msra.mxu0 0.0
  %1710 = vmatprep.subr.mxu0 0.0
  %1711 = vmatpush1.msra.mxu0 0.0
  %1712 = vmatprep.subr.mxu0 0.0
  %1713 = vmatpush1.msra.mxu0 0.0
  %1714 = vmatprep.subr.mxu0 0.0
  %1715 = vmatpush1.msra.mxu0 0.0
  %1716 = vmatprep.subr.mxu0 0.0
  %1717 = vmatpush1.msra.mxu0 0.0
  %1718 = vmatprep.subr.mxu0 0.0
  %1719 = vmatpush1.msra.mxu0 0.0
  %1720 = vmatprep.subr.mxu0 0.0
  %1721 = vmatpush1.msra.mxu0 0.0
  %1722 = vmatprep.subr.mxu0 0.0
  %1723 = vmatpush1.msra.mxu0 0.0
  %1724 = vmatprep.subr.mxu0 0.0
  %1725 = vmatpush1.msra.mxu0 0.0
  %1726 = vmatprep.subr.mxu0 0.0
  %1727 = vmatpush1.msra.mxu0 0.0
  %1728 = vmatprep.subr.mxu0 0.0
  %1729 = vmatpush1.msra.mxu0 0.0
  %1730 = vmatprep.subr.mxu0 0.0
  %1731 = vmatpush1.msra.mxu0 0.0
  %1732 = vmatprep.subr.mxu0 0.0
  %1733 = vmatpush1.msra.mxu0 0.0
  %1734 = vmatprep.subr.mxu0 0.0
  %1735 = vmatpush1.msra.mxu0 0.0
  %1736 = vmatprep.subr.mxu0 0.0
  %1737 = vmatpush1.msra.mxu0 0.0
  %1738 = vmatprep.subr.mxu0 0.0
  %1739 = vmatpush1.msra.mxu0 0.0
  %1740 = vmatprep.mubr.f32.mxu0 0.0
  %1741 = vmatmul.mubr.f32.gmra.mrb[0].mxu0 %v1578
  %v1742 = vpop.f32.mrb[0].mxu0
  %v1743 = vadd.f32 %v1563, %v1742
  %v1744 = vpop.f32.mrb[0].mxu0
  %v1745 = vadd.f32 %v1567, %v1744
  %1746 = vmatprep.mubr.f32.mxu0 0.0
  %1747 = vmatmul.mubr.f32.gmra.mrb[0].mxu0 %v1581
  %v1748 = vpop.f32.mrb[0].mxu0
  %v1749 = vadd.f32 %v1563, %v1748
  %v1750 = vpop.f32.mrb[0].mxu0
  %v1751 = vadd.f32 %v1567, %v1750
  %1752 = vdwg.mxu0
  %1753 = vmatprep.subr.mxu0 0.0
  %1754 = vmatpush1.msra.mxu0 %v1542
  %1755 = vmatprep.subr.mxu0 0.0
  %1756 = vmatpush1.msra.mxu0 %v1597
  %1757 = vmatprep.subr.mxu0 0.0
  %1758 = vmatpush1.msra.mxu0 0.0
  %1759 = vmatprep.subr.mxu0 0.0
  %1760 = vmatpush1.msra.mxu0 0.0
  %1761 = vmatprep.subr.mxu0 0.0
  %1762 = vmatpush1.msra.mxu0 0.0
  %1763 = vmatprep.subr.mxu0 0.0
  %1764 = vmatpush1.msra.mxu0 0.0
  %1765 = vmatprep.subr.mxu0 0.0
  %1766 = vmatpush1.msra.mxu0 0.0
  %1767 = vmatprep.subr.mxu0 0.0
  %1768 = vmatpush1.msra.mxu0 0.0
  %1769 = vmatprep.subr.mxu0 0.0
  %1770 = vmatpush1.msra.mxu0 0.0
  %1771 = vmatprep.subr.mxu0 0.0
  %1772 = vmatpush1.msra.mxu0 0.0
  %1773 = vmatprep.subr.mxu0 0.0
  %1774 = vmatpush1.msra.mxu0 0.0
  %1775 = vmatprep.subr.mxu0 0.0
  %1776 = vmatpush1.msra.mxu0 0.0
  %1777 = vmatprep.subr.mxu0 0.0
  %1778 = vmatpush1.msra.mxu0 0.0
  %1779 = vmatprep.subr.mxu0 0.0
  %1780 = vmatpush1.msra.mxu0 0.0
  %1781 = vmatprep.subr.mxu0 0.0
  %1782 = vmatpush1.msra.mxu0 0.0
  %1783 = vmatprep.subr.mxu0 0.0
  %1784 = vmatpush1.msra.mxu0 0.0
  %1785 = vmatprep.subr.mxu0 0.0
  %1786 = vmatpush1.msra.mxu0 0.0
  %1787 = vmatprep.subr.mxu0 0.0
  %1788 = vmatpush1.msra.mxu0 0.0
  %1789 = vmatprep.subr.mxu0 0.0
  %1790 = vmatpush1.msra.mxu0 0.0
  %1791 = vmatprep.subr.mxu0 0.0
  %1792 = vmatpush1.msra.mxu0 0.0
  %1793 = vmatprep.subr.mxu0 0.0
  %1794 = vmatpush1.msra.mxu0 0.0
  %1795 = vmatprep.subr.mxu0 0.0
  %1796 = vmatpush1.msra.mxu0 0.0
  %1797 = vmatprep.subr.mxu0 0.0
  %1798 = vmatpush1.msra.mxu0 0.0
  %1799 = vmatprep.subr.mxu0 0.0
  %1800 = vmatpush1.msra.mxu0 0.0
  %1801 = vmatprep.subr.mxu0 0.0
  %1802 = vmatpush1.msra.mxu0 0.0
  %1803 = vmatprep.subr.mxu0 0.0
  %1804 = vmatpush1.msra.mxu0 0.0
  %1805 = vmatprep.subr.mxu0 0.0
  %1806 = vmatpush1.msra.mxu0 0.0
  %1807 = vmatprep.subr.mxu0 0.0
  %1808 = vmatpush1.msra.mxu0 0.0
  %1809 = vmatprep.subr.mxu0 0.0
  %1810 = vmatpush1.msra.mxu0 0.0
  %1811 = vmatprep.subr.mxu0 0.0
  %1812 = vmatpush1.msra.mxu0 0.0
  %1813 = vmatprep.subr.mxu0 0.0
  %1814 = vmatpush1.msra.mxu0 0.0
  %1815 = vmatprep.subr.mxu0 0.0
  %1816 = vmatpush1.msra.mxu0 0.0
  %1817 = vmatprep.mubr.f32.mxu0 0.0
  %1818 = vmatmul.mubr.f32.gmra.mrb[0].mxu0 %v1578
  %v1819 = vpop.f32.mrb[0].mxu0
  %v1820 = vadd.f32 %v1571, %v1819
  %v1821 = vpop.f32.mrb[0].mxu0
  %1822 = vmatprep.mubr.f32.mxu0 0.0
  %1823 = vmatmul.mubr.f32.gmra.mrb[0].mxu0 %v1581
  %v1824 = vpop.f32.mrb[0].mxu0
  %v1825 = vadd.f32 %v1571, %v1824
  %v1826 = vpop.f32.mrb[0].mxu0
  %1827 = vdwg.mxu0
  %1830 = vrot.lane.b32.xlu0 %v1666, 64
  %v1831 = vpop.permute.xlu0 %1830
  %1832 = vrot.lane.b32.xlu0 %v1672, 64
  %v1833 = vpop.permute.xlu0 %1832
  %vm1834 = vcmask 523264
  %v1835 = vsel %vm1834, %v1666, 0
  %v1837 = vsel %vm1834, %v1672, 0
  %v1839 = vsel %vm1834, %v1831, 0
  %v1841 = vsel %vm1834, %v1833, 0
  %1843 = vmatprep.subr.mxu0 0.0
  %1844 = vmatpush1.xpose.msra.mxu0 %v1839
  %1845 = vmatprep.subr.mxu0 0.0
  %1846 = vmatpush1.xpose.msra.mxu0 %v1841
  %1847 = vmatprep.subr.mxu0 0.0
  %1848 = vmatpush1.xpose.msra.mxu0 0.0
  %1849 = vmatprep.subr.mxu0 0.0
  %1850 = vmatpush1.xpose.msra.mxu0 0.0
  %1851 = vmatprep.subr.mxu0 0.0
  %1852 = vmatpush1.xpose.msra.mxu0 0.0
  %1853 = vmatprep.subr.mxu0 0.0
  %1854 = vmatpush1.xpose.msra.mxu0 0.0
  %1855 = vmatprep.subr.mxu0 0.0
  %1856 = vmatpush1.xpose.msra.mxu0 0.0
  %1857 = vmatprep.subr.mxu0 0.0
  %1858 = vmatpush1.xpose.msra.mxu0 0.0
  %1859 = vmatprep.subr.mxu0 0.0
  %1860 = vmatpush1.xpose.msra.mxu0 0.0
  %1861 = vmatprep.subr.mxu0 0.0
  %1862 = vmatpush1.xpose.msra.mxu0 0.0
  %1863 = vmatprep.subr.mxu0 0.0
  %1864 = vmatpush1.xpose.msra.mxu0 0.0
  %1865 = vmatprep.subr.mxu0 0.0
  %1866 = vmatpush1.xpose.msra.mxu0 0.0
  %1867 = vmatprep.subr.mxu0 0.0
  %1868 = vmatpush1.xpose.msra.mxu0 0.0
  %1869 = vmatprep.subr.mxu0 0.0
  %1870 = vmatpush1.xpose.msra.mxu0 0.0
  %1871 = vmatprep.subr.mxu0 0.0
  %1872 = vmatpush1.xpose.msra.mxu0 0.0
  %1873 = vmatprep.subr.mxu0 0.0
  %1874 = vmatpush1.xpose.msra.mxu0 0.0
  %1875 = vmatprep.subr.mxu0 0.0
  %1876 = vmatpush1.xpose.msra.mxu0 0.0
  %1877 = vmatprep.subr.mxu0 0.0
  %1878 = vmatpush1.xpose.msra.mxu0 0.0
  %1879 = vmatprep.subr.mxu0 0.0
  %1880 = vmatpush1.xpose.msra.mxu0 0.0
  %1881 = vmatprep.subr.mxu0 0.0
  %1882 = vmatpush1.xpose.msra.mxu0 0.0
  %1883 = vmatprep.subr.mxu0 0.0
  %1884 = vmatpush1.xpose.msra.mxu0 0.0
  %1885 = vmatprep.subr.mxu0 0.0
  %1886 = vmatpush1.xpose.msra.mxu0 0.0
  %1887 = vmatprep.subr.mxu0 0.0
  %1888 = vmatpush1.xpose.msra.mxu0 0.0
  %1889 = vmatprep.subr.mxu0 0.0
  %1890 = vmatpush1.xpose.msra.mxu0 0.0
  %1891 = vmatprep.subr.mxu0 0.0
  %1892 = vmatpush1.xpose.msra.mxu0 0.0
  %1893 = vmatprep.subr.mxu0 0.0
  %1894 = vmatpush1.xpose.msra.mxu0 0.0
  %1895 = vmatprep.subr.mxu0 0.0
  %1896 = vmatpush1.xpose.msra.mxu0 0.0
  %1897 = vmatprep.subr.mxu0 0.0
  %1898 = vmatpush1.xpose.msra.mxu0 0.0
  %1899 = vmatprep.subr.mxu0 0.0
  %1900 = vmatpush1.xpose.msra.mxu0 0.0
  %1901 = vmatprep.subr.mxu0 0.0
  %1902 = vmatpush1.xpose.msra.mxu0 0.0
  %1903 = vmatprep.subr.mxu0 0.0
  %1904 = vmatpush1.xpose.msra.mxu0 0.0
  %1905 = vmatprep.subr.mxu0 0.0
  %1906 = vmatpush1.xpose.msra.mxu0 0.0
  %1907 = vmatprep.mubr.f32.mxu0 0.0
  %1908 = vmatmul.mubr.f32.gmra.mrb[0].mxu0 %v1835
  %v1909 = vpop.f32.mrb[0].mxu0
  %v1910 = vadd.f32 0.0, %v1909
  %v1911 = vpop.f32.mrb[0].mxu0
  %1912 = vmatprep.mubr.f32.mxu0 0.0
  %1913 = vmatmul.mubr.f32.gmra.mrb[0].mxu0 %v1837
  %v1914 = vpop.f32.mrb[0].mxu0
  %v1915 = vadd.f32 0.0, %v1914
  %v1916 = vpop.f32.mrb[0].mxu0
  %1917 = vdwg.mxu0
  %v1918 = vmul.f32 %v1910, 0.125
  %v1919 = vmul.f32 %v1915, 0.125
  %v1920 = vadd.f32 %v1918, %v1523
  %v1921 = vadd.f32 %v1919, %v1524
  %v1922 = vsel %vm1528, %v1920, -inf
  %1923 = vmax.xlane.f32.xlu0 %v1922
  %v1924 = vpop.xlane.xlu0 %1923
  %v1925 = vsel %vm1532, %v1921, -inf
  %1926 = vmax.xlane.f32.xlu0 %v1925
  %v1927 = vpop.xlane.xlu0 %1926
  %v1928 = vsub.f32 %v1920, %v1924
  %v1929 = vsub.f32 %v1921, %v1927
  %v1930 = vmul.f32 %v1928, 1.442695
  %v1931 = vpow.pop %v1930
  %v1932 = vmul.f32 %v1929, 1.442695
  %v1933 = vpow.pop %v1932
  %v1934 = vsel %vm1528, %v1931, 0.0
  %1935 = vadd.xlane.f32.xlu0 %v1934
  %v1936 = vpop.xlane.xlu0 %1935
  %v1937 = vsel %vm1532, %v1933, 0.0
  %1938 = vadd.xlane.f32.xlu0 %v1937
  %v1939 = vpop.xlane.xlu0 %1938
  %v1940 = vrcp.pop %v1936
  %v1941 = vrcp.pop %v1939
  %v1943 = vsel %vm1528, %v1931, 0
  %v1946 = vsel %vm1528, %v1933, 0
  %vm1948 = vcmask 1043456
  %v1950 = vsel %vm1948, %v1674, 0
  %1952 = vmatprep.subr.mxu0 0.0
  %1953 = vmatpush1.msra.mxu0 %v1668
  %1954 = vmatprep.subr.mxu0 0.0
  %1955 = vmatpush1.msra.mxu0 %v1950
  %1956 = vmatprep.subr.mxu0 0.0
  %1957 = vmatpush1.msra.mxu0 0.0
  %1958 = vmatprep.subr.mxu0 0.0
  %1959 = vmatpush1.msra.mxu0 0.0
  %1960 = vmatprep.subr.mxu0 0.0
  %1961 = vmatpush1.msra.mxu0 0.0
  %1962 = vmatprep.subr.mxu0 0.0
  %1963 = vmatpush1.msra.mxu0 0.0
  %1964 = vmatprep.subr.mxu0 0.0
  %1965 = vmatpush1.msra.mxu0 0.0
  %1966 = vmatprep.subr.mxu0 0.0
  %1967 = vmatpush1.msra.mxu0 0.0
  %1968 = vmatprep.subr.mxu0 0.0
  %1969 = vmatpush1.msra.mxu0 0.0
  %1970 = vmatprep.subr.mxu0 0.0
  %1971 = vmatpush1.msra.mxu0 0.0
  %1972 = vmatprep.subr.mxu0 0.0
  %1973 = vmatpush1.msra.mxu0 0.0
  %1974 = vmatprep.subr.mxu0 0.0
  %1975 = vmatpush1.msra.mxu0 0.0
  %1976 = vmatprep.subr.mxu0 0.0
  %1977 = vmatpush1.msra.mxu0 0.0
  %1978 = vmatprep.subr.mxu0 0.0
  %1979 = vmatpush1.msra.mxu0 0.0
  %1980 = vmatprep.subr.mxu0 0.0
  %1981 = vmatpush1.msra.mxu0 0.0
  %1982 = vmatprep.subr.mxu0 0.0
  %1983 = vmatpush1.msra.mxu0 0.0
  %1984 = vmatprep.subr.mxu0 0.0
  %1985 = vmatpush1.msra.mxu0 0.0
  %1986 = vmatprep.subr.mxu0 0.0
  %1987 = vmatpush1.msra.mxu0 0.0
  %1988 = vmatprep.subr.mxu0 0.0
  %1989 = vmatpush1.msra.mxu0 0.0
  %1990 = vmatprep.subr.mxu0 0.0
  %1991 = vmatpush1.msra.mxu0 0.0
  %1992 = vmatprep.subr.mxu0 0.0
  %1993 = vmatpush1.msra.mxu0 0.0
  %1994 = vmatprep.subr.mxu0 0.0
  %1995 = vmatpush1.msra.mxu0 0.0
  %1996 = vmatprep.subr.mxu0 0.0
  %1997 = vmatpush1.msra.mxu0 0.0
  %1998 = vmatprep.subr.mxu0 0.0
  %1999 = vmatpush1.msra.mxu0 0.0
  %2000 = vmatprep.subr.mxu0 0.0
  %2001 = vmatpush1.msra.mxu0 0.0
  %2002 = vmatprep.subr.mxu0 0.0
  %2003 = vmatpush1.msra.mxu0 0.0
  %2004 = vmatprep.subr.mxu0 0.0
  %2005 = vmatpush1.msra.mxu0 0.0
  %2006 = vmatprep.subr.mxu0 0.0
  %2007 = vmatpush1.msra.mxu0 0.0
  %2008 = vmatprep.subr.mxu0 0.0
  %2009 = vmatpush1.msra.mxu0 0.0
  %2010 = vmatprep.subr.mxu0 0.0
  %2011 = vmatpush1.msra.mxu0 0.0
  %2012 = vmatprep.subr.mxu0 0.0
  %2013 = vmatpush1.msra.mxu0 0.0
  %2014 = vmatprep.subr.mxu0 0.0
  %2015 = vmatpush1.msra.mxu0 0.0
  %2016 = vmatprep.mubr.f32.mxu0 0.0
  %2017 = vmatmul.mubr.f32.gmra.mrb[0].mxu0 %v1943
  %v2018 = vpop.f32.mrb[0].mxu0
  %v2019 = vadd.f32 0.0, %v2018
  %v2020 = vpop.f32.mrb[0].mxu0
  %2021 = vmatprep.mubr.f32.mxu0 0.0
  %2022 = vmatmul.mubr.f32.gmra.mrb[0].mxu0 %v1946
  %v2023 = vpop.f32.mrb[0].mxu0
  %v2024 = vadd.f32 0.0, %v2023
  %v2025 = vpop.f32.mrb[0].mxu0
  %2026 = vdwg.mxu0
  %v2027 = vmul.f32 %v2019, %v1940
  %v2028 = vmul.f32 %v2024, %v1941
  %v2029 = vsel %vm1536, 1, 0
  %v2030 = vsel %vm1537, 1, 0
  %vm2031 = vcmp.eq.s32.totalorder %v2029, 1
  %vm2032 = vcmp.eq.s32.totalorder %v2030, 1
  %v2033 = vsel %vm2031, %v2027, 0.0
  %v2034 = vsel %vm2032, %v2028, 0.0
  %2036 = vrot.lane.b32.xlu0 %v1668, 64
  %v2037 = vpop.permute.xlu0 %2036
  %2038 = vrot.lane.b32.xlu0 %v1674, 64
  %v2039 = vpop.permute.xlu0 %2038
  %v2040 = vsel %vm1834, %v2037, 0
  %v2042 = vsel %vm1834, %v2039, 0
  %v2045 = vsel %vm1834, %v1743, 0
  %v2048 = vsel %vm1834, %v1749, 0
  %2050 = vmatprep.subr.mxu0 0.0
  %2051 = vmatpush1.xpose.msra.mxu0 %v2045
  %2052 = vmatprep.subr.mxu0 0.0
  %2053 = vmatpush1.xpose.msra.mxu0 %v2048
  %2054 = vmatprep.subr.mxu0 0.0
  %2055 = vmatpush1.xpose.msra.mxu0 0.0
  %2056 = vmatprep.subr.mxu0 0.0
  %2057 = vmatpush1.xpose.msra.mxu0 0.0
  %2058 = vmatprep.subr.mxu0 0.0
  %2059 = vmatpush1.xpose.msra.mxu0 0.0
  %2060 = vmatprep.subr.mxu0 0.0
  %2061 = vmatpush1.xpose.msra.mxu0 0.0
  %2062 = vmatprep.subr.mxu0 0.0
  %2063 = vmatpush1.xpose.msra.mxu0 0.0
  %2064 = vmatprep.subr.mxu0 0.0
  %2065 = vmatpush1.xpose.msra.mxu0 0.0
  %2066 = vmatprep.subr.mxu0 0.0
  %2067 = vmatpush1.xpose.msra.mxu0 0.0
  %2068 = vmatprep.subr.mxu0 0.0
  %2069 = vmatpush1.xpose.msra.mxu0 0.0
  %2070 = vmatprep.subr.mxu0 0.0
  %2071 = vmatpush1.xpose.msra.mxu0 0.0
  %2072 = vmatprep.subr.mxu0 0.0
  %2073 = vmatpush1.xpose.msra.mxu0 0.0
  %2074 = vmatprep.subr.mxu0 0.0
  %2075 = vmatpush1.xpose.msra.mxu0 0.0
  %2076 = vmatprep.subr.mxu0 0.0
  %2077 = vmatpush1.xpose.msra.mxu0 0.0
  %2078 = vmatprep.subr.mxu0 0.0
  %2079 = vmatpush1.xpose.msra.mxu0 0.0
  %2080 = vmatprep.subr.mxu0 0.0
  %2081 = vmatpush1.xpose.msra.mxu0 0.0
  %2082 = vmatprep.subr.mxu0 0.0
  %2083 = vmatpush1.xpose.msra.mxu0 0.0
  %2084 = vmatprep.subr.mxu0 0.0
  %2085 = vmatpush1.xpose.msra.mxu0 0.0
  %2086 = vmatprep.subr.mxu0 0.0
  %2087 = vmatpush1.xpose.msra.mxu0 0.0
  %2088 = vmatprep.subr.mxu0 0.0
  %2089 = vmatpush1.xpose.msra.mxu0 0.0
  %2090 = vmatprep.subr.mxu0 0.0
  %2091 = vmatpush1.xpose.msra.mxu0 0.0
  %2092 = vmatprep.subr.mxu0 0.0
  %2093 = vmatpush1.xpose.msra.mxu0 0.0
  %2094 = vmatprep.subr.mxu0 0.0
  %2095 = vmatpush1.xpose.msra.mxu0 0.0
  %2096 = vmatprep.subr.mxu0 0.0
  %2097 = vmatpush1.xpose.msra.mxu0 0.0
  %2098 = vmatprep.subr.mxu0 0.0
  %2099 = vmatpush1.xpose.msra.mxu0 0.0
  %2100 = vmatprep.subr.mxu0 0.0
  %2101 = vmatpush1.xpose.msra.mxu0 0.0
  %2102 = vmatprep.subr.mxu0 0.0
  %2103 = vmatpush1.xpose.msra.mxu0 0.0
  %2104 = vmatprep.subr.mxu0 0.0
  %2105 = vmatpush1.xpose.msra.mxu0 0.0
  %2106 = vmatprep.subr.mxu0 0.0
  %2107 = vmatpush1.xpose.msra.mxu0 0.0
  %2108 = vmatprep.subr.mxu0 0.0
  %2109 = vmatpush1.xpose.msra.mxu0 0.0
  %2110 = vmatprep.subr.mxu0 0.0
  %2111 = vmatpush1.xpose.msra.mxu0 0.0
  %2112 = vmatprep.subr.mxu0 0.0
  %2113 = vmatpush1.xpose.msra.mxu0 0.0
  %2114 = vmatprep.mubr.f32.mxu0 0.0
  %2115 = vmatmul.mubr.f32.gmra.mrb[0].mxu0 %v2040
  %v2116 = vpop.f32.mrb[0].mxu0
  %v2117 = vadd.f32 0.0, %v2116
  %v2118 = vpop.f32.mrb[0].mxu0
  %2119 = vmatprep.mubr.f32.mxu0 0.0
  %2120 = vmatmul.mubr.f32.gmra.mrb[0].mxu0 %v2042
  %v2121 = vpop.f32.mrb[0].mxu0
  %v2122 = vadd.f32 0.0, %v2121
  %v2123 = vpop.f32.mrb[0].mxu0
  %2124 = vdwg.mxu0
  %v2125 = vmul.f32 %v2117, 0.125
  %v2126 = vmul.f32 %v2122, 0.125
  %v2127 = vadd.f32 %v2125, %v1523
  %v2128 = vadd.f32 %v2126, %v1524
  %v2129 = vsel %vm1528, %v2127, -inf
  %2130 = vmax.xlane.f32.xlu0 %v2129
  %v2131 = vpop.xlane.xlu0 %2130
  %v2132 = vsel %vm1532, %v2128, -inf
  %2133 = vmax.xlane.f32.xlu0 %v2132
  %v2134 = vpop.xlane.xlu0 %2133
  %v2135 = vsub.f32 %v2127, %v2131
  %v2136 = vsub.f32 %v2128, %v2134
  %v2137 = vmul.f32 %v2135, 1.442695
  %v2138 = vpow.pop %v2137
  %v2139 = vmul.f32 %v2136, 1.442695
  %v2140 = vpow.pop %v2139
  %v2141 = vsel %vm1528, %v2138, 0.0
  %2142 = vadd.xlane.f32.xlu0 %v2141
  %v2143 = vpop.xlane.xlu0 %2142
  %v2144 = vsel %vm1532, %v2140, 0.0
  %2145 = vadd.xlane.f32.xlu0 %v2144
  %v2146 = vpop.xlane.xlu0 %2145
  %v2147 = vrcp.pop %v2143
  %v2148 = vrcp.pop %v2146
  %2149 = vrot.lane.b32.xlu0 %v1743, 64
  %v2150 = vpop.permute.xlu0 %2149
  %2151 = vrot.lane.b32.xlu0 %v1749, 64
  %v2152 = vpop.permute.xlu0 %2151
  %v2155 = vsel %vm1528, %v2138, 0
  %v2158 = vsel %vm1528, %v2140, 0
  %v2160 = vsel %vm1948, %v2152, 0
  %2162 = vmatprep.subr.mxu0 0.0
  %2163 = vmatpush1.msra.mxu0 %v2150
  %2164 = vmatprep.subr.mxu0 0.0
  %2165 = vmatpush1.msra.mxu0 %v2160
  %2166 = vmatprep.subr.mxu0 0.0
  %2167 = vmatpush1.msra.mxu0 0.0
  %2168 = vmatprep.subr.mxu0 0.0
  %2169 = vmatpush1.msra.mxu0 0.0
  %2170 = vmatprep.subr.mxu0 0.0
  %2171 = vmatpush1.msra.mxu0 0.0
  %2172 = vmatprep.subr.mxu0 0.0
  %2173 = vmatpush1.msra.mxu0 0.0
  %2174 = vmatprep.subr.mxu0 0.0
  %2175 = vmatpush1.msra.mxu0 0.0
  %2176 = vmatprep.subr.mxu0 0.0
  %2177 = vmatpush1.msra.mxu0 0.0
  %2178 = vmatprep.subr.mxu0 0.0
  %2179 = vmatpush1.msra.mxu0 0.0
  %2180 = vmatprep.subr.mxu0 0.0
  %2181 = vmatpush1.msra.mxu0 0.0
  %2182 = vmatprep.subr.mxu0 0.0
  %2183 = vmatpush1.msra.mxu0 0.0
  %2184 = vmatprep.subr.mxu0 0.0
  %2185 = vmatpush1.msra.mxu0 0.0
  %2186 = vmatprep.subr.mxu0 0.0
  %2187 = vmatpush1.msra.mxu0 0.0
  %2188 = vmatprep.subr.mxu0 0.0
  %2189 = vmatpush1.msra.mxu0 0.0
  %2190 = vmatprep.subr.mxu0 0.0
  %2191 = vmatpush1.msra.mxu0 0.0
  %2192 = vmatprep.subr.mxu0 0.0
  %2193 = vmatpush1.msra.mxu0 0.0
  %2194 = vmatprep.subr.mxu0 0.0
  %2195 = vmatpush1.msra.mxu0 0.0
  %2196 = vmatprep.subr.mxu0 0.0
  %2197 = vmatpush1.msra.mxu0 0.0
  %2198 = vmatprep.subr.mxu0 0.0
  %2199 = vmatpush1.msra.mxu0 0.0
  %2200 = vmatprep.subr.mxu0 0.0
  %2201 = vmatpush1.msra.mxu0 0.0
  %2202 = vmatprep.subr.mxu0 0.0
  %2203 = vmatpush1.msra.mxu0 0.0
  %2204 = vmatprep.subr.mxu0 0.0
  %2205 = vmatpush1.msra.mxu0 0.0
  %2206 = vmatprep.subr.mxu0 0.0
  %2207 = vmatpush1.msra.mxu0 0.0
  %2208 = vmatprep.subr.mxu0 0.0
  %2209 = vmatpush1.msra.mxu0 0.0
  %2210 = vmatprep.subr.mxu0 0.0
  %2211 = vmatpush1.msra.mxu0 0.0
  %2212 = vmatprep.subr.mxu0 0.0
  %2213 = vmatpush1.msra.mxu0 0.0
  %2214 = vmatprep.subr.mxu0 0.0
  %2215 = vmatpush1.msra.mxu0 0.0
  %2216 = vmatprep.subr.mxu0 0.0
  %2217 = vmatpush1.msra.mxu0 0.0
  %2218 = vmatprep.subr.mxu0 0.0
  %2219 = vmatpush1.msra.mxu0 0.0
  %2220 = vmatprep.subr.mxu0 0.0
  %2221 = vmatpush1.msra.mxu0 0.0
  %2222 = vmatprep.subr.mxu0 0.0
  %2223 = vmatpush1.msra.mxu0 0.0
  %2224 = vmatprep.subr.mxu0 0.0
  %2225 = vmatpush1.msra.mxu0 0.0
  %2226 = vmatprep.mubr.f32.mxu0 0.0
  %2227 = vmatmul.mubr.f32.gmra.mrb[0].mxu0 %v2155
  %v2228 = vpop.f32.mrb[0].mxu0
  %v2229 = vadd.f32 0.0, %v2228
  %v2230 = vpop.f32.mrb[0].mxu0
  %2231 = vmatprep.mubr.f32.mxu0 0.0
  %2232 = vmatmul.mubr.f32.gmra.mrb[0].mxu0 %v2158
  %v2233 = vpop.f32.mrb[0].mxu0
  %v2234 = vadd.f32 0.0, %v2233
  %v2235 = vpop.f32.mrb[0].mxu0
  %2236 = vdwg.mxu0
  %v2237 = vmul.f32 %v2229, %v2147
  %v2238 = vmul.f32 %v2234, %v2148
  %v2239 = vsel %vm2031, %v2237, 0.0
  %v2240 = vsel %vm2032, %v2238, 0.0
  %2243 = vrot.lane.b32.xlu0 %v2239, 64
  %v2244 = vpop.permute.xlu0 %2243
  %2245 = vrot.lane.b32.xlu0 %v2240, 64
  %v2246 = vpop.permute.xlu0 %2245
  %v2249 = vsel %vm1834, %v2033, %v2244
  %v2250 = vsel %vm1834, %v2034, %v2246
  %v2251 = vadd.f32 %v2249, %v1745
  %v2252 = vadd.f32 %v2250, %v1751
  %v2253 = vmul.f32 %v2251, 0.5
  %v2254 = vmul.f32 %v2252, 0.5
  %v2255 = vmul.f32 %v2251, 0.70710677
  %v2256 = vmul.f32 %v2252, 0.70710677
  %v2257 = verf.f32.pop %v2255
  %v2258 = verf.f32.pop %v2256
  %v2259 = vadd.f32 %v2257, 1.0
  %v2260 = vadd.f32 %v2258, 1.0
  %v2261 = vmul.f32 %v2253, %v2259
  %v2262 = vmul.f32 %v2254, %v2260
  %2263 = vadd.xlane.f32.xlu0 %v2261
  %v2264 = vpop.xlane.xlu0 %2263
  %v2265 = vsel %vm1948, %v2262, 0.0
  %2266 = vadd.xlane.f32.xlu0 %v2265
  %v2267 = vpop.xlane.xlu0 %2266
  %v2268 = vrcp.pop 128.0
  %v2269 = vmul.f32 %v2264, %v2268
  %v2270 = vmul.f32 %v2267, %v2268
  %v2271 = vsub.f32 %v2261, %v2269
  %v2272 = vsub.f32 %v2262, %v2270
  %v2273 = vmul.f32 %v2271, %v2271
  %v2274 = vmul.f32 %v2272, %v2272
  %2275 = vadd.xlane.f32.xlu0 %v2273
  %v2276 = vpop.xlane.xlu0 %2275
  %v2277 = vsel %vm1948, %v2274, 0.0
  %2278 = vadd.xlane.f32.xlu0 %v2277
  %v2279 = vpop.xlane.xlu0 %2278
  %v2280 = vmul.f32 %v2276, %v2268
  %v2281 = vmul.f32 %v2279, %v2268
  %v2282 = vadd.f32 %v2280, 1e-05
  %v2283 = vadd.f32 %v2281, 1e-05
  %v2284 = vrsqrt.pop %v2282
  %v2285 = vrsqrt.pop %v2283
  %v2286 = vmul.f32 %v2271, %v2284
  %v2287 = vmul.f32 %v2272, %v2285
  %v2288 = vld [vmem:[%s5 + $0x1] ss:$0 sm:$0xff]
  %v2289 = vmul.f32 %v2286, %v2288
  %v2290 = vmul.f32 %v2287, %v2288
  %v2291 = vld [vmem:[%s5 + $0x2] ss:$0 sm:$0xff]
  %v2292 = vadd.f32 %v2289, %v2291
  %v2293 = vadd.f32 %v2290, %v2291
  %v2294 = vmul.f32 %v1820, 0.5
  %v2295 = vmul.f32 %v1825, 0.5
  %v2296 = vmul.f32 %v1820, 0.70710677
  %v2297 = vmul.f32 %v1825, 0.70710677
  %v2298 = verf.f32.pop %v2296
  %v2299 = verf.f32.pop %v2297
  %v2300 = vadd.f32 %v2298, 1.0
  %v2301 = vadd.f32 %v2299, 1.0
  %v2302 = vmul.f32 %v2294, %v2300
  %v2303 = vmul.f32 %v2295, %v2301
  %2304 = vadd.xlane.f32.xlu0 %v2302
  %v2305 = vpop.xlane.xlu0 %2304
  %v2306 = vsel %vm1948, %v2303, 0.0
  %2307 = vadd.xlane.f32.xlu0 %v2306
  %v2308 = vpop.xlane.xlu0 %2307
  %v2309 = vmul.f32 %v2305, %v2268
  %v2310 = vmul.f32 %v2308, %v2268
  %v2311 = vsub.f32 %v2302, %v2309
  %v2312 = vsub.f32 %v2303, %v2310
  %v2313 = vmul.f32 %v2311, %v2311
  %v2314 = vmul.f32 %v2312, %v2312
  %2315 = vadd.xlane.f32.xlu0 %v2313
  %v2316 = vpop.xlane.xlu0 %2315
  %v2317 = vsel %vm1948, %v2314, 0.0
  %2318 = vadd.xlane.f32.xlu0 %v2317
  %v2319 = vpop.xlane.xlu0 %2318
  %v2320 = vmul.f32 %v2316, %v2268
  %v2321 = vmul.f32 %v2319, %v2268
  %v2322 = vadd.f32 %v2320, 1e-05
  %v2323 = vadd.f32 %v2321, 1e-05
  %v2324 = vrsqrt.pop %v2322
  %v2325 = vrsqrt.pop %v2323
  %v2326 = vmul.f32 %v2311, %v2324
  %v2327 = vmul.f32 %v2312, %v2325
  %v2328 = vld [vmem:[%s5 + $0x3] ss:$0 sm:$0xff]
  %v2329 = vmul.f32 %v2326, %v2328
  %v2330 = vmul.f32 %v2327, %v2328
  %v2331 = vld [vmem:[%s5 + $0x4] ss:$0 sm:$0xff]
  %v2332 = vadd.f32 %v2329, %v2331
  %v2333 = vadd.f32 %v2330, %v2331
  %v2334 = vadd.f32 %v2292, %v2332
  %v2335 = vadd.f32 %v2293, %v2333
  %v2336 = vsel %vm1948, %v2335, 0.0
  %v2337 = vadd.f32 %v2334, %v2336
  %v2338 = vrot.slane %v2337, 4
  %v2339 = vadd.f32 %v2337, %v2338
  %v2340 = vrot.slane %v2339, 2
  %v2341 = vadd.f32 %v2339, %v2340
  %v2342 = vrot.slane %v2341, 1
  %v2343 = vadd.f32 %v2341, %v2342
  %v2344 = vmul.f32 %v2343, %v1507
  %2345 = vset.pattern.permute.xlu0 1
  %2346 = vperm.xlu0 %2345, %v1511
  %v2347 = vpop.permute.xlu0 %2346
  %2348 = vset.pattern.permute.xlu0 1
  %2349 = vperm.xlu0 %2348, %v1512
  %v2350 = vpop.permute.xlu0 %2349
  %vm2351 = vcmp.eq.s32.totalorder %v2347, 1
  %vm2352 = vcmp.eq.s32.totalorder %v2350, 1
  %v2353 = vsel %vm2351, %v2344, %v2334
  %v2354 = vsel %vm2352, %v2344, %v2335
  %v2355 = vld [vmem:[%s7] sm:$0xff]
  %v2356 = vld [vmem:[%s7 + $0x8] sm:$0xff]
  %v2357 = vld [vmem:[%s7 + $0x10] sm:$0xff]
  %v2358 = vld [vmem:[%s7 + $0x18] sm:$0xff]
  %v2359 = vld [vmem:[%s7 + $0x20] sm:$0xff]
  %v2360 = vld [vmem:[%s7 + $0x28] sm:$0xff]
  %v2361 = vld [vmem:[%s7 + $0x30] sm:$0xff]
  %v2362 = vld [vmem:[%s7 + $0x38] sm:$0xff]
  %v2363 = vld [vmem:[%s7 + $0x40] sm:$0xff]
  %v2364 = vld [vmem:[%s7 + $0x48] sm:$0xff]
  %v2365 = vld [vmem:[%s7 + $0x50] sm:$0xff]
  %v2366 = vld [vmem:[%s7 + $0x58] sm:$0xff]
  %v2367 = vld [vmem:[%s7 + $0x60] sm:$0xff]
  %v2368 = vld [vmem:[%s7 + $0x68] sm:$0xff]
  %v2369 = vld [vmem:[%s7 + $0x70] sm:$0xff]
  %v2370 = vld [vmem:[%s7 + $0x78] sm:$0xff]
  %2371 = vmatprep.subr.mxu0 0.0
  %2372 = vmatpush1.msra.mxu0 %v2355
  %2373 = vmatprep.subr.mxu0 0.0
  %2374 = vmatpush1.msra.mxu0 %v2356
  %2375 = vmatprep.subr.mxu0 0.0
  %2376 = vmatpush1.msra.mxu0 %v2357
  %2377 = vmatprep.subr.mxu0 0.0
  %2378 = vmatpush1.msra.mxu0 %v2358
  %2379 = vmatprep.subr.mxu0 0.0
  %2380 = vmatpush1.msra.mxu0 %v2359
  %2381 = vmatprep.subr.mxu0 0.0
  %2382 = vmatpush1.msra.mxu0 %v2360
  %2383 = vmatprep.subr.mxu0 0.0
  %2384 = vmatpush1.msra.mxu0 %v2361
  %2385 = vmatprep.subr.mxu0 0.0
  %2386 = vmatpush1.msra.mxu0 %v2362
  %2387 = vmatprep.subr.mxu0 0.0
  %2388 = vmatpush1.msra.mxu0 %v2363
  %2389 = vmatprep.subr.mxu0 0.0
  %2390 = vmatpush1.msra.mxu0 %v2364
  %2391 = vmatprep.subr.mxu0 0.0
  %2392 = vmatpush1.msra.mxu0 %v2365
  %2393 = vmatprep.subr.mxu0 0.0
  %2394 = vmatpush1.msra.mxu0 %v2366
  %2395 = vmatprep.subr.mxu0 0.0
  %2396 = vmatpush1.msra.mxu0 %v2367
  %2397 = vmatprep.subr.mxu0 0.0
  %2398 = vmatpush1.msra.mxu0 %v2368
  %2399 = vmatprep.subr.mxu0 0.0
  %2400 = vmatpush1.msra.mxu0 %v2369
  %2401 = vmatprep.subr.mxu0 0.0
  %2402 = vmatpush1.msra.mxu0 %v2370
  %2403 = vmatprep.subr.mxu0 0.0
  %2404 = vmatpush1.msra.mxu0 0.0
  %2405 = vmatprep.subr.mxu0 0.0
  %2406 = vmatpush1.msra.mxu0 0.0
  %2407 = vmatprep.subr.mxu0 0.0
  %2408 = vmatpush1.msra.mxu0 0.0
  %2409 = vmatprep.subr.mxu0 0.0
  %2410 = vmatpush1.msra.mxu0 0.0
  %2411 = vmatprep.subr.mxu0 0.0
  %2412 = vmatpush1.msra.mxu0 0.0
  %2413 = vmatprep.subr.mxu0 0.0
  %2414 = vmatpush1.msra.mxu0 0.0
  %2415 = vmatprep.subr.mxu0 0.0
  %2416 = vmatpush1.msra.mxu0 0.0
  %2417 = vmatprep.subr.mxu0 0.0
  %2418 = vmatpush1.msra.mxu0 0.0
  %2419 = vmatprep.subr.mxu0 0.0
  %2420 = vmatpush1.msra.mxu0 0.0
  %2421 = vmatprep.subr.mxu0 0.0
  %2422 = vmatpush1.msra.mxu0 0.0
  %2423 = vmatprep.subr.mxu0 0.0
  %2424 = vmatpush1.msra.mxu0 0.0
  %2425 = vmatprep.subr.mxu0 0.0
  %2426 = vmatpush1.msra.mxu0 0.0
  %2427 = vmatprep.subr.mxu0 0.0
  %2428 = vmatpush1.msra.mxu0 0.0
  %2429 = vmatprep.subr.mxu0 0.0
  %2430 = vmatpush1.msra.mxu0 0.0
  %2431 = vmatprep.subr.mxu0 0.0
  %2432 = vmatpush1.msra.mxu0 0.0
  %2433 = vmatprep.subr.mxu0 0.0
  %2434 = vmatpush1.msra.mxu0 0.0
  %2435 = vmatprep.mubr.f32.mxu0 0.0
  %2436 = vmatmul.mubr.f32.gmra.mrb[0].mxu0 %v2353
  %v2437 = vpop.f32.mrb[0].mxu0
  %v2438 = vadd.f32 0.0, %v2437
  %v2439 = vpop.f32.mrb[0].mxu0
  %2440 = vmatprep.mubr.f32.mxu0 0.0
  %2441 = vmatmul.mubr.f32.gmra.mrb[0].mxu0 %v2354
  %v2442 = vpop.f32.mrb[0].mxu0
  %v2443 = vadd.f32 0.0, %v2442
  %v2444 = vpop.f32.mrb[0].mxu0
  %2445 = vdwg.mxu0
  %2448 = vrot.lane.b32.xlu0 %v2438, 64
  %v2449 = vpop.permute.xlu0 %2448
  %2450 = vrot.lane.b32.xlu0 %v2443, 64
  %v2451 = vpop.permute.xlu0 %2450
  %vm2454 = vcmask 7168
  %v2455 = vsel %vm2454, %v2449, 1.0
  %v2456 = vsel %vm2454, %v2451, 1.0
  %v2457 = vsel %vm2454, 1.0, %v2449
  %v2458 = vsel %vm2454, 1.0, %v2451
  %vm2459 = vcmask 15360
  %v2461 = vsel %vm2459, %v2455, 0
  %v2464 = vsel %vm2459, %v2456, 0
  %v2467 = vsel %vm2459, %v2457, 0
  %v2470 = vsel %vm2459, %v2458, 0
  %2472 = vmatprep.subr.mxu0 0.0
  %2473 = vmatpush1.xpose.msra.mxu0 %v2467
  %2474 = vmatprep.subr.mxu0 0.0
  %2475 = vmatpush1.xpose.msra.mxu0 %v2470
  %2476 = vmatprep.subr.mxu0 0.0
  %2477 = vmatpush1.xpose.msra.mxu0 0.0
  %2478 = vmatprep.subr.mxu0 0.0
  %2479 = vmatpush1.xpose.msra.mxu0 0.0
  %2480 = vmatprep.subr.mxu0 0.0
  %2481 = vmatpush1.xpose.msra.mxu0 0.0
  %2482 = vmatprep.subr.mxu0 0.0
  %2483 = vmatpush1.xpose.msra.mxu0 0.0
  %2484 = vmatprep.subr.mxu0 0.0
  %2485 = vmatpush1.xpose.msra.mxu0 0.0
  %2486 = vmatprep.subr.mxu0 0.0
  %2487 = vmatpush1.xpose.msra.mxu0 0.0
  %2488 = vmatprep.subr.mxu0 0.0
  %2489 = vmatpush1.xpose.msra.mxu0 0.0
  %2490 = vmatprep.subr.mxu0 0.0
  %2491 = vmatpush1.xpose.msra.mxu0 0.0
  %2492 = vmatprep.subr.mxu0 0.0
  %2493 = vmatpush1.xpose.msra.mxu0 0.0
  %2494 = vmatprep.subr.mxu0 0.0
  %2495 = vmatpush1.xpose.msra.mxu0 0.0
  %2496 = vmatprep.subr.mxu0 0.0
  %2497 = vmatpush1.xpose.msra.mxu0 0.0
  %2498 = vmatprep.subr.mxu0 0.0
  %2499 = vmatpush1.xpose.msra.mxu0 0.0
  %2500 = vmatprep.subr.mxu0 0.0
  %2501 = vmatpush1.xpose.msra.mxu0 0.0
  %2502 = vmatprep.subr.mxu0 0.0
  %2503 = vmatpush1.xpose.msra.mxu0 0.0
  %2504 = vmatprep.subr.mxu0 0.0
  %2505 = vmatpush1.xpose.msra.mxu0 0.0
  %2506 = vmatprep.subr.mxu0 0.0
  %2507 = vmatpush1.xpose.msra.mxu0 0.0
  %2508 = vmatprep.subr.mxu0 0.0
  %2509 = vmatpush1.xpose.msra.mxu0 0.0
  %2510 = vmatprep.subr.mxu0 0.0
  %2511 = vmatpush1.xpose.msra.mxu0 0.0
  %2512 = vmatprep.subr.mxu0 0.0
  %2513 = vmatpush1.xpose.msra.mxu0 0.0
  %2514 = vmatprep.subr.mxu0 0.0
  %2515 = vmatpush1.xpose.msra.mxu0 0.0
  %2516 = vmatprep.subr.mxu0 0.0
  %2517 = vmatpush1.xpose.msra.mxu0 0.0
  %2518 = vmatprep.subr.mxu0 0.0
  %2519 = vmatpush1.xpose.msra.mxu0 0.0
  %2520 = vmatprep.subr.mxu0 0.0
  %2521 = vmatpush1.xpose.msra.mxu0 0.0
  %2522 = vmatprep.subr.mxu0 0.0
  %2523 = vmatpush1.xpose.msra.mxu0 0.0
  %2524 = vmatprep.subr.mxu0 0.0
  %2525 = vmatpush1.xpose.msra.mxu0 0.0
  %2526 = vmatprep.subr.mxu0 0.0
  %2527 = vmatpush1.xpose.msra.mxu0 0.0
  %2528 = vmatprep.subr.mxu0 0.0
  %2529 = vmatpush1.xpose.msra.mxu0 0.0
  %2530 = vmatprep.subr.mxu0 0.0
  %2531 = vmatpush1.xpose.msra.mxu0 0.0
  %2532 = vmatprep.subr.mxu0 0.0
  %2533 = vmatpush1.xpose.msra.mxu0 0.0
  %2534 = vmatprep.subr.mxu0 0.0
  %2535 = vmatpush1.xpose.msra.mxu0 0.0
  %2536 = vmatprep.mubr.f32.mxu0 0.0
  %2537 = vmatmul.mubr.f32.gmra.mrb[0].mxu0 %v2461
  %v2538 = vpop.f32.mrb[0].mxu0
  %v2539 = vadd.f32 0.0, %v2538
  %v2540 = vpop.f32.mrb[0].mxu0
  %2541 = vmatprep.mubr.f32.mxu0 0.0
  %2542 = vmatmul.mubr.f32.gmra.mrb[0].mxu0 %v2464
  %v2543 = vpop.f32.mrb[0].mxu0
  %v2544 = vadd.f32 0.0, %v2543
  %v2545 = vpop.f32.mrb[0].mxu0
  %2546 = vdwg.mxu0
  %vm2547 = vcmp.ge.f32.partialorder %v2539, 0.0
  %vm2548 = vcmp.ge.f32.partialorder %v2544, 0.0
  %v2549 = vmul.f32 %v2539, 0.2
  %v2550 = vmul.f32 %v2544, 0.2
  %v2551 = vsel %vm2547, %v2539, %v2549
  %v2552 = vsel %vm2548, %v2544, %v2550
  %v2553 = vadd.f32 %v2551, %v1526
  %v2554 = vadd.f32 %v2552, %v1527
  %v2555 = vsel %vm1528, %v2553, -inf
  %2556 = vmax.xlane.f32.xlu0 %v2555
  %v2557 = vpop.xlane.xlu0 %2556
  %v2558 = vsel %vm1532, %v2554, -inf
  %2559 = vmax.xlane.f32.xlu0 %v2558
  %v2560 = vpop.xlane.xlu0 %2559
  %v2561 = vsub.f32 %v2553, %v2557
  %v2562 = vsub.f32 %v2554, %v2560
  %v2563 = vmul.f32 %v2561, 1.442695
  %v2564 = vpow.pop %v2563
  %v2565 = vmul.f32 %v2562, 1.442695
  %v2566 = vpow.pop %v2565
  %v2567 = vsel %vm1528, %v2564, 0.0
  %2568 = vadd.xlane.f32.xlu0 %v2567
  %v2569 = vpop.xlane.xlu0 %2568
  %v2570 = vsel %vm1532, %v2566, 0.0
  %2571 = vadd.xlane.f32.xlu0 %v2570
  %v2572 = vpop.xlane.xlu0 %2571
  %v2573 = vrcp.pop %v2569
  %v2574 = vrcp.pop %v2572
  %v2576 = vsel %vm1528, %v2564, 0
  %v2579 = vsel %vm1528, %v2566, 0
  %v2581 = vsel %vm1948, %v2443, 0
  %2583 = vmatprep.subr.mxu0 0.0
  %2584 = vmatpush1.msra.mxu0 %v2438
  %2585 = vmatprep.subr.mxu0 0.0
  %2586 = vmatpush1.msra.mxu0 %v2581
  %2587 = vmatprep.subr.mxu0 0.0
  %2588 = vmatpush1.msra.mxu0 0.0
  %2589 = vmatprep.subr.mxu0 0.0
  %2590 = vmatpush1.msra.mxu0 0.0
  %2591 = vmatprep.subr.mxu0 0.0
  %2592 = vmatpush1.msra.mxu0 0.0
  %2593 = vmatprep.subr.mxu0 0.0
  %2594 = vmatpush1.msra.mxu0 0.0
  %2595 = vmatprep.subr.mxu0 0.0
  %2596 = vmatpush1.msra.mxu0 0.0
  %2597 = vmatprep.subr.mxu0 0.0
  %2598 = vmatpush1.msra.mxu0 0.0
  %2599 = vmatprep.subr.mxu0 0.0
  %2600 = vmatpush1.msra.mxu0 0.0
  %2601 = vmatprep.subr.mxu0 0.0
  %2602 = vmatpush1.msra.mxu0 0.0
  %2603 = vmatprep.subr.mxu0 0.0
  %2604 = vmatpush1.msra.mxu0 0.0
  %2605 = vmatprep.subr.mxu0 0.0
  %2606 = vmatpush1.msra.mxu0 0.0
  %2607 = vmatprep.subr.mxu0 0.0
  %2608 = vmatpush1.msra.mxu0 0.0
  %2609 = vmatprep.subr.mxu0 0.0
  %2610 = vmatpush1.msra.mxu0 0.0
  %2611 = vmatprep.subr.mxu0 0.0
  %2612 = vmatpush1.msra.mxu0 0.0
  %2613 = vmatprep.subr.mxu0 0.0
  %2614 = vmatpush1.msra.mxu0 0.0
  %2615 = vmatprep.subr.mxu0 0.0
  %2616 = vmatpush1.msra.mxu0 0.0
  %2617 = vmatprep.subr.mxu0 0.0
  %2618 = vmatpush1.msra.mxu0 0.0
  %2619 = vmatprep.subr.mxu0 0.0
  %2620 = vmatpush1.msra.mxu0 0.0
  %2621 = vmatprep.subr.mxu0 0.0
  %2622 = vmatpush1.msra.mxu0 0.0
  %2623 = vmatprep.subr.mxu0 0.0
  %2624 = vmatpush1.msra.mxu0 0.0
  %2625 = vmatprep.subr.mxu0 0.0
  %2626 = vmatpush1.msra.mxu0 0.0
  %2627 = vmatprep.subr.mxu0 0.0
  %2628 = vmatpush1.msra.mxu0 0.0
  %2629 = vmatprep.subr.mxu0 0.0
  %2630 = vmatpush1.msra.mxu0 0.0
  %2631 = vmatprep.subr.mxu0 0.0
  %2632 = vmatpush1.msra.mxu0 0.0
  %2633 = vmatprep.subr.mxu0 0.0
  %2634 = vmatpush1.msra.mxu0 0.0
  %2635 = vmatprep.subr.mxu0 0.0
  %2636 = vmatpush1.msra.mxu0 0.0
  %2637 = vmatprep.subr.mxu0 0.0
  %2638 = vmatpush1.msra.mxu0 0.0
  %2639 = vmatprep.subr.mxu0 0.0
  %2640 = vmatpush1.msra.mxu0 0.0
  %2641 = vmatprep.subr.mxu0 0.0
  %2642 = vmatpush1.msra.mxu0 0.0
  %2643 = vmatprep.subr.mxu0 0.0
  %2644 = vmatpush1.msra.mxu0 0.0
  %2645 = vmatprep.subr.mxu0 0.0
  %2646 = vmatpush1.msra.mxu0 0.0
  %2647 = vmatprep.mubr.f32.mxu0 0.0
  %2648 = vmatmul.mubr.f32.gmra.mrb[0].mxu0 %v2576
  %v2649 = vpop.f32.mrb[0].mxu0
  %v2650 = vadd.f32 0.0, %v2649
  %v2651 = vpop.f32.mrb[0].mxu0
  %2652 = vmatprep.mubr.f32.mxu0 0.0
  %2653 = vmatmul.mubr.f32.gmra.mrb[0].mxu0 %v2579
  %v2654 = vpop.f32.mrb[0].mxu0
  %v2655 = vadd.f32 0.0, %v2654
  %v2656 = vpop.f32.mrb[0].mxu0
  %2657 = vdwg.mxu0
  %v2658 = vmul.f32 %v2650, %v2573
  %v2659 = vmul.f32 %v2655, %v2574
  %v2660 = vld [vmem:[%s5 + $0x5] ss:$0 sm:$0xff]
  %v2661 = vadd.f32 %v2658, %v2660
  %v2662 = vadd.f32 %v2659, %v2660
  %v2663 = vld [vmem:[%s4] sm:$0x3]
  %v2665 = vsel %vm1528, %v2663, 0
  %v2668 = vsel %vm1948, %v2662, 0
  %2670 = vmatprep.subr.mxu0 0.0
  %2671 = vmatpush1.msra.mxu0 %v2661
  %2672 = vmatprep.subr.mxu0 0.0
  %2673 = vmatpush1.msra.mxu0 %v2668
  %2674 = vmatprep.subr.mxu0 0.0
  %2675 = vmatpush1.msra.mxu0 0.0
  %2676 = vmatprep.subr.mxu0 0.0
  %2677 = vmatpush1.msra.mxu0 0.0
  %2678 = vmatprep.subr.mxu0 0.0
  %2679 = vmatpush1.msra.mxu0 0.0
  %2680 = vmatprep.subr.mxu0 0.0
  %2681 = vmatpush1.msra.mxu0 0.0
  %2682 = vmatprep.subr.mxu0 0.0
  %2683 = vmatpush1.msra.mxu0 0.0
  %2684 = vmatprep.subr.mxu0 0.0
  %2685 = vmatpush1.msra.mxu0 0.0
  %2686 = vmatprep.subr.mxu0 0.0
  %2687 = vmatpush1.msra.mxu0 0.0
  %2688 = vmatprep.subr.mxu0 0.0
  %2689 = vmatpush1.msra.mxu0 0.0
  %2690 = vmatprep.subr.mxu0 0.0
  %2691 = vmatpush1.msra.mxu0 0.0
  %2692 = vmatprep.subr.mxu0 0.0
  %2693 = vmatpush1.msra.mxu0 0.0
  %2694 = vmatprep.subr.mxu0 0.0
  %2695 = vmatpush1.msra.mxu0 0.0
  %2696 = vmatprep.subr.mxu0 0.0
  %2697 = vmatpush1.msra.mxu0 0.0
  %2698 = vmatprep.subr.mxu0 0.0
  %2699 = vmatpush1.msra.mxu0 0.0
  %2700 = vmatprep.subr.mxu0 0.0
  %2701 = vmatpush1.msra.mxu0 0.0
  %2702 = vmatprep.subr.mxu0 0.0
  %2703 = vmatpush1.msra.mxu0 0.0
  %2704 = vmatprep.subr.mxu0 0.0
  %2705 = vmatpush1.msra.mxu0 0.0
  %2706 = vmatprep.subr.mxu0 0.0
  %2707 = vmatpush1.msra.mxu0 0.0
  %2708 = vmatprep.subr.mxu0 0.0
  %2709 = vmatpush1.msra.mxu0 0.0
  %2710 = vmatprep.subr.mxu0 0.0
  %2711 = vmatpush1.msra.mxu0 0.0
  %2712 = vmatprep.subr.mxu0 0.0
  %2713 = vmatpush1.msra.mxu0 0.0
  %2714 = vmatprep.subr.mxu0 0.0
  %2715 = vmatpush1.msra.mxu0 0.0
  %2716 = vmatprep.subr.mxu0 0.0
  %2717 = vmatpush1.msra.mxu0 0.0
  %2718 = vmatprep.subr.mxu0 0.0
  %2719 = vmatpush1.msra.mxu0 0.0
  %2720 = vmatprep.subr.mxu0 0.0
  %2721 = vmatpush1.msra.mxu0 0.0
  %2722 = vmatprep.subr.mxu0 0.0
  %2723 = vmatpush1.msra.mxu0 0.0
  %2724 = vmatprep.subr.mxu0 0.0
  %2725 = vmatpush1.msra.mxu0 0.0
  %2726 = vmatprep.subr.mxu0 0.0
  %2727 = vmatpush1.msra.mxu0 0.0
  %2728 = vmatprep.subr.mxu0 0.0
  %2729 = vmatpush1.msra.mxu0 0.0
  %2730 = vmatprep.subr.mxu0 0.0
  %2731 = vmatpush1.msra.mxu0 0.0
  %2732 = vmatprep.subr.mxu0 0.0
  %2733 = vmatpush1.msra.mxu0 0.0
  %2734 = vmatprep.mubr.f32.mxu0 0.0
  %2735 = vmatmul.mubr.f32.gmra.mrb[0].mxu0 %v2665
  %v2736 = vpop.f32.mrb[0].mxu0
  %v2737 = vadd.f32 0.0, %v2736
  %v2738 = vpop.f32.mrb[0].mxu0
  %2739 = vdwg.mxu0
  %vm2740 = vcmask 517120
  %v2741 = vsel %vm2740, %v2737, 0.0
  %2742 = vadd.xlane.f32.xlu0 %v2741
  %v2743 = vpop.xlane.xlu0 %2742
  %v2744 = vrcp.pop 64.0
  %v2745 = vmul.f32 %v2743, %v2744
  %v2746 = vsub.f32 %v2737, %v2745
  %v2747 = vmul.f32 %v2746, %v2746
  %v2748 = vsel %vm2740, %v2747, 0.0
  %2749 = vadd.xlane.f32.xlu0 %v2748
  %v2750 = vpop.xlane.xlu0 %2749
  %v2751 = vmul.f32 %v2750, %v2744
  %v2752 = vadd.f32 %v2751, 1e-05
  %v2753 = vrsqrt.pop %v2752
  %v2754 = vmul.f32 %v2746, %v2753
  %v2755 = vld [vmem:[%s5 + $0x6] ss:$0 sm:$0xff]
  %v2756 = vmul.f32 %v2754, %v2755
  %v2757 = vld [vmem:[%s5 + $0x7] ss:$0 sm:$0xff]
  %v2758 = vadd.f32 %v2756, %v2757
  %v2759 = vld [vmem:[%s3] sm:$0x3]
  %v2760 = vld [vmem:[%s9] sm:$0xff]
  %v2761 = vld [vmem:[%s9 + $0x8] sm:$0xff]
  %v2762 = vld [vmem:[%s9 + $0x10] sm:$0xff]
  %v2763 = vld [vmem:[%s9 + $0x18] sm:$0xff]
  %v2764 = vld [vmem:[%s5 + $0x40] ss:$0 sm:$0xff]
  %vm2765 = vcmask 261120
  %v2767 = vsel %vm2765, %v2759, 0
  %2769 = vmatprep.subr.mxu0 0.0
  %2770 = vmatpush1.msra.mxu0 %v2760
  %2771 = vmatprep.subr.mxu0 0.0
  %2772 = vmatpush1.msra.mxu0 %v2761
  %2773 = vmatprep.subr.mxu0 0.0
  %2774 = vmatpush1.msra.mxu0 %v2762
  %2775 = vmatprep.subr.mxu0 0.0
  %2776 = vmatpush1.msra.mxu0 %v2763
  %2777 = vmatprep.subr.mxu0 0.0
  %2778 = vmatpush1.msra.mxu0 0.0
  %2779 = vmatprep.subr.mxu0 0.0
  %2780 = vmatpush1.msra.mxu0 0.0
  %2781 = vmatprep.subr.mxu0 0.0
  %2782 = vmatpush1.msra.mxu0 0.0
  %2783 = vmatprep.subr.mxu0 0.0
  %2784 = vmatpush1.msra.mxu0 0.0
  %2785 = vmatprep.subr.mxu0 0.0
  %2786 = vmatpush1.msra.mxu0 0.0
  %2787 = vmatprep.subr.mxu0 0.0
  %2788 = vmatpush1.msra.mxu0 0.0
  %2789 = vmatprep.subr.mxu0 0.0
  %2790 = vmatpush1.msra.mxu0 0.0
  %2791 = vmatprep.subr.mxu0 0.0
  %2792 = vmatpush1.msra.mxu0 0.0
  %2793 = vmatprep.subr.mxu0 0.0
  %2794 = vmatpush1.msra.mxu0 0.0
  %2795 = vmatprep.subr.mxu0 0.0
  %2796 = vmatpush1.msra.mxu0 0.0
  %2797 = vmatprep.subr.mxu0 0.0
  %2798 = vmatpush1.msra.mxu0 0.0
  %2799 = vmatprep.subr.mxu0 0.0
  %2800 = vmatpush1.msra.mxu0 0.0
  %2801 = vmatprep.subr.mxu0 0.0
  %2802 = vmatpush1.msra.mxu0 0.0
  %2803 = vmatprep.subr.mxu0 0.0
  %2804 = vmatpush1.msra.mxu0 0.0
  %2805 = vmatprep.subr.mxu0 0.0
  %2806 = vmatpush1.msra.mxu0 0.0
  %2807 = vmatprep.subr.mxu0 0.0
  %2808 = vmatpush1.msra.mxu0 0.0
  %2809 = vmatprep.subr.mxu0 0.0
  %2810 = vmatpush1.msra.mxu0 0.0
  %2811 = vmatprep.subr.mxu0 0.0
  %2812 = vmatpush1.msra.mxu0 0.0
  %2813 = vmatprep.subr.mxu0 0.0
  %2814 = vmatpush1.msra.mxu0 0.0
  %2815 = vmatprep.subr.mxu0 0.0
  %2816 = vmatpush1.msra.mxu0 0.0
  %2817 = vmatprep.subr.mxu0 0.0
  %2818 = vmatpush1.msra.mxu0 0.0
  %2819 = vmatprep.subr.mxu0 0.0
  %2820 = vmatpush1.msra.mxu0 0.0
  %2821 = vmatprep.subr.mxu0 0.0
  %2822 = vmatpush1.msra.mxu0 0.0
  %2823 = vmatprep.subr.mxu0 0.0
  %2824 = vmatpush1.msra.mxu0 0.0
  %2825 = vmatprep.subr.mxu0 0.0
  %2826 = vmatpush1.msra.mxu0 0.0
  %2827 = vmatprep.subr.mxu0 0.0
  %2828 = vmatpush1.msra.mxu0 0.0
  %2829 = vmatprep.subr.mxu0 0.0
  %2830 = vmatpush1.msra.mxu0 0.0
  %2831 = vmatprep.subr.mxu0 0.0
  %2832 = vmatpush1.msra.mxu0 0.0
  %2833 = vmatprep.mubr.f32.mxu0 0.0
  %2834 = vmatmul.mubr.f32.gmra.mrb[0].mxu0 %v2767
  %v2835 = vpop.f32.mrb[0].mxu0
  %v2836 = vadd.f32 %v2764, %v2835
  %v2837 = vpop.f32.mrb[0].mxu0
  %2838 = vdwg.mxu0
  %v2839 = vsel %vm2740, %v2836, 0.0
  %2840 = vadd.xlane.f32.xlu0 %v2839
  %v2841 = vpop.xlane.xlu0 %2840
  %v2842 = vmul.f32 %v2841, %v2744
  %v2843 = vsub.f32 %v2836, %v2842
  %v2844 = vmul.f32 %v2843, %v2843
  %v2845 = vsel %vm2740, %v2844, 0.0
  %2846 = vadd.xlane.f32.xlu0 %v2845
  %v2847 = vpop.xlane.xlu0 %2846
  %v2848 = vmul.f32 %v2847, %v2744
  %v2849 = vadd.f32 %v2848, 1e-05
  %v2850 = vrsqrt.pop %v2849
  %v2851 = vmul.f32 %v2843, %v2850
  %v2852 = vld [vmem:[%s5 + $0x41] ss:$0 sm:$0xff]
  %v2853 = vmul.f32 %v2851, %v2852
  %v2854 = vld [vmem:[%s5 + $0x42] ss:$0 sm:$0xff]
  %v2855 = vadd.f32 %v2853, %v2854
  %v2856 = vmul.f32 %v2855, 0.5
  %v2857 = vmul.f32 %v2855, 0.70710677
  %v2858 = verf.f32.pop %v2857
  %v2859 = vadd.f32 %v2858, 1.0
  %v2860 = vmul.f32 %v2856, %v2859
  %v2861 = vld [vmem:[%s8] sm:$0xff]
  %v2862 = vld [vmem:[%s8 + $0x8] sm:$0xff]
  %v2863 = vld [vmem:[%s8 + $0x10] sm:$0xff]
  %v2864 = vld [vmem:[%s8 + $0x18] sm:$0xff]
  %v2865 = vld [vmem:[%s8 + $0x20] sm:$0xff]
  %v2866 = vld [vmem:[%s8 + $0x28] sm:$0xff]
  %v2867 = vld [vmem:[%s8 + $0x30] sm:$0xff]
  %v2868 = vld [vmem:[%s8 + $0x38] sm:$0xff]
  %v2869 = vld [vmem:[%s5 + $0x43] ss:$0 sm:$0xff]
  %v2871 = vsel %vm1834, %v2758, 0
  %2873 = vmatprep.subr.mxu0 0.0
  %2874 = vmatpush1.msra.mxu0 %v2861
  %2875 = vmatprep.subr.mxu0 0.0
  %2876 = vmatpush1.msra.mxu0 %v2862
  %2877 = vmatprep.subr.mxu0 0.0
  %2878 = vmatpush1.msra.mxu0 %v2863
  %2879 = vmatprep.subr.mxu0 0.0
  %2880 = vmatpush1.msra.mxu0 %v2864
  %2881 = vmatprep.subr.mxu0 0.0
  %2882 = vmatpush1.msra.mxu0 %v2865
  %2883 = vmatprep.subr.mxu0 0.0
  %2884 = vmatpush1.msra.mxu0 %v2866
  %2885 = vmatprep.subr.mxu0 0.0
  %2886 = vmatpush1.msra.mxu0 %v2867
  %2887 = vmatprep.subr.mxu0 0.0
  %2888 = vmatpush1.msra.mxu0 %v2868
  %2889 = vmatprep.subr.mxu0 0.0
  %2890 = vmatpush1.msra.mxu0 0.0
  %2891 = vmatprep.subr.mxu0 0.0
  %2892 = vmatpush1.msra.mxu0 0.0
  %2893 = vmatprep.subr.mxu0 0.0
  %2894 = vmatpush1.msra.mxu0 0.0
  %2895 = vmatprep.subr.mxu0 0.0
  %2896 = vmatpush1.msra.mxu0 0.0
  %2897 = vmatprep.subr.mxu0 0.0
  %2898 = vmatpush1.msra.mxu0 0.0
  %2899 = vmatprep.subr.mxu0 0.0
  %2900 = vmatpush1.msra.mxu0 0.0
  %2901 = vmatprep.subr.mxu0 0.0
  %2902 = vmatpush1.msra.mxu0 0.0
  %2903 = vmatprep.subr.mxu0 0.0
  %2904 = vmatpush1.msra.mxu0 0.0
  %2905 = vmatprep.subr.mxu0 0.0
  %2906 = vmatpush1.msra.mxu0 0.0
  %2907 = vmatprep.subr.mxu0 0.0
  %2908 = vmatpush1.msra.mxu0 0.0
  %2909 = vmatprep.subr.mxu0 0.0
  %2910 = vmatpush1.msra.mxu0 0.0
  %2911 = vmatprep.subr.mxu0 0.0
  %2912 = vmatpush1.msra.mxu0 0.0
  %2913 = vmatprep.subr.mxu0 0.0
  %2914 = vmatpush1.msra.mxu0 0.0
  %2915 = vmatprep.subr.mxu0 0.0
  %2916 = vmatpush1.msra.mxu0 0.0
  %2917 = vmatprep.subr.mxu0 0.0
  %2918 = vmatpush1.msra.mxu0 0.0
  %2919 = vmatprep.subr.mxu0 0.0
  %2920 = vmatpush1.msra.mxu0 0.0
  %2921 = vmatprep.subr.mxu0 0.0
  %2922 = vmatpush1.msra.mxu0 0.0
  %2923 = vmatprep.subr.mxu0 0.0
  %2924 = vmatpush1.msra.mxu0 0.0
  %2925 = vmatprep.subr.mxu0 0.0
  %2926 = vmatpush1.msra.mxu0 0.0
  %2927 = vmatprep.subr.mxu0 0.0
  %2928 = vmatpush1.msra.mxu0 0.0
  %2929 = vmatprep.subr.mxu0 0.0
  %2930 = vmatpush1.msra.mxu0 0.0
  %2931 = vmatprep.subr.mxu0 0.0
  %2932 = vmatpush1.msra.mxu0 0.0
  %2933 = vmatprep.subr.mxu0 0.0
  %2934 = vmatpush1.msra.mxu0 0.0
  %2935 = vmatprep.subr.mxu0 0.0
  %2936 = vmatpush1.msra.mxu0 0.0
  %2937 = vmatprep.mubr.f32.mxu0 0.0
  %2938 = vmatmul.mubr.f32.gmra.mrb[0].mxu0 %v2871
  %v2939 = vpop.f32.mrb[0].mxu0
  %v2940 = vadd.f32 %v2869, %v2939
  %v2941 = vpop.f32.mrb[0].mxu0
  %2942 = vdwg.mxu0
  %v2943 = vld [vmem:[%s5 + $0x44] ss:$0 sm:$0xff]
  %v2944 = vmul.f32 %v2860, %v2943
  %2946 = vrot.lane.b32.xlu0 %v2944, 64
  %v2947 = vpop.permute.xlu0 %2946
  %v2949 = vsel %vm1834, %v2940, %v2947
  %v2950 = vmul.f32 %v2949, 0.5
  %v2951 = vmul.f32 %v2758, 0.5
  %v2952 = vmul.f32 %v2949, 0.70710677
  %v2953 = vmul.f32 %v2758, 0.70710677
  %v2954 = verf.f32.pop %v2952
  %v2955 = verf.f32.pop %v2953
  %v2956 = vadd.f32 %v2954, 1.0
  %v2957 = vadd.f32 %v2955, 1.0
  %v2958 = vmul.f32 %v2950, %v2956
  %v2959 = vmul.f32 %v2951, %v2957
  %vm2960 = vcmask 1041408
  %v2961 = vsel %vm2960, %v2958, 0.0
  %v2962 = vsel %vm2740, %v2959, 0.0
  %v2963 = vadd.f32 %v2961, %v2962
  %2964 = vadd.xlane.f32.xlu0 %v2963
  %v2965 = vpop.xlane.xlu0 %2964
  %v2966 = vrcp.pop 192.0
  %v2967 = vmul.f32 %v2965, %v2966
  %v2968 = vsub.f32 %v2958, %v2967
  %v2969 = vsub.f32 %v2959, %v2967
  %v2970 = vmul.f32 %v2968, %v2968
  %v2971 = vmul.f32 %v2969, %v2969
  %v2972 = vsel %vm2960, %v2970, 0.0
  %v2973 = vsel %vm2740, %v2971, 0.0
  %v2974 = vadd.f32 %v2972, %v2973
  %2975 = vadd.xlane.f32.xlu0 %v2974
  %v2976 = vpop.xlane.xlu0 %2975
  %v2977 = vmul.f32 %v2976, %v2966
  %v2978 = vadd.f32 %v2977, 1e-05
  %v2979 = vrsqrt.pop %v2978
  %v2980 = vmul.f32 %v2968, %v2979
  %v2981 = vmul.f32 %v2969, %v2979
  %s2982 = scalar_lea.vmem %s5, 69
  %v2983 = vld [vmem:[%s2982] ss:$8 sm:$0x3]
  %v2985 = vlaneseq
  %v2986 = vshrl.u32 %v2985, 7
  %v2987 = vsub.s32 0, %v2986
  %v2988 = vrot.slane %v2983, %v2987
  %v2989 = vlaneseq
  %v2990 = vshrl.u32 %v2989, 7
  %v2991 = vsub.s32 1, %v2990
  %v2992 = vrot.slane %v2983, %v2991
  %v2995 = vmul.f32 %v2980, %v2988
  %v2996 = vmul.f32 %v2981, %v2992
  %s2997 = scalar_lea.vmem %s5, 70
  %v2998 = vld [vmem:[%s2997] ss:$8 sm:$0x3]
  %v3000 = vlaneseq
  %v3001 = vshrl.u32 %v3000, 7
  %v3002 = vsub.s32 0, %v3001
  %v3003 = vrot.slane %v2998, %v3002
  %v3004 = vlaneseq
  %v3005 = vshrl.u32 %v3004, 7
  %v3006 = vsub.s32 1, %v3005
  %v3007 = vrot.slane %v2998, %v3006
  %v3010 = vadd.f32 %v2995, %v3003
  %v3011 = vadd.f32 %v2996, %v3007
  %s3012 = smul.u32 4, 24
  %s3013 = smul.u32 %s3012, 8
  %s3014 = sshll.u32 %s3013, 4
  %3015 = dma.done [#allocation5], %s3014
  %v3016 = vpack.c.bf16 %v3010, %v3010
  %v3017 = vpack.c.bf16 %v3011, %v3011
  %v3018 = vld [vmem:[#allocation2] sm:$0xff]
  %v3019 = vld [vmem:[#allocation2 + $0x8] sm:$0xff]
  %v3020 = vld [vmem:[#allocation2 + $0x10] sm:$0xff]
  %v3021 = vld [vmem:[#allocation2 + $0x18] sm:$0xff]
  %v3022 = vld [vmem:[#allocation2 + $0x20] sm:$0xff]
  %v3023 = vld [vmem:[#allocation2 + $0x28] sm:$0xff]
  %v3024 = vld [vmem:[#allocation2 + $0x30] sm:$0xff]
  %v3025 = vld [vmem:[#allocation2 + $0x38] sm:$0xff]
  %v3026 = vld [vmem:[#allocation2 + $0x40] sm:$0xff]
  %v3027 = vld [vmem:[#allocation2 + $0x48] sm:$0xff]
  %v3028 = vld [vmem:[#allocation2 + $0x50] sm:$0xff]
  %v3029 = vld [vmem:[#allocation2 + $0x58] sm:$0xff]
  %v3030 = vld [vmem:[#allocation2 + $0x60] sm:$0xff]
  %v3031 = vld [vmem:[#allocation2 + $0x68] sm:$0xff]
  %v3032 = vld [vmem:[#allocation2 + $0x70] sm:$0xff]
  %v3033 = vld [vmem:[#allocation2 + $0x78] sm:$0xff]
  %v3034 = vld [vmem:[#allocation2 + $0x80] sm:$0xff]
  %v3035 = vld [vmem:[#allocation2 + $0x88] sm:$0xff]
  %v3036 = vld [vmem:[#allocation2 + $0x90] sm:$0xff]
  %v3037 = vld [vmem:[#allocation2 + $0x98] sm:$0xff]
  %v3038 = vld [vmem:[#allocation2 + $0xa0] sm:$0xff]
  %v3039 = vld [vmem:[#allocation2 + $0xa8] sm:$0xff]
  %v3040 = vld [vmem:[#allocation2 + $0xb0] sm:$0xff]
  %v3041 = vld [vmem:[#allocation2 + $0xb8] sm:$0xff]
  %v3042 = vld [vmem:[#allocation2 + $0xc0] sm:$0xff]
  %v3043 = vld [vmem:[#allocation2 + $0xc8] sm:$0xff]
  %v3044 = vld [vmem:[#allocation2 + $0xd0] sm:$0xff]
  %v3045 = vld [vmem:[#allocation2 + $0xd8] sm:$0xff]
  %v3046 = vld [vmem:[#allocation2 + $0xe0] sm:$0xff]
  %v3047 = vld [vmem:[#allocation2 + $0xe8] sm:$0xff]
  %v3048 = vld [vmem:[#allocation2 + $0xf0] sm:$0xff]
  %v3049 = vld [vmem:[#allocation2 + $0xf8] sm:$0xff]
  %v3050 = vld [vmem:[#allocation2 + $0x100] sm:$0xff]
  %v3051 = vld [vmem:[#allocation2 + $0x108] sm:$0xff]
  %v3052 = vld [vmem:[#allocation2 + $0x110] sm:$0xff]
  %v3053 = vld [vmem:[#allocation2 + $0x118] sm:$0xff]
  %v3054 = vld [vmem:[#allocation2 + $0x120] sm:$0xff]
  %v3055 = vld [vmem:[#allocation2 + $0x128] sm:$0xff]
  %v3056 = vld [vmem:[#allocation2 + $0x130] sm:$0xff]
  %v3057 = vld [vmem:[#allocation2 + $0x138] sm:$0xff]
  %v3058 = vld [vmem:[#allocation2 + $0x140] sm:$0xff]
  %v3059 = vld [vmem:[#allocation2 + $0x148] sm:$0xff]
  %v3060 = vld [vmem:[#allocation2 + $0x150] sm:$0xff]
  %v3061 = vld [vmem:[#allocation2 + $0x158] sm:$0xff]
  %v3062 = vld [vmem:[#allocation2 + $0x160] sm:$0xff]
  %v3063 = vld [vmem:[#allocation2 + $0x168] sm:$0xff]
  %v3064 = vld [vmem:[#allocation2 + $0x170] sm:$0xff]
  %v3065 = vld [vmem:[#allocation2 + $0x178] sm:$0xff]
  %v3066 = vld [vmem:[#allocation2 + $0x180] sm:$0xff]
  %v3067 = vld [vmem:[#allocation2 + $0x188] sm:$0xff]
  %v3068 = vld [vmem:[#allocation2 + $0x190] sm:$0xff]
  %v3069 = vld [vmem:[#allocation2 + $0x198] sm:$0xff]
  %v3070 = vld [vmem:[#allocation2 + $0x1a0] sm:$0xff]
  %v3071 = vld [vmem:[#allocation2 + $0x1a8] sm:$0xff]
  %v3072 = vld [vmem:[#allocation2 + $0x1b0] sm:$0xff]
  %v3073 = vld [vmem:[#allocation2 + $0x1b8] sm:$0xff]
  %v3074 = vld [vmem:[#allocation2 + $0x1c0] sm:$0xff]
  %v3075 = vld [vmem:[#allocation2 + $0x1c8] sm:$0xff]
  %v3076 = vld [vmem:[#allocation2 + $0x1d0] sm:$0xff]
  %v3077 = vld [vmem:[#allocation2 + $0x1d8] sm:$0xff]
  %v3078 = vld [vmem:[#allocation2 + $0x1e0] sm:$0xff]
  %v3079 = vld [vmem:[#allocation2 + $0x1e8] sm:$0xff]
  %v3080 = vld [vmem:[#allocation2 + $0x1f0] sm:$0xff]
  %v3081 = vld [vmem:[#allocation2 + $0x1f8] sm:$0xff]
  %v3082 = vld [vmem:[#allocation2 + $0x200] sm:$0xff]
  %v3083 = vld [vmem:[#allocation2 + $0x208] sm:$0xff]
  %v3084 = vld [vmem:[#allocation2 + $0x210] sm:$0xff]
  %v3085 = vld [vmem:[#allocation2 + $0x218] sm:$0xff]
  %v3086 = vld [vmem:[#allocation2 + $0x220] sm:$0xff]
  %v3087 = vld [vmem:[#allocation2 + $0x228] sm:$0xff]
  %v3088 = vld [vmem:[#allocation2 + $0x230] sm:$0xff]
  %v3089 = vld [vmem:[#allocation2 + $0x238] sm:$0xff]
  %v3090 = vld [vmem:[#allocation2 + $0x240] sm:$0xff]
  %v3091 = vld [vmem:[#allocation2 + $0x248] sm:$0xff]
  %v3092 = vld [vmem:[#allocation2 + $0x250] sm:$0xff]
  %v3093 = vld [vmem:[#allocation2 + $0x258] sm:$0xff]
  %v3094 = vld [vmem:[#allocation2 + $0x260] sm:$0xff]
  %v3095 = vld [vmem:[#allocation2 + $0x268] sm:$0xff]
  %v3096 = vld [vmem:[#allocation2 + $0x270] sm:$0xff]
  %v3097 = vld [vmem:[#allocation2 + $0x278] sm:$0xff]
  %v3098 = vld [vmem:[#allocation2 + $0x280] sm:$0xff]
  %v3099 = vld [vmem:[#allocation2 + $0x288] sm:$0xff]
  %v3100 = vld [vmem:[#allocation2 + $0x290] sm:$0xff]
  %v3101 = vld [vmem:[#allocation2 + $0x298] sm:$0xff]
  %v3102 = vld [vmem:[#allocation2 + $0x2a0] sm:$0xff]
  %v3103 = vld [vmem:[#allocation2 + $0x2a8] sm:$0xff]
  %v3104 = vld [vmem:[#allocation2 + $0x2b0] sm:$0xff]
  %v3105 = vld [vmem:[#allocation2 + $0x2b8] sm:$0xff]
  %v3106 = vld [vmem:[#allocation2 + $0x2c0] sm:$0xff]
  %v3107 = vld [vmem:[#allocation2 + $0x2c8] sm:$0xff]
  %v3108 = vld [vmem:[#allocation2 + $0x2d0] sm:$0xff]
  %v3109 = vld [vmem:[#allocation2 + $0x2d8] sm:$0xff]
  %v3110 = vld [vmem:[#allocation2 + $0x2e0] sm:$0xff]
  %v3111 = vld [vmem:[#allocation2 + $0x2e8] sm:$0xff]
  %v3112 = vld [vmem:[#allocation2 + $0x2f0] sm:$0xff]
  %v3113 = vld [vmem:[#allocation2 + $0x2f8] sm:$0xff]
  %s3114 = scalar_lea.vmem %s5, 71
  %v3115 = vld [vmem:[%s3114] ss:$8 sm:$0xf]
  %v3116 = vld [vmem:[%s3114] ss:$8 sm:$0xf0]
  %v3117 = vor.u32 %v3115, %v3116
  %v3119 = vlaneseq
  %v3120 = vshrl.u32 %v3119, 7
  %v3121 = vsub.s32 0, %v3120
  %v3122 = vrot.slane %v3117, %v3121
  %v3123 = vlaneseq
  %v3124 = vshrl.u32 %v3123, 7
  %v3125 = vsub.s32 1, %v3124
  %v3126 = vrot.slane %v3117, %v3125
  %v3127 = vlaneseq
  %v3128 = vshrl.u32 %v3127, 7
  %v3129 = vsub.s32 2, %v3128
  %v3130 = vrot.slane %v3117, %v3129
  %v3131 = vlaneseq
  %v3132 = vshrl.u32 %v3131, 7
  %v3133 = vsub.s32 3, %v3132
  %v3134 = vrot.slane %v3117, %v3133
  %v3135 = vlaneseq
  %v3136 = vshrl.u32 %v3135, 7
  %v3137 = vsub.s32 4, %v3136
  %v3138 = vrot.slane %v3117, %v3137
  %v3139 = vlaneseq
  %v3140 = vshrl.u32 %v3139, 7
  %v3141 = vsub.s32 5, %v3140
  %v3142 = vrot.slane %v3117, %v3141
  %v3143 = vlaneseq
  %v3144 = vshrl.u32 %v3143, 7
  %v3145 = vsub.s32 6, %v3144
  %v3146 = vrot.slane %v3117, %v3145
  %v3147 = vlaneseq
  %v3148 = vshrl.u32 %v3147, 7
  %v3149 = vsub.s32 7, %v3148
  %v3150 = vrot.slane %v3117, %v3149
  %v3160 = vsel %vm1834, %v3017, 0
  %3162 = vmatprep.subr.bf16.mxu0 %v3019
  %3163 = vmatpush1.bf16.msra.mxu0 %v3018
  %3164 = vmatprep.subr.bf16.mxu0 %v3027
  %3165 = vmatpush1.bf16.msra.mxu0 %v3026
  %3166 = vmatprep.subr.bf16.mxu0 %v3035
  %3167 = vmatpush1.bf16.msra.mxu0 %v3034
  %3168 = vmatprep.subr.bf16.mxu0 %v3043
  %3169 = vmatpush1.bf16.msra.mxu0 %v3042
  %3170 = vmatprep.subr.bf16.mxu0 %v3051
  %3171 = vmatpush1.bf16.msra.mxu0 %v3050
  %3172 = vmatprep.subr.bf16.mxu0 %v3059
  %3173 = vmatpush1.bf16.msra.mxu0 %v3058
  %3174 = vmatprep.subr.bf16.mxu0 %v3067
  %3175 = vmatpush1.bf16.msra.mxu0 %v3066
  %3176 = vmatprep.subr.bf16.mxu0 %v3075
  %3177 = vmatpush1.bf16.msra.mxu0 %v3074
  %3178 = vmatprep.subr.bf16.mxu0 %v3083
  %3179 = vmatpush1.bf16.msra.mxu0 %v3082
  %3180 = vmatprep.subr.bf16.mxu0 %v3091
  %3181 = vmatpush1.bf16.msra.mxu0 %v3090
  %3182 = vmatprep.subr.bf16.mxu0 %v3099
  %3183 = vmatpush1.bf16.msra.mxu0 %v3098
  %3184 = vmatprep.subr.bf16.mxu0 %v3107
  %3185 = vmatpush1.bf16.msra.mxu0 %v3106
  %3186 = vmatprep.subr.bf16.mxu0 0
  %3187 = vmatpush1.bf16.msra.mxu0 0
  %3188 = vmatprep.subr.bf16.mxu0 0
  %3189 = vmatpush1.bf16.msra.mxu0 0
  %3190 = vmatprep.subr.bf16.mxu0 0
  %3191 = vmatpush1.bf16.msra.mxu0 0
  %3192 = vmatprep.subr.bf16.mxu0 0
  %3193 = vmatpush1.bf16.msra.mxu0 0
  %3194 = vmatprep.mubr.bf16.mxu0 %v3160
  %3195 = vmatmul.mubr.bf16.gmra.mrb[0].mxu0 %v3016
  %v3196 = vpop.f32.mrb[0].mxu0
  %v3197 = vadd.f32 %v3122, %v3196
  %v3198 = vpop.f32.mrb[0].mxu0
  %v3199 = vadd.f32 %v3126, %v3198
  %v3200 = vpop.f32.mrb[0].mxu0
  %v3201 = vpop.f32.mrb[0].mxu0
  %3202 = vdwg.mxu0
  %3203 = vmatprep.subr.bf16.mxu0 %v3021
  %3204 = vmatpush1.bf16.msra.mxu0 %v3020
  %3205 = vmatprep.subr.bf16.mxu0 %v3029
  %3206 = vmatpush1.bf16.msra.mxu0 %v3028
  %3207 = vmatprep.subr.bf16.mxu0 %v3037
  %3208 = vmatpush1.bf16.msra.mxu0 %v3036
  %3209 = vmatprep.subr.bf16.mxu0 %v3045
  %3210 = vmatpush1.bf16.msra.mxu0 %v3044
  %3211 = vmatprep.subr.bf16.mxu0 %v3053
  %3212 = vmatpush1.bf16.msra.mxu0 %v3052
  %3213 = vmatprep.subr.bf16.mxu0 %v3061
  %3214 = vmatpush1.bf16.msra.mxu0 %v3060
  %3215 = vmatprep.subr.bf16.mxu0 %v3069
  %3216 = vmatpush1.bf16.msra.mxu0 %v3068
  %3217 = vmatprep.subr.bf16.mxu0 %v3077
  %3218 = vmatpush1.bf16.msra.mxu0 %v3076
  %3219 = vmatprep.subr.bf16.mxu0 %v3085
  %3220 = vmatpush1.bf16.msra.mxu0 %v3084
  %3221 = vmatprep.subr.bf16.mxu0 %v3093
  %3222 = vmatpush1.bf16.msra.mxu0 %v3092
  %3223 = vmatprep.subr.bf16.mxu0 %v3101
  %3224 = vmatpush1.bf16.msra.mxu0 %v3100
  %3225 = vmatprep.subr.bf16.mxu0 %v3109
  %3226 = vmatpush1.bf16.msra.mxu0 %v3108
  %3227 = vmatprep.subr.bf16.mxu0 0
  %3228 = vmatpush1.bf16.msra.mxu0 0
  %3229 = vmatprep.subr.bf16.mxu0 0
  %3230 = vmatpush1.bf16.msra.mxu0 0
  %3231 = vmatprep.subr.bf16.mxu0 0
  %3232 = vmatpush1.bf16.msra.mxu0 0
  %3233 = vmatprep.subr.bf16.mxu0 0
  %3234 = vmatpush1.bf16.msra.mxu0 0
  %3235 = vmatprep.mubr.bf16.mxu0 %v3160
  %3236 = vmatmul.mubr.bf16.gmra.mrb[0].mxu0 %v3016
  %v3237 = vpop.f32.mrb[0].mxu0
  %v3238 = vadd.f32 %v3130, %v3237
  %v3239 = vpop.f32.mrb[0].mxu0
  %v3240 = vadd.f32 %v3134, %v3239
  %v3241 = vpop.f32.mrb[0].mxu0
  %v3242 = vpop.f32.mrb[0].mxu0
  %3243 = vdwg.mxu0
  %3244 = vmatprep.subr.bf16.mxu0 %v3023
  %3245 = vmatpush1.bf16.msra.mxu0 %v3022
  %3246 = vmatprep.subr.bf16.mxu0 %v3031
  %3247 = vmatpush1.bf16.msra.mxu0 %v3030
  %3248 = vmatprep.subr.bf16.mxu0 %v3039
  %3249 = vmatpush1.bf16.msra.mxu0 %v3038
  %3250 = vmatprep.subr.bf16.mxu0 %v3047
  %3251 = vmatpush1.bf16.msra.mxu0 %v3046
  %3252 = vmatprep.subr.bf16.mxu0 %v3055
  %3253 = vmatpush1.bf16.msra.mxu0 %v3054
  %3254 = vmatprep.subr.bf16.mxu0 %v3063
  %3255 = vmatpush1.bf16.msra.mxu0 %v3062
  %3256 = vmatprep.subr.bf16.mxu0 %v3071
  %3257 = vmatpush1.bf16.msra.mxu0 %v3070
  %3258 = vmatprep.subr.bf16.mxu0 %v3079
  %3259 = vmatpush1.bf16.msra.mxu0 %v3078
  %3260 = vmatprep.subr.bf16.mxu0 %v3087
  %3261 = vmatpush1.bf16.msra.mxu0 %v3086
  %3262 = vmatprep.subr.bf16.mxu0 %v3095
  %3263 = vmatpush1.bf16.msra.mxu0 %v3094
  %3264 = vmatprep.subr.bf16.mxu0 %v3103
  %3265 = vmatpush1.bf16.msra.mxu0 %v3102
  %3266 = vmatprep.subr.bf16.mxu0 %v3111
  %3267 = vmatpush1.bf16.msra.mxu0 %v3110
  %3268 = vmatprep.subr.bf16.mxu0 0
  %3269 = vmatpush1.bf16.msra.mxu0 0
  %3270 = vmatprep.subr.bf16.mxu0 0
  %3271 = vmatpush1.bf16.msra.mxu0 0
  %3272 = vmatprep.subr.bf16.mxu0 0
  %3273 = vmatpush1.bf16.msra.mxu0 0
  %3274 = vmatprep.subr.bf16.mxu0 0
  %3275 = vmatpush1.bf16.msra.mxu0 0
  %3276 = vmatprep.mubr.bf16.mxu0 %v3160
  %3277 = vmatmul.mubr.bf16.gmra.mrb[0].mxu0 %v3016
  %v3278 = vpop.f32.mrb[0].mxu0
  %v3279 = vadd.f32 %v3138, %v3278
  %v3280 = vpop.f32.mrb[0].mxu0
  %v3281 = vadd.f32 %v3142, %v3280
  %v3282 = vpop.f32.mrb[0].mxu0
  %v3283 = vpop.f32.mrb[0].mxu0
  %3284 = vdwg.mxu0
  %3285 = vmatprep.subr.bf16.mxu0 %v3025
  %3286 = vmatpush1.bf16.msra.mxu0 %v3024
  %3287 = vmatprep.subr.bf16.mxu0 %v3033
  %3288 = vmatpush1.bf16.msra.mxu0 %v3032
  %3289 = vmatprep.subr.bf16.mxu0 %v3041
  %3290 = vmatpush1.bf16.msra.mxu0 %v3040
  %3291 = vmatprep.subr.bf16.mxu0 %v3049
  %3292 = vmatpush1.bf16.msra.mxu0 %v3048
  %3293 = vmatprep.subr.bf16.mxu0 %v3057
  %3294 = vmatpush1.bf16.msra.mxu0 %v3056
  %3295 = vmatprep.subr.bf16.mxu0 %v3065
  %3296 = vmatpush1.bf16.msra.mxu0 %v3064
  %3297 = vmatprep.subr.bf16.mxu0 %v3073
  %3298 = vmatpush1.bf16.msra.mxu0 %v3072
  %3299 = vmatprep.subr.bf16.mxu0 %v3081
  %3300 = vmatpush1.bf16.msra.mxu0 %v3080
  %3301 = vmatprep.subr.bf16.mxu0 %v3089
  %3302 = vmatpush1.bf16.msra.mxu0 %v3088
  %3303 = vmatprep.subr.bf16.mxu0 %v3097
  %3304 = vmatpush1.bf16.msra.mxu0 %v3096
  %3305 = vmatprep.subr.bf16.mxu0 %v3105
  %3306 = vmatpush1.bf16.msra.mxu0 %v3104
  %3307 = vmatprep.subr.bf16.mxu0 %v3113
  %3308 = vmatpush1.bf16.msra.mxu0 %v3112
  %3309 = vmatprep.subr.bf16.mxu0 0
  %3310 = vmatpush1.bf16.msra.mxu0 0
  %3311 = vmatprep.subr.bf16.mxu0 0
  %3312 = vmatpush1.bf16.msra.mxu0 0
  %3313 = vmatprep.subr.bf16.mxu0 0
  %3314 = vmatpush1.bf16.msra.mxu0 0
  %3315 = vmatprep.subr.bf16.mxu0 0
  %3316 = vmatpush1.bf16.msra.mxu0 0
  %3317 = vmatprep.mubr.bf16.mxu0 %v3160
  %3318 = vmatmul.mubr.bf16.gmra.mrb[0].mxu0 %v3016
  %v3319 = vpop.f32.mrb[0].mxu0
  %v3320 = vadd.f32 %v3146, %v3319
  %v3321 = vpop.f32.mrb[0].mxu0
  %v3322 = vadd.f32 %v3150, %v3321
  %v3323 = vpop.f32.mrb[0].mxu0
  %v3324 = vpop.f32.mrb[0].mxu0
  %3325 = vdwg.mxu0
  %v3326 = vmul.f32 %v3197, 0.5
  %v3327 = vmul.f32 %v3199, 0.5
  %v3328 = vmul.f32 %v3238, 0.5
  %v3329 = vmul.f32 %v3240, 0.5
  %v3330 = vmul.f32 %v3197, 0.70710677
  %v3331 = vmul.f32 %v3199, 0.70710677
  %v3332 = vmul.f32 %v3238, 0.70710677
  %v3333 = vmul.f32 %v3240, 0.70710677
  %v3334 = verf.f32.pop %v3330
  %v3335 = verf.f32.pop %v3331
  %v3336 = verf.f32.pop %v3332
  %v3337 = verf.f32.pop %v3333
  %v3338 = vadd.f32 %v3334, 1.0
  %v3339 = vadd.f32 %v3335, 1.0
  %v3340 = vadd.f32 %v3336, 1.0
  %v3341 = vadd.f32 %v3337, 1.0
  %v3342 = vmul.f32 %v3326, %v3338
  %v3343 = vmul.f32 %v3327, %v3339
  %v3344 = vmul.f32 %v3328, %v3340
  %v3345 = vmul.f32 %v3329, %v3341
  %v3346 = vsel %vm2960, %v3342, 0.0
  %v3347 = vsel %vm2960, %v3343, 0.0
  %v3348 = vadd.f32 %v3346, %v3347
  %v3349 = vsel %vm2960, %v3344, 0.0
  %v3350 = vadd.f32 %v3348, %v3349
  %v3351 = vsel %vm2960, %v3345, 0.0
  %v3352 = vadd.f32 %v3350, %v3351
  %3353 = vadd.xlane.f32.xlu0 %v3352
  %v3354 = vpop.xlane.xlu0 %3353
  %v3355 = vrcp.pop 512.0
  %v3356 = vmul.f32 %v3354, %v3355
  %v3357 = vsub.f32 %v3342, %v3356
  %v3358 = vsub.f32 %v3343, %v3356
  %v3359 = vsub.f32 %v3344, %v3356
  %v3360 = vsub.f32 %v3345, %v3356
  %v3361 = vmul.f32 %v3357, %v3357
  %v3362 = vmul.f32 %v3358, %v3358
  %v3363 = vmul.f32 %v3359, %v3359
  %v3364 = vmul.f32 %v3360, %v3360
  %v3365 = vsel %vm2960, %v3361, 0.0
  %v3366 = vsel %vm2960, %v3362, 0.0
  %v3367 = vadd.f32 %v3365, %v3366
  %v3368 = vsel %vm2960, %v3363, 0.0
  %v3369 = vadd.f32 %v3367, %v3368
  %v3370 = vsel %vm2960, %v3364, 0.0
  %v3371 = vadd.f32 %v3369, %v3370
  %3372 = vadd.xlane.f32.xlu0 %v3371
  %v3373 = vpop.xlane.xlu0 %3372
  %v3374 = vmul.f32 %v3373, %v3355
  %v3375 = vadd.f32 %v3374, 1e-05
  %v3376 = vrsqrt.pop %v3375
  %v3377 = vmul.f32 %v3357, %v3376
  %v3378 = vmul.f32 %v3358, %v3376
  %v3379 = vmul.f32 %v3359, %v3376
  %v3380 = vmul.f32 %v3360, %v3376
  %s3381 = scalar_lea.vmem %s5, 128
  %v3382 = vld [vmem:[%s3381] ss:$8 sm:$0xf]
  %v3384 = vlaneseq
  %v3385 = vshrl.u32 %v3384, 7
  %v3386 = vsub.s32 0, %v3385
  %v3387 = vrot.slane %v3382, %v3386
  %v3388 = vlaneseq
  %v3389 = vshrl.u32 %v3388, 7
  %v3390 = vsub.s32 1, %v3389
  %v3391 = vrot.slane %v3382, %v3390
  %v3392 = vlaneseq
  %v3393 = vshrl.u32 %v3392, 7
  %v3394 = vsub.s32 2, %v3393
  %v3395 = vrot.slane %v3382, %v3394
  %v3396 = vlaneseq
  %v3397 = vshrl.u32 %v3396, 7
  %v3398 = vsub.s32 3, %v3397
  %v3399 = vrot.slane %v3382, %v3398
  %v3404 = vmul.f32 %v3377, %v3387
  %v3405 = vmul.f32 %v3378, %v3391
  %v3406 = vmul.f32 %v3379, %v3395
  %v3407 = vmul.f32 %v3380, %v3399
  %s3408 = scalar_lea.vmem %s5, 129
  %v3409 = vld [vmem:[%s3408] ss:$8 sm:$0xf]
  %v3411 = vlaneseq
  %v3412 = vshrl.u32 %v3411, 7
  %v3413 = vsub.s32 0, %v3412
  %v3414 = vrot.slane %v3409, %v3413
  %v3415 = vlaneseq
  %v3416 = vshrl.u32 %v3415, 7
  %v3417 = vsub.s32 1, %v3416
  %v3418 = vrot.slane %v3409, %v3417
  %v3419 = vlaneseq
  %v3420 = vshrl.u32 %v3419, 7
  %v3421 = vsub.s32 2, %v3420
  %v3422 = vrot.slane %v3409, %v3421
  %v3423 = vlaneseq
  %v3424 = vshrl.u32 %v3423, 7
  %v3425 = vsub.s32 3, %v3424
  %v3426 = vrot.slane %v3409, %v3425
  %v3431 = vadd.f32 %v3404, %v3414
  %v3432 = vadd.f32 %v3405, %v3418
  %v3433 = vadd.f32 %v3406, %v3422
  %v3434 = vadd.f32 %v3407, %v3426
  %v3435 = vmul.f32 %v3279, 0.5
  %v3436 = vmul.f32 %v3281, 0.5
  %v3437 = vmul.f32 %v3320, 0.5
  %v3438 = vmul.f32 %v3322, 0.5
  %v3439 = vmul.f32 %v3279, 0.70710677
  %v3440 = vmul.f32 %v3281, 0.70710677
  %v3441 = vmul.f32 %v3320, 0.70710677
  %v3442 = vmul.f32 %v3322, 0.70710677
  %v3443 = verf.f32.pop %v3439
  %v3444 = verf.f32.pop %v3440
  %v3445 = verf.f32.pop %v3441
  %v3446 = verf.f32.pop %v3442
  %v3447 = vadd.f32 %v3443, 1.0
  %v3448 = vadd.f32 %v3444, 1.0
  %v3449 = vadd.f32 %v3445, 1.0
  %v3450 = vadd.f32 %v3446, 1.0
  %v3451 = vmul.f32 %v3435, %v3447
  %v3452 = vmul.f32 %v3436, %v3448
  %v3453 = vmul.f32 %v3437, %v3449
  %v3454 = vmul.f32 %v3438, %v3450
  %v3455 = vsel %vm2960, %v3451, 0.0
  %v3456 = vsel %vm2960, %v3452, 0.0
  %v3457 = vadd.f32 %v3455, %v3456
  %v3458 = vsel %vm2960, %v3453, 0.0
  %v3459 = vadd.f32 %v3457, %v3458
  %v3460 = vsel %vm2960, %v3454, 0.0
  %v3461 = vadd.f32 %v3459, %v3460
  %3462 = vadd.xlane.f32.xlu0 %v3461
  %v3463 = vpop.xlane.xlu0 %3462
  %v3464 = vmul.f32 %v3463, %v3355
  %v3465 = vsub.f32 %v3451, %v3464
  %v3466 = vsub.f32 %v3452, %v3464
  %v3467 = vsub.f32 %v3453, %v3464
  %v3468 = vsub.f32 %v3454, %v3464
  %v3469 = vmul.f32 %v3465, %v3465
  %v3470 = vmul.f32 %v3466, %v3466
  %v3471 = vmul.f32 %v3467, %v3467
  %v3472 = vmul.f32 %v3468, %v3468
  %v3473 = vsel %vm2960, %v3469, 0.0
  %v3474 = vsel %vm2960, %v3470, 0.0
  %v3475 = vadd.f32 %v3473, %v3474
  %v3476 = vsel %vm2960, %v3471, 0.0
  %v3477 = vadd.f32 %v3475, %v3476
  %v3478 = vsel %vm2960, %v3472, 0.0
  %v3479 = vadd.f32 %v3477, %v3478
  %3480 = vadd.xlane.f32.xlu0 %v3479
  %v3481 = vpop.xlane.xlu0 %3480
  %v3482 = vmul.f32 %v3481, %v3355
  %v3483 = vadd.f32 %v3482, 1e-05
  %v3484 = vrsqrt.pop %v3483
  %v3485 = vmul.f32 %v3465, %v3484
  %v3486 = vmul.f32 %v3466, %v3484
  %v3487 = vmul.f32 %v3467, %v3484
  %v3488 = vmul.f32 %v3468, %v3484
  %s3489 = scalar_lea.vmem %s5, 130
  %v3490 = vld [vmem:[%s3489] ss:$8 sm:$0xf]
  %v3492 = vlaneseq
  %v3493 = vshrl.u32 %v3492, 7
  %v3494 = vsub.s32 0, %v3493
  %v3495 = vrot.slane %v3490, %v3494
  %v3496 = vlaneseq
  %v3497 = vshrl.u32 %v3496, 7
  %v3498 = vsub.s32 1, %v3497
  %v3499 = vrot.slane %v3490, %v3498
  %v3500 = vlaneseq
  %v3501 = vshrl.u32 %v3500, 7
  %v3502 = vsub.s32 2, %v3501
  %v3503 = vrot.slane %v3490, %v3502
  %v3504 = vlaneseq
  %v3505 = vshrl.u32 %v3504, 7
  %v3506 = vsub.s32 3, %v3505
  %v3507 = vrot.slane %v3490, %v3506
  %v3512 = vmul.f32 %v3485, %v3495
  %v3513 = vmul.f32 %v3486, %v3499
  %v3514 = vmul.f32 %v3487, %v3503
  %v3515 = vmul.f32 %v3488, %v3507
  %s3516 = scalar_lea.vmem %s5, 131
  %v3517 = vld [vmem:[%s3516] ss:$8 sm:$0xf]
  %v3519 = vlaneseq
  %v3520 = vshrl.u32 %v3519, 7
  %v3521 = vsub.s32 0, %v3520
  %v3522 = vrot.slane %v3517, %v3521
  %v3523 = vlaneseq
  %v3524 = vshrl.u32 %v3523, 7
  %v3525 = vsub.s32 1, %v3524
  %v3526 = vrot.slane %v3517, %v3525
  %v3527 = vlaneseq
  %v3528 = vshrl.u32 %v3527, 7
  %v3529 = vsub.s32 2, %v3528
  %v3530 = vrot.slane %v3517, %v3529
  %v3531 = vlaneseq
  %v3532 = vshrl.u32 %v3531, 7
  %v3533 = vsub.s32 3, %v3532
  %v3534 = vrot.slane %v3517, %v3533
  %v3539 = vadd.f32 %v3512, %v3522
  %v3540 = vadd.f32 %v3513, %v3526
  %v3541 = vadd.f32 %v3514, %v3530
  %v3542 = vadd.f32 %v3515, %v3534
  %v3543 = vld [vmem:[%s10] sm:$0xff]
  %v3544 = vld [vmem:[%s10 + $0x8] sm:$0xff]
  %v3545 = vld [vmem:[%s10 + $0x10] sm:$0xff]
  %v3546 = vld [vmem:[%s10 + $0x18] sm:$0xff]
  %v3547 = vld [vmem:[%s10 + $0x20] sm:$0xff]
  %v3548 = vld [vmem:[%s10 + $0x28] sm:$0xff]
  %v3549 = vld [vmem:[%s10 + $0x30] sm:$0xff]
  %v3550 = vld [vmem:[%s10 + $0x38] sm:$0xff]
  %v3551 = vld [vmem:[%s10 + $0x40] sm:$0xff]
  %v3552 = vld [vmem:[%s10 + $0x48] sm:$0xff]
  %v3553 = vld [vmem:[%s10 + $0x50] sm:$0xff]
  %v3554 = vld [vmem:[%s10 + $0x58] sm:$0xff]
  %v3555 = vld [vmem:[%s10 + $0x60] sm:$0xff]
  %v3556 = vld [vmem:[%s10 + $0x68] sm:$0xff]
  %v3557 = vld [vmem:[%s10 + $0x70] sm:$0xff]
  %v3558 = vld [vmem:[%s10 + $0x78] sm:$0xff]
  %v3559 = vld [vmem:[%s10 + $0x80] sm:$0xff]
  %v3560 = vld [vmem:[%s10 + $0x88] sm:$0xff]
  %v3561 = vld [vmem:[%s10 + $0x90] sm:$0xff]
  %v3562 = vld [vmem:[%s10 + $0x98] sm:$0xff]
  %v3563 = vld [vmem:[%s10 + $0xa0] sm:$0xff]
  %v3564 = vld [vmem:[%s10 + $0xa8] sm:$0xff]
  %v3565 = vld [vmem:[%s10 + $0xb0] sm:$0xff]
  %v3566 = vld [vmem:[%s10 + $0xb8] sm:$0xff]
  %v3567 = vld [vmem:[%s10 + $0xc0] sm:$0xff]
  %v3568 = vld [vmem:[%s10 + $0xc8] sm:$0xff]
  %v3569 = vld [vmem:[%s10 + $0xd0] sm:$0xff]
  %v3570 = vld [vmem:[%s10 + $0xd8] sm:$0xff]
  %v3571 = vld [vmem:[%s10 + $0xe0] sm:$0xff]
  %v3572 = vld [vmem:[%s10 + $0xe8] sm:$0xff]
  %v3573 = vld [vmem:[%s10 + $0xf0] sm:$0xff]
  %v3574 = vld [vmem:[%s10 + $0xf8] sm:$0xff]
  %v3575 = vld [vmem:[%s10 + $0x100] sm:$0xff]
  %v3576 = vld [vmem:[%s10 + $0x108] sm:$0xff]
  %v3577 = vld [vmem:[%s10 + $0x110] sm:$0xff]
  %v3578 = vld [vmem:[%s10 + $0x118] sm:$0xff]
  %v3579 = vld [vmem:[%s10 + $0x120] sm:$0xff]
  %v3580 = vld [vmem:[%s10 + $0x128] sm:$0xff]
  %v3581 = vld [vmem:[%s10 + $0x130] sm:$0xff]
  %v3582 = vld [vmem:[%s10 + $0x138] sm:$0xff]
  %v3583 = vld [vmem:[%s10 + $0x140] sm:$0xff]
  %v3584 = vld [vmem:[%s10 + $0x148] sm:$0xff]
  %v3585 = vld [vmem:[%s10 + $0x150] sm:$0xff]
  %v3586 = vld [vmem:[%s10 + $0x158] sm:$0xff]
  %v3587 = vld [vmem:[%s10 + $0x160] sm:$0xff]
  %v3588 = vld [vmem:[%s10 + $0x168] sm:$0xff]
  %v3589 = vld [vmem:[%s10 + $0x170] sm:$0xff]
  %v3590 = vld [vmem:[%s10 + $0x178] sm:$0xff]
  %v3591 = vld [vmem:[%s10 + $0x180] sm:$0xff]
  %v3592 = vld [vmem:[%s10 + $0x188] sm:$0xff]
  %v3593 = vld [vmem:[%s10 + $0x190] sm:$0xff]
  %v3594 = vld [vmem:[%s10 + $0x198] sm:$0xff]
  %v3595 = vld [vmem:[%s10 + $0x1a0] sm:$0xff]
  %v3596 = vld [vmem:[%s10 + $0x1a8] sm:$0xff]
  %v3597 = vld [vmem:[%s10 + $0x1b0] sm:$0xff]
  %v3598 = vld [vmem:[%s10 + $0x1b8] sm:$0xff]
  %v3599 = vld [vmem:[%s10 + $0x1c0] sm:$0xff]
  %v3600 = vld [vmem:[%s10 + $0x1c8] sm:$0xff]
  %v3601 = vld [vmem:[%s10 + $0x1d0] sm:$0xff]
  %v3602 = vld [vmem:[%s10 + $0x1d8] sm:$0xff]
  %v3603 = vld [vmem:[%s10 + $0x1e0] sm:$0xff]
  %v3604 = vld [vmem:[%s10 + $0x1e8] sm:$0xff]
  %v3605 = vld [vmem:[%s10 + $0x1f0] sm:$0xff]
  %v3606 = vld [vmem:[%s10 + $0x1f8] sm:$0xff]
  %v3607 = vld [vmem:[%s5 + $0xc0] ss:$0 sm:$0xff]
  %3608 = vmatprep.subr.mxu0 0.0
  %3609 = vmatpush1.msra.mxu0 %v3543
  %3610 = vmatprep.subr.mxu0 0.0
  %3611 = vmatpush1.msra.mxu0 %v3544
  %3612 = vmatprep.subr.mxu0 0.0
  %3613 = vmatpush1.msra.mxu0 %v3545
  %3614 = vmatprep.subr.mxu0 0.0
  %3615 = vmatpush1.msra.mxu0 %v3546
  %3616 = vmatprep.subr.mxu0 0.0
  %3617 = vmatpush1.msra.mxu0 %v3547
  %3618 = vmatprep.subr.mxu0 0.0
  %3619 = vmatpush1.msra.mxu0 %v3548
  %3620 = vmatprep.subr.mxu0 0.0
  %3621 = vmatpush1.msra.mxu0 %v3549
  %3622 = vmatprep.subr.mxu0 0.0
  %3623 = vmatpush1.msra.mxu0 %v3550
  %3624 = vmatprep.subr.mxu0 0.0
  %3625 = vmatpush1.msra.mxu0 %v3551
  %3626 = vmatprep.subr.mxu0 0.0
  %3627 = vmatpush1.msra.mxu0 %v3552
  %3628 = vmatprep.subr.mxu0 0.0
  %3629 = vmatpush1.msra.mxu0 %v3553
  %3630 = vmatprep.subr.mxu0 0.0
  %3631 = vmatpush1.msra.mxu0 %v3554
  %3632 = vmatprep.subr.mxu0 0.0
  %3633 = vmatpush1.msra.mxu0 %v3555
  %3634 = vmatprep.subr.mxu0 0.0
  %3635 = vmatpush1.msra.mxu0 %v3556
  %3636 = vmatprep.subr.mxu0 0.0
  %3637 = vmatpush1.msra.mxu0 %v3557
  %3638 = vmatprep.subr.mxu0 0.0
  %3639 = vmatpush1.msra.mxu0 %v3558
  %3640 = vmatprep.subr.mxu0 0.0
  %3641 = vmatpush1.msra.mxu0 %v3559
  %3642 = vmatprep.subr.mxu0 0.0
  %3643 = vmatpush1.msra.mxu0 %v3560
  %3644 = vmatprep.subr.mxu0 0.0
  %3645 = vmatpush1.msra.mxu0 %v3561
  %3646 = vmatprep.subr.mxu0 0.0
  %3647 = vmatpush1.msra.mxu0 %v3562
  %3648 = vmatprep.subr.mxu0 0.0
  %3649 = vmatpush1.msra.mxu0 %v3563
  %3650 = vmatprep.subr.mxu0 0.0
  %3651 = vmatpush1.msra.mxu0 %v3564
  %3652 = vmatprep.subr.mxu0 0.0
  %3653 = vmatpush1.msra.mxu0 %v3565
  %3654 = vmatprep.subr.mxu0 0.0
  %3655 = vmatpush1.msra.mxu0 %v3566
  %3656 = vmatprep.subr.mxu0 0.0
  %3657 = vmatpush1.msra.mxu0 %v3567
  %3658 = vmatprep.subr.mxu0 0.0
  %3659 = vmatpush1.msra.mxu0 %v3568
  %3660 = vmatprep.subr.mxu0 0.0
  %3661 = vmatpush1.msra.mxu0 %v3569
  %3662 = vmatprep.subr.mxu0 0.0
  %3663 = vmatpush1.msra.mxu0 %v3570
  %3664 = vmatprep.subr.mxu0 0.0
  %3665 = vmatpush1.msra.mxu0 %v3571
  %3666 = vmatprep.subr.mxu0 0.0
  %3667 = vmatpush1.msra.mxu0 %v3572
  %3668 = vmatprep.subr.mxu0 0.0
  %3669 = vmatpush1.msra.mxu0 %v3573
  %3670 = vmatprep.subr.mxu0 0.0
  %3671 = vmatpush1.msra.mxu0 %v3574
  %3672 = vmatprep.mubr.f32.mxu0 %v3432
  %3673 = vmatmul.mubr.f32.gmra.mrb[0].mxu0 %v3431
  %v3674 = vpop.f32.mrb[0].mxu0
  %v3675 = vadd.f32 %v3607, %v3674
  %v3676 = vpop.f32.mrb[0].mxu0
  %3677 = vdwg.mxu0
  %3678 = vmatprep.subr.mxu0 0.0
  %3679 = vmatpush1.msra.mxu0 %v3575
  %3680 = vmatprep.subr.mxu0 0.0
  %3681 = vmatpush1.msra.mxu0 %v3576
  %3682 = vmatprep.subr.mxu0 0.0
  %3683 = vmatpush1.msra.mxu0 %v3577
  %3684 = vmatprep.subr.mxu0 0.0
  %3685 = vmatpush1.msra.mxu0 %v3578
  %3686 = vmatprep.subr.mxu0 0.0
  %3687 = vmatpush1.msra.mxu0 %v3579
  %3688 = vmatprep.subr.mxu0 0.0
  %3689 = vmatpush1.msra.mxu0 %v3580
  %3690 = vmatprep.subr.mxu0 0.0
  %3691 = vmatpush1.msra.mxu0 %v3581
  %3692 = vmatprep.subr.mxu0 0.0
  %3693 = vmatpush1.msra.mxu0 %v3582
  %3694 = vmatprep.subr.mxu0 0.0
  %3695 = vmatpush1.msra.mxu0 %v3583
  %3696 = vmatprep.subr.mxu0 0.0
  %3697 = vmatpush1.msra.mxu0 %v3584
  %3698 = vmatprep.subr.mxu0 0.0
  %3699 = vmatpush1.msra.mxu0 %v3585
  %3700 = vmatprep.subr.mxu0 0.0
  %3701 = vmatpush1.msra.mxu0 %v3586
  %3702 = vmatprep.subr.mxu0 0.0
  %3703 = vmatpush1.msra.mxu0 %v3587
  %3704 = vmatprep.subr.mxu0 0.0
  %3705 = vmatpush1.msra.mxu0 %v3588
  %3706 = vmatprep.subr.mxu0 0.0
  %3707 = vmatpush1.msra.mxu0 %v3589
  %3708 = vmatprep.subr.mxu0 0.0
  %3709 = vmatpush1.msra.mxu0 %v3590
  %3710 = vmatprep.subr.mxu0 0.0
  %3711 = vmatpush1.msra.mxu0 %v3591
  %3712 = vmatprep.subr.mxu0 0.0
  %3713 = vmatpush1.msra.mxu0 %v3592
  %3714 = vmatprep.subr.mxu0 0.0
  %3715 = vmatpush1.msra.mxu0 %v3593
  %3716 = vmatprep.subr.mxu0 0.0
  %3717 = vmatpush1.msra.mxu0 %v3594
  %3718 = vmatprep.subr.mxu0 0.0
  %3719 = vmatpush1.msra.mxu0 %v3595
  %3720 = vmatprep.subr.mxu0 0.0
  %3721 = vmatpush1.msra.mxu0 %v3596
  %3722 = vmatprep.subr.mxu0 0.0
  %3723 = vmatpush1.msra.mxu0 %v3597
  %3724 = vmatprep.subr.mxu0 0.0
  %3725 = vmatpush1.msra.mxu0 %v3598
  %3726 = vmatprep.subr.mxu0 0.0
  %3727 = vmatpush1.msra.mxu0 %v3599
  %3728 = vmatprep.subr.mxu0 0.0
  %3729 = vmatpush1.msra.mxu0 %v3600
  %3730 = vmatprep.subr.mxu0 0.0
  %3731 = vmatpush1.msra.mxu0 %v3601
  %3732 = vmatprep.subr.mxu0 0.0
  %3733 = vmatpush1.msra.mxu0 %v3602
  %3734 = vmatprep.subr.mxu0 0.0
  %3735 = vmatpush1.msra.mxu0 %v3603
  %3736 = vmatprep.subr.mxu0 0.0
  %3737 = vmatpush1.msra.mxu0 %v3604
  %3738 = vmatprep.subr.mxu0 0.0
  %3739 = vmatpush1.msra.mxu0 %v3605
  %3740 = vmatprep.subr.mxu0 0.0
  %3741 = vmatpush1.msra.mxu0 %v3606
  %3742 = vmatprep.mubr.f32.mxu0 %v3434
  %3743 = vmatmul.mubr.f32.gmra.mrb[0].mxu0 %v3433
  %v3744 = vpop.f32.mrb[0].mxu0
  %v3745 = vadd.f32 %v3675, %v3744
  %v3746 = vpop.f32.mrb[0].mxu0
  %3747 = vdwg.mxu0
  %v3748 = vxor.u32 %v3745, 2147483648
  %v3749 = vmul.f32 %v3748, 1.442695
  %v3750 = vpow.pop %v3749
  %v3751 = vadd.f32 %v3750, 1.0
  %v3752 = vrcp.pop %v3751
  %v3753 = vmul.f32 1.0, %v3752
  %s3754 = smul.u32 4, 64
  %s3755 = smul.u32 %s3754, 2
  %s3756 = sshll.u32 %s3755, 4
  %3757 = dma.done %s858, %s3756
  %v3758 = vpack.c.bf16 %v3539, %v3539
  %v3759 = vpack.c.bf16 %v3540, %v3540
  %v3760 = vpack.c.bf16 %v3541, %v3541
  %v3761 = vpack.c.bf16 %v3542, %v3542
  %v3762 = vld [vmem:[#allocation3] sm:$0xff]
  %v3763 = vld [vmem:[#allocation3 + $0x8] sm:$0xff]
  %v3764 = vld [vmem:[#allocation3 + $0x10] sm:$0xff]
  %v3765 = vld [vmem:[#allocation3 + $0x18] sm:$0xff]
  %v3766 = vld [vmem:[#allocation3 + $0x20] sm:$0xff]
  %v3767 = vld [vmem:[#allocation3 + $0x28] sm:$0xff]
  %v3768 = vld [vmem:[#allocation3 + $0x30] sm:$0xff]
  %v3769 = vld [vmem:[#allocation3 + $0x38] sm:$0xff]
  %v3770 = vld [vmem:[#allocation3 + $0x40] sm:$0xff]
  %v3771 = vld [vmem:[#allocation3 + $0x48] sm:$0xff]
  %v3772 = vld [vmem:[#allocation3 + $0x50] sm:$0xff]
  %v3773 = vld [vmem:[#allocation3 + $0x58] sm:$0xff]
  %v3774 = vld [vmem:[#allocation3 + $0x60] sm:$0xff]
  %v3775 = vld [vmem:[#allocation3 + $0x68] sm:$0xff]
  %v3776 = vld [vmem:[#allocation3 + $0x70] sm:$0xff]
  %v3777 = vld [vmem:[#allocation3 + $0x78] sm:$0xff]
  %v3778 = vld [vmem:[#allocation3 + $0x80] sm:$0xff]
  %v3779 = vld [vmem:[#allocation3 + $0x88] sm:$0xff]
  %v3780 = vld [vmem:[#allocation3 + $0x90] sm:$0xff]
  %v3781 = vld [vmem:[#allocation3 + $0x98] sm:$0xff]
  %v3782 = vld [vmem:[#allocation3 + $0xa0] sm:$0xff]
  %v3783 = vld [vmem:[#allocation3 + $0xa8] sm:$0xff]
  %v3784 = vld [vmem:[#allocation3 + $0xb0] sm:$0xff]
  %v3785 = vld [vmem:[#allocation3 + $0xb8] sm:$0xff]
  %v3786 = vld [vmem:[#allocation3 + $0xc0] sm:$0xff]
  %v3787 = vld [vmem:[#allocation3 + $0xc8] sm:$0xff]
  %v3788 = vld [vmem:[#allocation3 + $0xd0] sm:$0xff]
  %v3789 = vld [vmem:[#allocation3 + $0xd8] sm:$0xff]
  %v3790 = vld [vmem:[#allocation3 + $0xe0] sm:$0xff]
  %v3791 = vld [vmem:[#allocation3 + $0xe8] sm:$0xff]
  %v3792 = vld [vmem:[#allocation3 + $0xf0] sm:$0xff]
  %v3793 = vld [vmem:[#allocation3 + $0xf8] sm:$0xff]
  %v3794 = vld [vmem:[#allocation3 + $0x100] sm:$0xff]
  %v3795 = vld [vmem:[#allocation3 + $0x108] sm:$0xff]
  %v3796 = vld [vmem:[#allocation3 + $0x110] sm:$0xff]
  %v3797 = vld [vmem:[#allocation3 + $0x118] sm:$0xff]
  %v3798 = vld [vmem:[#allocation3 + $0x120] sm:$0xff]
  %v3799 = vld [vmem:[#allocation3 + $0x128] sm:$0xff]
  %v3800 = vld [vmem:[#allocation3 + $0x130] sm:$0xff]
  %v3801 = vld [vmem:[#allocation3 + $0x138] sm:$0xff]
  %v3802 = vld [vmem:[#allocation3 + $0x140] sm:$0xff]
  %v3803 = vld [vmem:[#allocation3 + $0x148] sm:$0xff]
  %v3804 = vld [vmem:[#allocation3 + $0x150] sm:$0xff]
  %v3805 = vld [vmem:[#allocation3 + $0x158] sm:$0xff]
  %v3806 = vld [vmem:[#allocation3 + $0x160] sm:$0xff]
  %v3807 = vld [vmem:[#allocation3 + $0x168] sm:$0xff]
  %v3808 = vld [vmem:[#allocation3 + $0x170] sm:$0xff]
  %v3809 = vld [vmem:[#allocation3 + $0x178] sm:$0xff]
  %v3810 = vld [vmem:[#allocation3 + $0x180] sm:$0xff]
  %v3811 = vld [vmem:[#allocation3 + $0x188] sm:$0xff]
  %v3812 = vld [vmem:[#allocation3 + $0x190] sm:$0xff]
  %v3813 = vld [vmem:[#allocation3 + $0x198] sm:$0xff]
  %v3814 = vld [vmem:[#allocation3 + $0x1a0] sm:$0xff]
  %v3815 = vld [vmem:[#allocation3 + $0x1a8] sm:$0xff]
  %v3816 = vld [vmem:[#allocation3 + $0x1b0] sm:$0xff]
  %v3817 = vld [vmem:[#allocation3 + $0x1b8] sm:$0xff]
  %v3818 = vld [vmem:[#allocation3 + $0x1c0] sm:$0xff]
  %v3819 = vld [vmem:[#allocation3 + $0x1c8] sm:$0xff]
  %v3820 = vld [vmem:[#allocation3 + $0x1d0] sm:$0xff]
  %v3821 = vld [vmem:[#allocation3 + $0x1d8] sm:$0xff]
  %v3822 = vld [vmem:[#allocation3 + $0x1e0] sm:$0xff]
  %v3823 = vld [vmem:[#allocation3 + $0x1e8] sm:$0xff]
  %v3824 = vld [vmem:[#allocation3 + $0x1f0] sm:$0xff]
  %v3825 = vld [vmem:[#allocation3 + $0x1f8] sm:$0xff]
  %s3826 = scalar_lea.vmem %s5, 132
  %v3827 = vld [vmem:[%s3826] ss:$8 sm:$0x3]
  %v3829 = vlaneseq
  %v3830 = vshrl.u32 %v3829, 7
  %v3831 = vsub.s32 0, %v3830
  %v3832 = vrot.slane %v3827, %v3831
  %v3833 = vlaneseq
  %v3834 = vshrl.u32 %v3833, 7
  %v3835 = vsub.s32 1, %v3834
  %v3836 = vrot.slane %v3827, %v3835
  %3839 = vmatprep.subr.bf16.mxu0 %v3763
  %3840 = vmatpush1.bf16.msra.mxu0 %v3762
  %3841 = vmatprep.subr.bf16.mxu0 %v3765
  %3842 = vmatpush1.bf16.msra.mxu0 %v3764
  %3843 = vmatprep.subr.bf16.mxu0 %v3767
  %3844 = vmatpush1.bf16.msra.mxu0 %v3766
  %3845 = vmatprep.subr.bf16.mxu0 %v3769
  %3846 = vmatpush1.bf16.msra.mxu0 %v3768
  %3847 = vmatprep.subr.bf16.mxu0 %v3771
  %3848 = vmatpush1.bf16.msra.mxu0 %v3770
  %3849 = vmatprep.subr.bf16.mxu0 %v3773
  %3850 = vmatpush1.bf16.msra.mxu0 %v3772
  %3851 = vmatprep.subr.bf16.mxu0 %v3775
  %3852 = vmatpush1.bf16.msra.mxu0 %v3774
  %3853 = vmatprep.subr.bf16.mxu0 %v3777
  %3854 = vmatpush1.bf16.msra.mxu0 %v3776
  %3855 = vmatprep.subr.bf16.mxu0 %v3779
  %3856 = vmatpush1.bf16.msra.mxu0 %v3778
  %3857 = vmatprep.subr.bf16.mxu0 %v3781
  %3858 = vmatpush1.bf16.msra.mxu0 %v3780
  %3859 = vmatprep.subr.bf16.mxu0 %v3783
  %3860 = vmatpush1.bf16.msra.mxu0 %v3782
  %3861 = vmatprep.subr.bf16.mxu0 %v3785
  %3862 = vmatpush1.bf16.msra.mxu0 %v3784
  %3863 = vmatprep.subr.bf16.mxu0 %v3787
  %3864 = vmatpush1.bf16.msra.mxu0 %v3786
  %3865 = vmatprep.subr.bf16.mxu0 %v3789
  %3866 = vmatpush1.bf16.msra.mxu0 %v3788
  %3867 = vmatprep.subr.bf16.mxu0 %v3791
  %3868 = vmatpush1.bf16.msra.mxu0 %v3790
  %3869 = vmatprep.subr.bf16.mxu0 %v3793
  %3870 = vmatpush1.bf16.msra.mxu0 %v3792
  %3871 = vmatprep.mubr.bf16.mxu0 %v3759
  %3872 = vmatmul.mubr.bf16.gmra.mrb[0].mxu0 %v3758
  %v3873 = vpop.f32.mrb[0].mxu0
  %v3874 = vadd.f32 %v3832, %v3873
  %v3875 = vpop.f32.mrb[0].mxu0
  %v3876 = vadd.f32 %v3836, %v3875
  %v3877 = vpop.f32.mrb[0].mxu0
  %v3878 = vpop.f32.mrb[0].mxu0
  %3879 = vdwg.mxu0
  %3880 = vmatprep.subr.bf16.mxu0 %v3795
  %3881 = vmatpush1.bf16.msra.mxu0 %v3794
  %3882 = vmatprep.subr.bf16.mxu0 %v3797
  %3883 = vmatpush1.bf16.msra.mxu0 %v3796
  %3884 = vmatprep.subr.bf16.mxu0 %v3799
  %3885 = vmatpush1.bf16.msra.mxu0 %v3798
  %3886 = vmatprep.subr.bf16.mxu0 %v3801
  %3887 = vmatpush1.bf16.msra.mxu0 %v3800
  %3888 = vmatprep.subr.bf16.mxu0 %v3803
  %3889 = vmatpush1.bf16.msra.mxu0 %v3802
  %3890 = vmatprep.subr.bf16.mxu0 %v3805
  %3891 = vmatpush1.bf16.msra.mxu0 %v3804
  %3892 = vmatprep.subr.bf16.mxu0 %v3807
  %3893 = vmatpush1.bf16.msra.mxu0 %v3806
  %3894 = vmatprep.subr.bf16.mxu0 %v3809
  %3895 = vmatpush1.bf16.msra.mxu0 %v3808
  %3896 = vmatprep.subr.bf16.mxu0 %v3811
  %3897 = vmatpush1.bf16.msra.mxu0 %v3810
  %3898 = vmatprep.subr.bf16.mxu0 %v3813
  %3899 = vmatpush1.bf16.msra.mxu0 %v3812
  %3900 = vmatprep.subr.bf16.mxu0 %v3815
  %3901 = vmatpush1.bf16.msra.mxu0 %v3814
  %3902 = vmatprep.subr.bf16.mxu0 %v3817
  %3903 = vmatpush1.bf16.msra.mxu0 %v3816
  %3904 = vmatprep.subr.bf16.mxu0 %v3819
  %3905 = vmatpush1.bf16.msra.mxu0 %v3818
  %3906 = vmatprep.subr.bf16.mxu0 %v3821
  %3907 = vmatpush1.bf16.msra.mxu0 %v3820
  %3908 = vmatprep.subr.bf16.mxu0 %v3823
  %3909 = vmatpush1.bf16.msra.mxu0 %v3822
  %3910 = vmatprep.subr.bf16.mxu0 %v3825
  %3911 = vmatpush1.bf16.msra.mxu0 %v3824
  %3912 = vmatprep.mubr.bf16.mxu0 %v3761
  %3913 = vmatmul.mubr.bf16.gmra.mrb[0].mxu0 %v3760
  %v3914 = vpop.f32.mrb[0].mxu0
  %v3915 = vadd.f32 %v3874, %v3914
  %v3916 = vpop.f32.mrb[0].mxu0
  %v3917 = vadd.f32 %v3876, %v3916
  %v3918 = vpop.f32.mrb[0].mxu0
  %v3919 = vpop.f32.mrb[0].mxu0
  %3920 = vdwg.mxu0
  %v3921 = vmul.f32 %v3915, 0.5
  %v3922 = vmul.f32 %v3917, 0.5
  %v3923 = vmul.f32 %v3915, 0.70710677
  %v3924 = vmul.f32 %v3917, 0.70710677
  %v3925 = verf.f32.pop %v3923
  %v3926 = verf.f32.pop %v3924
  %v3927 = vadd.f32 %v3925, 1.0
  %v3928 = vadd.f32 %v3926, 1.0
  %v3929 = vmul.f32 %v3921, %v3927
  %v3930 = vmul.f32 %v3922, %v3928
  %v3931 = vsel %vm2960, %v3929, 0.0
  %v3932 = vsel %vm2960, %v3930, 0.0
  %v3933 = vadd.f32 %v3931, %v3932
  %3934 = vadd.xlane.f32.xlu0 %v3933
  %v3935 = vpop.xlane.xlu0 %3934
  %v3936 = vrcp.pop 256.0
  %v3937 = vmul.f32 %v3935, %v3936
  %v3938 = vsub.f32 %v3929, %v3937
  %v3939 = vsub.f32 %v3930, %v3937
  %v3940 = vmul.f32 %v3938, %v3938
  %v3941 = vmul.f32 %v3939, %v3939
  %v3942 = vsel %vm2960, %v3940, 0.0
  %v3943 = vsel %vm2960, %v3941, 0.0
  %v3944 = vadd.f32 %v3942, %v3943
  %3945 = vadd.xlane.f32.xlu0 %v3944
  %v3946 = vpop.xlane.xlu0 %3945
  %v3947 = vmul.f32 %v3946, %v3936
  %v3948 = vadd.f32 %v3947, 1e-05
  %v3949 = vrsqrt.pop %v3948
  %v3950 = vmul.f32 %v3938, %v3949
  %v3951 = vmul.f32 %v3939, %v3949
  %s3952 = scalar_lea.vmem %s5, 133
  %v3953 = vld [vmem:[%s3952] ss:$8 sm:$0x3]
  %v3955 = vlaneseq
  %v3956 = vshrl.u32 %v3955, 7
  %v3957 = vsub.s32 0, %v3956
  %v3958 = vrot.slane %v3953, %v3957
  %v3959 = vlaneseq
  %v3960 = vshrl.u32 %v3959, 7
  %v3961 = vsub.s32 1, %v3960
  %v3962 = vrot.slane %v3953, %v3961
  %v3965 = vmul.f32 %v3950, %v3958
  %v3966 = vmul.f32 %v3951, %v3962
  %s3967 = scalar_lea.vmem %s5, 134
  %v3968 = vld [vmem:[%s3967] ss:$8 sm:$0x3]
  %v3970 = vlaneseq
  %v3971 = vshrl.u32 %v3970, 7
  %v3972 = vsub.s32 0, %v3971
  %v3973 = vrot.slane %v3968, %v3972
  %v3974 = vlaneseq
  %v3975 = vshrl.u32 %v3974, 7
  %v3976 = vsub.s32 1, %v3975
  %v3977 = vrot.slane %v3968, %v3976
  %v3980 = vadd.f32 %v3965, %v3973
  %v3981 = vadd.f32 %v3966, %v3977
  %s3982 = smul.u32 4, 32
  %s3983 = smul.u32 %s3982, 1
  %s3984 = sshll.u32 %s3983, 4
  %3985 = dma.done %s1419, %s3984
  %v3986 = vpack.c.bf16 %v3980, %v3980
  %v3987 = vpack.c.bf16 %v3981, %v3981
  %v3988 = vld [vmem:[#allocation4] sm:$0xff]
  %v3989 = vld [vmem:[#allocation4 + $0x8] sm:$0xff]
  %v3990 = vld [vmem:[#allocation4 + $0x10] sm:$0xff]
  %v3991 = vld [vmem:[#allocation4 + $0x18] sm:$0xff]
  %v3992 = vld [vmem:[#allocation4 + $0x20] sm:$0xff]
  %v3993 = vld [vmem:[#allocation4 + $0x28] sm:$0xff]
  %v3994 = vld [vmem:[#allocation4 + $0x30] sm:$0xff]
  %v3995 = vld [vmem:[#allocation4 + $0x38] sm:$0xff]
  %v3996 = vld [vmem:[#allocation4 + $0x40] sm:$0xff]
  %v3997 = vld [vmem:[#allocation4 + $0x48] sm:$0xff]
  %v3998 = vld [vmem:[#allocation4 + $0x50] sm:$0xff]
  %v3999 = vld [vmem:[#allocation4 + $0x58] sm:$0xff]
  %v4000 = vld [vmem:[#allocation4 + $0x60] sm:$0xff]
  %v4001 = vld [vmem:[#allocation4 + $0x68] sm:$0xff]
  %v4002 = vld [vmem:[#allocation4 + $0x70] sm:$0xff]
  %v4003 = vld [vmem:[#allocation4 + $0x78] sm:$0xff]
  %v4004 = vld [vmem:[%s5 + $0x87] ss:$0 sm:$0xff]
  %4005 = vmatprep.subr.bf16.mxu0 0
  %4006 = vmatpush1.bf16.msra.mxu0 %v3988
  %4007 = vmatprep.subr.bf16.mxu0 0
  %4008 = vmatpush1.bf16.msra.mxu0 %v3989
  %4009 = vmatprep.subr.bf16.mxu0 0
  %4010 = vmatpush1.bf16.msra.mxu0 %v3990
  %4011 = vmatprep.subr.bf16.mxu0 0
  %4012 = vmatpush1.bf16.msra.mxu0 %v3991
  %4013 = vmatprep.subr.bf16.mxu0 0
  %4014 = vmatpush1.bf16.msra.mxu0 %v3992
  %4015 = vmatprep.subr.bf16.mxu0 0
  %4016 = vmatpush1.bf16.msra.mxu0 %v3993
  %4017 = vmatprep.subr.bf16.mxu0 0
  %4018 = vmatpush1.bf16.msra.mxu0 %v3994
  %4019 = vmatprep.subr.bf16.mxu0 0
  %4020 = vmatpush1.bf16.msra.mxu0 %v3995
  %4021 = vmatprep.subr.bf16.mxu0 0
  %4022 = vmatpush1.bf16.msra.mxu0 %v3996
  %4023 = vmatprep.subr.bf16.mxu0 0
  %4024 = vmatpush1.bf16.msra.mxu0 %v3997
  %4025 = vmatprep.subr.bf16.mxu0 0
  %4026 = vmatpush1.bf16.msra.mxu0 %v3998
  %4027 = vmatprep.subr.bf16.mxu0 0
  %4028 = vmatpush1.bf16.msra.mxu0 %v3999
  %4029 = vmatprep.subr.bf16.mxu0 0
  %4030 = vmatpush1.bf16.msra.mxu0 %v4000
  %4031 = vmatprep.subr.bf16.mxu0 0
  %4032 = vmatpush1.bf16.msra.mxu0 %v4001
  %4033 = vmatprep.subr.bf16.mxu0 0
  %4034 = vmatpush1.bf16.msra.mxu0 %v4002
  %4035 = vmatprep.subr.bf16.mxu0 0
  %4036 = vmatpush1.bf16.msra.mxu0 %v4003
  %4037 = vmatprep.mubr.bf16.mxu0 %v3987
  %4038 = vmatmul.mubr.bf16.gmra.mrb[0].mxu0 %v3986
  %v4039 = vpop.f32.mrb[0].mxu0
  %v4040 = vadd.f32 %v4004, %v4039
  %v4041 = vpop.f32.mrb[0].mxu0
  %v4042 = vpop.f32.mrb[0].mxu0
  %v4043 = vpop.f32.mrb[0].mxu0
  %4044 = vdwg.mxu0
  %4046 = vrot.lane.b32.xlu0 %v3753, 64
  %v4047 = vpop.permute.xlu0 %4046
  %v4049 = vsel %vm1834, %v4040, %v4047
  %vm4050 = vcmask 531456
  %v4051 = vsel %vm4050, %v4049, 0.0
  %4052 = vst [vmem:[%s14] sm:$0x3] %v4051
  // Predicated region
  $region154: #{forward.3} parent=0 // pred_check
    _
  $region155: #{forward.3} parent=0 // pred_check_branch
    %4054 = sbr.rel (0) target = $region157
  $region156: #{forward.3} parent=0 // pred_region
    _
  $region157: #{forward.3} parent=0 // pred_fallthru
    _
  // Predicated region
  $region158: #{forward.3} parent=0 // pred_check
    _
  $region159: #{forward.3} parent=0 // pred_check_branch
    %4056 = sbr.rel (0) target = $region161
  $region160: #{forward.3} parent=0 // pred_region
    _
  $region161: #{forward.3} parent=0 // pred_fallthru
    _
  %4057 = vsyncmov [#allocation5]
  %s4058 = vpop.sfrf %4057
  %p4059 = scmp.eq.s32.totalorder %s4058, 0
  %p4060 = pneg %p4059
  %4062 = shalt.err (%p4060)
  %s4063 = scalar_lea.sflag [#allocation5], 1
  %4064 = vsyncmov %s4063
  %s4065 = vpop.sfrf %4064
  %p4066 = scmp.eq.s32.totalorder %s4065, 0
  %p4067 = pneg %p4066
  %4069 = shalt.err (%p4067)
  %s4070 = scalar_lea.sflag [#allocation5], 2
  %4071 = vsyncmov %s4070
  %s4072 = vpop.sfrf %4071
  %p4073 = scmp.eq.s32.totalorder %s4072, 0
  %p4074 = pneg %p4073
  %4076 = shalt.err (%p4074)

</llo_original>
